<compile_context>
chip_gen: v7x
topology: tpu7x:2x2x1
jax: 0.10.0
libtpu: 0.0.40
codegen_flags: <defaults>
</compile_context>

<pallas_src>
import functools
import math

import jax
import jax.numpy as jnp
from jax.experimental import pallas as pl
from jax.experimental.pallas import tpu as pltpu


NEG_INF = -1e30  # additive mask value (bf16-representable; exp underflows to 0)


# --------------------------------------------------------------------------
# Fused Pallas kernel: all decoder layers + output head for one batch row.
# --------------------------------------------------------------------------
def fused_forward_kernel(x_ref, sam_ref, cam_ref,
                         wqkv_ref, wo_ref, wff1_ref, wff2_ref, vec_ref,
                         wout_ref, wc_ref, hvec_ref,
                         out_ref, *, num_heads, num_layers, embed_dim,
                         ff_dim, seq_len):
    E, H, S, F, L = embed_dim, num_heads, seq_len, ff_dim, num_layers
    Dh = E // H
    scale = 1.0 / math.sqrt(Dh)
    f32, bf16 = jnp.float32, jnp.bfloat16

    x = x_ref[0].astype(f32)            # [S, E] current activation (f32)
    mem_bf = x.astype(bf16)             # decoder "memory" (pre-layer x) for cross-attn
    sa_mask = sam_ref[...]              # [H*S, H*S] bf16: causal + head-block mask
    ca_mask = cam_ref[...]              # [H*S, H*S] bf16: head-block mask only

    def layer_norm(v, w, b):
        mu = jnp.mean(v, axis=-1, keepdims=True)
        var = jnp.mean((v - mu) ** 2, axis=-1, keepdims=True)
        return (v - mu) * jax.lax.rsqrt(var + 1e-5) * w + b

    def softmax(s):                     # rows of s are never fully masked
        m = jnp.max(s, axis=-1, keepdims=True)
        e = jnp.exp(s - m)
        return e * pl.reciprocal(jnp.sum(e, axis=-1, keepdims=True), approx=True)

    def split_heads(t):                 # [S, E] -> [H*S, Dh] (head-major stack)
        return jnp.concatenate(
            [t[:, h * Dh:(h + 1) * Dh] for h in range(H)], axis=0)

    def merge_heads(t):                 # [H*S, Dh] -> [S, E]
        return jnp.concatenate(
            [t[h * S:(h + 1) * S, :] for h in range(H)], axis=1)

    def attention(q, k, v, big_mask, wo, bo):
        # q, k, v: [S, E] f32 (already biased).  All heads handled at once via
        # a block-diagonal [H*S, H*S] score matrix + additive mask.  The
        # 1/sqrt(Dh) scale is folded into q (small operand) and the head
        # split/merge relayouts operate on bf16 (half the bytes).
        qr = split_heads((q * scale).astype(bf16))   # [H*S, Dh]
        kr = split_heads(k.astype(bf16))
        vr = split_heads(v.astype(bf16))
        scores = jax.lax.dot_general(                # Q @ K^T  -> [H*S, H*S]
            qr, kr, (((1,), (1,)), ((), ())),
            preferred_element_type=f32)
        p = softmax(scores + big_mask)               # f32
        o = jnp.dot(p.astype(bf16), vr, preferred_element_type=f32)  # [H*S, Dh]
        o = merge_heads(o.astype(bf16))              # [S, E] bf16
        return jnp.dot(o, wo, preferred_element_type=f32) + bo

    # ---------------- decoder layers (post-norm, ReLU FFN) ----------------
    for l in range(L):
        vl = vec_ref[l]                              # [12, PACKW] f32
        sa_bqkv = vl[0:1, :3 * E]
        sa_bo = vl[1:2, :E]
        ca_bqkv = vl[2:3, :3 * E]
        ca_bo = vl[3:4, :E]
        ff_b1 = vl[4:5, :F]
        ff_b2 = vl[5:6, :E]
        ln1_w, ln1_b = vl[6:7, :E], vl[7:8, :E]
        ln2_w, ln2_b = vl[8:9, :E], vl[9:10, :E]
        ln3_w, ln3_b = vl[10:11, :E], vl[11:12, :E]

        sa_wqkv = wqkv_ref[l, 0]                     # [E, 3E] bf16
        ca_wqkv = wqkv_ref[l, 1]
        sa_wo = wo_ref[l, 0]                         # [E, E]  bf16
        ca_wo = wo_ref[l, 1]
        w1 = wff1_ref[l]                             # [E, F]  bf16
        w2 = wff2_ref[l]                             # [F, E]  bf16

        # -- self-attention block --
        x_bf = x.astype(bf16)
        qkv = jnp.dot(x_bf, sa_wqkv, preferred_element_type=f32) + sa_bqkv
        sa_out = attention(qkv[:, :E], qkv[:, E:2 * E], qkv[:, 2 * E:],
                           sa_mask, sa_wo, sa_bo)
        x = layer_norm(x + sa_out, ln1_w, ln1_b)

        # -- cross-attention block against the (pre-decoder) memory --
        x_bf = x.astype(bf16)
        q = jnp.dot(x_bf, ca_wqkv[:, :E], preferred_element_type=f32) + ca_bqkv[:, :E]
        kv = jnp.dot(mem_bf, ca_wqkv[:, E:], preferred_element_type=f32) + ca_bqkv[:, E:]
        ca_out = attention(q, kv[:, :E], kv[:, E:], ca_mask, ca_wo, ca_bo)
        x = layer_norm(x + ca_out, ln2_w, ln2_b)

        # -- feed-forward block (ReLU) --
        x_bf = x.astype(bf16)
        h1 = jnp.maximum(jnp.dot(x_bf, w1, preferred_element_type=f32) + ff_b1, 0.0)
        ff = jnp.dot(h1.astype(bf16), w2, preferred_element_type=f32) + ff_b2
        x = layer_norm(x + ff, ln3_w, ln3_b)

    # --------- head: output_layer -> BatchNorm1d(eval) -> ReLU6 -> combine ---------
    hv = hvec_ref[...]                               # [3, V] f32
    bn_scale, bn_shift, bc = hv[0:1, :], hv[1:2, :], hv[2:3, :]
    logits = jnp.dot(x.astype(bf16), wout_ref[...],
                     preferred_element_type=f32)     # [S, V]
    # BatchNorm1d over the vocab channel (PyTorch permutes to [B, V, S]),
    # eval-mode folded into scale/shift; then ReLU6.
    z = jnp.minimum(jnp.maximum(logits * bn_scale + bn_shift, 0.0), 6.0)
    # output_combine: flatten [S, V] row-major into a lane-dense [1, S*V] slab
    # and contract against wc_flat [S*V, V] in a single matmul.
    z_flat = jnp.concatenate([z[s:s + 1, :] for s in range(S)], axis=1)
    out = jnp.dot(z_flat.astype(bf16), wc_ref[...],
                  preferred_element_type=f32) + bc   # [1, V]
    out_ref[0] = out


# --------------------------------------------------------------------------
# Wrapper: one pallas_call over a batch grid (parallel -> both v7x cores).
# --------------------------------------------------------------------------
def model_forward(src, params, *, num_heads):
    B, S = src.shape
    E = params['embedding'].shape[1]
    V = params['wout_t'].shape[1]
    F = params['wff1'].shape[2]
    L = params['wqkv'].shape[0]
    H = num_heads

    # embedding lookup (gather) + positional encoding: JAX glue
    # TODO(synk): dropout layers are identity here (inference semantics).
    x = (params['embedding'][src] + positional_encoding(S, E)[None]).astype(jnp.float32)

    # masks: causal mask replicated block-diagonally over the head axis so the
    # kernel can do attention for all heads as one [H*S, H*S] score matrix.
    # Stored in bf16 (additive, large-negative) to halve VMEM / DMA bytes.
    causal = jnp.where(jnp.arange(S)[:, None] >= jnp.arange(S)[None, :],
                       0.0, NEG_INF).astype(jnp.float32)
    same_head = (jnp.arange(H * S)[:, None] // S) == (jnp.arange(H * S)[None, :] // S)
    sa_mask = jnp.where(same_head, jnp.tile(causal, (H, H)),
                        NEG_INF).astype(jnp.bfloat16)
    ca_mask = jnp.where(same_head, 0.0, NEG_INF).astype(jnp.bfloat16)

    weights = [sa_mask, ca_mask, params['wqkv'], params['wo'], params['wff1'],
               params['wff2'], params['vecs'], params['wout_t'],
               params['wc_flat'], params['hvec']]

    def const_spec(a):
        nd = a.ndim
        return pl.BlockSpec(a.shape, lambda b, _nd=nd: (0,) * _nd)

    kernel = functools.partial(fused_forward_kernel, num_heads=H, num_layers=L,
                               embed_dim=E, ff_dim=F, seq_len=S)

    out = pl.pallas_call(
        kernel,
        out_shape=jax.ShapeDtypeStruct((B, 1, V), jnp.float32),
        grid=(B,),
        in_specs=[pl.BlockSpec((1, S, E), lambda b: (b, 0, 0))]
                 + [const_spec(a) for a in weights],
        out_specs=pl.BlockSpec((1, 1, V), lambda b: (b, 0, 0)),
        compiler_params=pltpu.CompilerParams(
            dimension_semantics=("parallel",)),
    )(x, *weights)
    return out[:, 0, :]


# --------------------------------------------------------------------------
# Glue: positional encoding & parameter construction / packing.
# --------------------------------------------------------------------------
def positional_encoding(seq_len, d_model):
    pos = jnp.arange(seq_len, dtype=jnp.float32)[:, None]
    div = jnp.exp(jnp.arange(0, d_model, 2, dtype=jnp.float32)
                  * (-math.log(10000.0) / d_model))
    pe = jnp.zeros((seq_len, d_model), jnp.float32)
    pe = pe.at[:, 0::2].set(jnp.sin(pos * div))
    pe = pe.at[:, 1::2].set(jnp.cos(pos * div))
    return pe


def init_params(key, vocab_size, seq_len, embed_dim, num_heads, num_layers, ff_mult):
    E, V, S, L = embed_dim, vocab_size, seq_len, num_layers
    F = E * ff_mult
    packw = max(3 * E, F)
    keys = iter(jax.random.split(key, 8 * num_layers + 8))

    def xavier(shape, gain=math.sqrt(2.0)):   # torch xavier_uniform, relu gain
        fan_out, fan_in = shape
        a = gain * math.sqrt(6.0 / (fan_in + fan_out))
        return jax.random.uniform(next(keys), shape, jnp.float32, -a, a)

    def pad_row(v):
        return jnp.pad(v, (0, packw - v.shape[0]))

    emb = 0.05 * jax.random.normal(next(keys), (V, E), jnp.float32)
    emb = emb.at[0].set(0.0)                  # padding_idx=0

    zE = jnp.zeros((E,), jnp.float32)
    wqkv, wo, wff1, wff2, vecs = [], [], [], [], []
    for _ in range(L):
        sa_wqkv_t = xavier((3 * E, E)).T
        ca_wqkv_t = xavier((3 * E, E)).T
        sa_wo_t = xavier((E, E)).T
        ca_wo_t = xavier((E, E)).T
        wqkv.append(jnp.stack([sa_wqkv_t, ca_wqkv_t]))        # [2, E, 3E]
        wo.append(jnp.stack([sa_wo_t, ca_wo_t]))              # [2, E, E]
        wff1.append(xavier((F, E)).T)                         # [E, F]
        wff2.append(xavier((E, F)).T)                         # [F, E]
        vecs.append(jnp.stack([                               # [12, packw]
            pad_row(jnp.zeros((3 * E,), jnp.float32)),        # sa_bqkv
            pad_row(zE),                                      # sa_bo
            pad_row(jnp.zeros((3 * E,), jnp.float32)),        # ca_bqkv
            pad_row(zE),                                      # ca_bo
            pad_row(jnp.zeros((F,), jnp.float32)),            # ff_b1
            pad_row(zE),                                      # ff_b2
            pad_row(jnp.ones((E,), jnp.float32)),             # ln1_w
            pad_row(zE),                                      # ln1_b
            pad_row(jnp.ones((E,), jnp.float32)),             # ln2_w
            pad_row(zE),                                      # ln2_b
            pad_row(jnp.ones((E,), jnp.float32)),             # ln3_w
            pad_row(zE),                                      # ln3_b
        ]))

    wout = xavier((V, E))                      # output_layer (bias=False)
    # TODO(synk): BatchNorm1d uses eval-mode running stats (mean=0, var=1 at init).
    gamma = jnp.ones((V,), jnp.float32)
    beta = jnp.zeros((V,), jnp.float32)
    run_mean = jnp.zeros((V,), jnp.float32)
    run_var = jnp.ones((V,), jnp.float32)
    inv_std = gamma / jnp.sqrt(run_var + 1e-5)
    bn_scale = inv_std
    bn_shift = beta - run_mean * inv_std

    wc = xavier((V, V * S))                    # output_combine weight [out, in]
    bc = jnp.zeros((V,), jnp.float32)

    return dict(
        embedding=emb,
        wqkv=jnp.stack(wqkv).astype(jnp.bfloat16),    # [L, 2, E, 3E]
        wo=jnp.stack(wo).astype(jnp.bfloat16),        # [L, 2, E, E]
        wff1=jnp.stack(wff1).astype(jnp.bfloat16),    # [L, E, F]
        wff2=jnp.stack(wff2).astype(jnp.bfloat16),    # [L, F, E]
        vecs=jnp.stack(vecs),                         # [L, 12, packw] f32
        wout_t=wout.T.astype(jnp.bfloat16),           # [E, V]
        wc_flat=wc.T.astype(jnp.bfloat16),            # [S*V, V]
        hvec=jnp.stack([bn_scale, bn_shift, bc]),     # [3, V] f32
    )


# --------------------------------------------------------------------------
if __name__ == "__main__":
    VOCAB, SEQ, EMBED, HEADS, LAYERS, FF_MULT = 32, 8, 32, 4, 2, 4
    BATCH = 2

    key = jax.random.PRNGKey(0)
    pkey, dkey = jax.random.split(key)
    params = init_params(pkey, VOCAB, SEQ, EMBED, HEADS, LAYERS, FF_MULT)
    src = jax.random.randint(dkey, (BATCH, SEQ), 0, VOCAB, dtype=jnp.int32)

    fwd = jax.jit(functools.partial(model_forward, num_heads=HEADS))
    out = jax.block_until_ready(fwd(src, params))

    assert out.shape == (BATCH, VOCAB), out.shape
    assert bool(jnp.all(jnp.isfinite(out)))
    print("KERNEL_OK")
</pallas_src>

<mosaic_0001>
module attributes {stable_mosaic.version = 11 : i64} {
  func.func @fused_forward_kernel(%arg0: i32, %arg1: memref<1x8x32xf32, #tpu.memory_space<vmem>>, %arg2: memref<32x32xbf16, #tpu.memory_space<vmem>>, %arg3: memref<32x32xbf16, #tpu.memory_space<vmem>>, %arg4: memref<2x2x32x96xbf16, #tpu.memory_space<vmem>>, %arg5: memref<2x2x32x32xbf16, #tpu.memory_space<vmem>>, %arg6: memref<2x32x128xbf16, #tpu.memory_space<vmem>>, %arg7: memref<2x128x32xbf16, #tpu.memory_space<vmem>>, %arg8: memref<2x12x128xf32, #tpu.memory_space<vmem>>, %arg9: memref<32x32xbf16, #tpu.memory_space<vmem>>, %arg10: memref<256x32xbf16, #tpu.memory_space<vmem>>, %arg11: memref<3x32xf32, #tpu.memory_space<vmem>>, %arg12: memref<1x1x32xf32, #tpu.memory_space<vmem>>) attributes {dimension_semantics = [#tpu.dimension_semantics<parallel>], iteration_bounds = array<i64: 2>, scalar_prefetch = 0 : i64, scratch_operands = 0 : i64, tpu.core_type = #tpu.core_type<tc>, window_params = [{transform_indices = @transform_0, window_bounds = array<i64: 1, 8, 32>}, {pipeline_mode = #tpu.pipeline_mode<synchronous>, transform_indices = @transform_1, window_bounds = array<i64: 32, 32>}, {pipeline_mode = #tpu.pipeline_mode<synchronous>, transform_indices = @transform_2, window_bounds = array<i64: 32, 32>}, {pipeline_mode = #tpu.pipeline_mode<synchronous>, transform_indices = @transform_3, window_bounds = array<i64: 2, 2, 32, 96>}, {pipeline_mode = #tpu.pipeline_mode<synchronous>, transform_indices = @transform_4, window_bounds = array<i64: 2, 2, 32, 32>}, {pipeline_mode = #tpu.pipeline_mode<synchronous>, transform_indices = @transform_5, window_bounds = array<i64: 2, 32, 128>}, {pipeline_mode = #tpu.pipeline_mode<synchronous>, transform_indices = @transform_6, window_bounds = array<i64: 2, 128, 32>}, {pipeline_mode = #tpu.pipeline_mode<synchronous>, transform_indices = @transform_7, window_bounds = array<i64: 2, 12, 128>}, {pipeline_mode = #tpu.pipeline_mode<synchronous>, transform_indices = @transform_8, window_bounds = array<i64: 32, 32>}, {pipeline_mode = #tpu.pipeline_mode<synchronous>, transform_indices = @transform_9, window_bounds = array<i64: 256, 32>}, {pipeline_mode = #tpu.pipeline_mode<synchronous>, transform_indices = @transform_10, window_bounds = array<i64: 3, 32>}, {transform_indices = @transform_11, window_bounds = array<i64: 1, 1, 32>}]} {
    %c0 = arith.constant 0 : index
    %c0_0 = arith.constant 0 : index
    %c0_1 = arith.constant 0 : index
    %0 = vector.load %arg1[%c0, %c0_0, %c0_1] : memref<1x8x32xf32, #tpu.memory_space<vmem>>, vector<1x8x32xf32>
    %1 = vector.shape_cast %0 : vector<1x8x32xf32> to vector<8x32xf32>
    %2 = arith.truncf %1 : vector<8x32xf32> to vector<8x32xbf16>
    %c0_2 = arith.constant 0 : index
    %c0_3 = arith.constant 0 : index
    %3 = vector.load %arg2[%c0_2, %c0_3] : memref<32x32xbf16, #tpu.memory_space<vmem>>, vector<32x32xbf16>
    %c0_4 = arith.constant 0 : index
    %c0_5 = arith.constant 0 : index
    %4 = vector.load %arg3[%c0_4, %c0_5] : memref<32x32xbf16, #tpu.memory_space<vmem>>, vector<32x32xbf16>
    %c0_6 = arith.constant 0 : index
    %c0_7 = arith.constant 0 : index
    %c0_8 = arith.constant 0 : index
    %5 = vector.load %arg8[%c0_6, %c0_7, %c0_8] : memref<2x12x128xf32, #tpu.memory_space<vmem>>, vector<1x12x128xf32>
    %6 = vector.shape_cast %5 : vector<1x12x128xf32> to vector<12x128xf32>
    %7 = vector.extract_strided_slice %6 {offsets = [0, 0], sizes = [1, 96], strides = [1, 1]} : vector<12x128xf32> to vector<1x96xf32>
    %8 = vector.extract_strided_slice %6 {offsets = [1, 0], sizes = [1, 32], strides = [1, 1]} : vector<12x128xf32> to vector<1x32xf32>
    %9 = vector.extract_strided_slice %6 {offsets = [2, 0], sizes = [1, 96], strides = [1, 1]} : vector<12x128xf32> to vector<1x96xf32>
    %10 = vector.extract_strided_slice %6 {offsets = [3, 0], sizes = [1, 32], strides = [1, 1]} : vector<12x128xf32> to vector<1x32xf32>
    %11 = vector.extract_strided_slice %6 {offsets = [4, 0], sizes = [1, 128], strides = [1, 1]} : vector<12x128xf32> to vector<1x128xf32>
    %12 = vector.extract_strided_slice %6 {offsets = [5, 0], sizes = [1, 32], strides = [1, 1]} : vector<12x128xf32> to vector<1x32xf32>
    %13 = vector.extract_strided_slice %6 {offsets = [6, 0], sizes = [1, 32], strides = [1, 1]} : vector<12x128xf32> to vector<1x32xf32>
    %14 = vector.extract_strided_slice %6 {offsets = [7, 0], sizes = [1, 32], strides = [1, 1]} : vector<12x128xf32> to vector<1x32xf32>
    %15 = vector.extract_strided_slice %6 {offsets = [8, 0], sizes = [1, 32], strides = [1, 1]} : vector<12x128xf32> to vector<1x32xf32>
    %16 = vector.extract_strided_slice %6 {offsets = [9, 0], sizes = [1, 32], strides = [1, 1]} : vector<12x128xf32> to vector<1x32xf32>
    %17 = vector.extract_strided_slice %6 {offsets = [10, 0], sizes = [1, 32], strides = [1, 1]} : vector<12x128xf32> to vector<1x32xf32>
    %18 = vector.extract_strided_slice %6 {offsets = [11, 0], sizes = [1, 32], strides = [1, 1]} : vector<12x128xf32> to vector<1x32xf32>
    %c0_9 = arith.constant 0 : index
    %c0_10 = arith.constant 0 : index
    %c0_11 = arith.constant 0 : index
    %c0_12 = arith.constant 0 : index
    %19 = vector.load %arg4[%c0_9, %c0_10, %c0_11, %c0_12] : memref<2x2x32x96xbf16, #tpu.memory_space<vmem>>, vector<1x1x32x96xbf16>
    %20 = vector.shape_cast %19 : vector<1x1x32x96xbf16> to vector<32x96xbf16>
    %c0_13 = arith.constant 0 : index
    %c1 = arith.constant 1 : index
    %c0_14 = arith.constant 0 : index
    %c0_15 = arith.constant 0 : index
    %21 = vector.load %arg4[%c0_13, %c1, %c0_14, %c0_15] : memref<2x2x32x96xbf16, #tpu.memory_space<vmem>>, vector<1x1x32x96xbf16>
    %22 = vector.shape_cast %21 : vector<1x1x32x96xbf16> to vector<32x96xbf16>
    %c0_16 = arith.constant 0 : index
    %c0_17 = arith.constant 0 : index
    %c0_18 = arith.constant 0 : index
    %c0_19 = arith.constant 0 : index
    %23 = vector.load %arg5[%c0_16, %c0_17, %c0_18, %c0_19] : memref<2x2x32x32xbf16, #tpu.memory_space<vmem>>, vector<1x1x32x32xbf16>
    %24 = vector.shape_cast %23 : vector<1x1x32x32xbf16> to vector<32x32xbf16>
    %c0_20 = arith.constant 0 : index
    %c1_21 = arith.constant 1 : index
    %c0_22 = arith.constant 0 : index
    %c0_23 = arith.constant 0 : index
    %25 = vector.load %arg5[%c0_20, %c1_21, %c0_22, %c0_23] : memref<2x2x32x32xbf16, #tpu.memory_space<vmem>>, vector<1x1x32x32xbf16>
    %26 = vector.shape_cast %25 : vector<1x1x32x32xbf16> to vector<32x32xbf16>
    %c0_24 = arith.constant 0 : index
    %c0_25 = arith.constant 0 : index
    %c0_26 = arith.constant 0 : index
    %27 = vector.load %arg6[%c0_24, %c0_25, %c0_26] : memref<2x32x128xbf16, #tpu.memory_space<vmem>>, vector<1x32x128xbf16>
    %28 = vector.shape_cast %27 : vector<1x32x128xbf16> to vector<32x128xbf16>
    %c0_27 = arith.constant 0 : index
    %c0_28 = arith.constant 0 : index
    %c0_29 = arith.constant 0 : index
    %29 = vector.load %arg7[%c0_27, %c0_28, %c0_29] : memref<2x128x32xbf16, #tpu.memory_space<vmem>>, vector<1x128x32xbf16>
    %30 = vector.shape_cast %29 : vector<1x128x32xbf16> to vector<128x32xbf16>
    %31 = arith.truncf %1 : vector<8x32xf32> to vector<8x32xbf16>
    %cst = arith.constant dense<0.000000e+00> : vector<8x96xf32>
    %32 = tpu.matmul %31, %20, %cst {dimension_numbers = #tpu.dot_dimension_numbers<[1], [0], [0], [1], [0, 0, 1, 1], [], []>} : vector<8x32xbf16>, vector<32x96xbf16>, vector<8x96xf32> -> vector<8x96xf32>
    %33 = vector.broadcast %7 : vector<1x96xf32> to vector<8x96xf32>
    %34 = arith.addf %32, %33 : vector<8x96xf32>
    %35 = vector.extract_strided_slice %34 {offsets = [0, 0], sizes = [8, 32], strides = [1, 1]} : vector<8x96xf32> to vector<8x32xf32>
    %36 = vector.extract_strided_slice %34 {offsets = [0, 32], sizes = [8, 32], strides = [1, 1]} : vector<8x96xf32> to vector<8x32xf32>
    %37 = vector.extract_strided_slice %34 {offsets = [0, 64], sizes = [8, 32], strides = [1, 1]} : vector<8x96xf32> to vector<8x32xf32>
    %cst_30 = arith.constant 0.353553385 : f32
    %38 = vector.broadcast %cst_30 : f32 to vector<8x32xf32>
    %39 = arith.mulf %35, %38 : vector<8x32xf32>
    %40 = arith.truncf %39 : vector<8x32xf32> to vector<8x32xbf16>
    %41 = vector.extract_strided_slice %40 {offsets = [0, 0], sizes = [8, 8], strides = [1, 1]} : vector<8x32xbf16> to vector<8x8xbf16>
    %42 = vector.extract_strided_slice %40 {offsets = [0, 8], sizes = [8, 8], strides = [1, 1]} : vector<8x32xbf16> to vector<8x8xbf16>
    %43 = vector.extract_strided_slice %40 {offsets = [0, 16], sizes = [8, 8], strides = [1, 1]} : vector<8x32xbf16> to vector<8x8xbf16>
    %44 = vector.extract_strided_slice %40 {offsets = [0, 24], sizes = [8, 8], strides = [1, 1]} : vector<8x32xbf16> to vector<8x8xbf16>
    %45 = tpu.concatenate %41, %42, %43, %44 in 0 : vector<8x8xbf16>, vector<8x8xbf16>, vector<8x8xbf16>, vector<8x8xbf16> -> vector<32x8xbf16>
    %46 = arith.truncf %36 : vector<8x32xf32> to vector<8x32xbf16>
    %47 = vector.extract_strided_slice %46 {offsets = [0, 0], sizes = [8, 8], strides = [1, 1]} : vector<8x32xbf16> to vector<8x8xbf16>
    %48 = vector.extract_strided_slice %46 {offsets = [0, 8], sizes = [8, 8], strides = [1, 1]} : vector<8x32xbf16> to vector<8x8xbf16>
    %49 = vector.extract_strided_slice %46 {offsets = [0, 16], sizes = [8, 8], strides = [1, 1]} : vector<8x32xbf16> to vector<8x8xbf16>
    %50 = vector.extract_strided_slice %46 {offsets = [0, 24], sizes = [8, 8], strides = [1, 1]} : vector<8x32xbf16> to vector<8x8xbf16>
    %51 = tpu.concatenate %47, %48, %49, %50 in 0 : vector<8x8xbf16>, vector<8x8xbf16>, vector<8x8xbf16>, vector<8x8xbf16> -> vector<32x8xbf16>
    %52 = arith.truncf %37 : vector<8x32xf32> to vector<8x32xbf16>
    %53 = vector.extract_strided_slice %52 {offsets = [0, 0], sizes = [8, 8], strides = [1, 1]} : vector<8x32xbf16> to vector<8x8xbf16>
    %54 = vector.extract_strided_slice %52 {offsets = [0, 8], sizes = [8, 8], strides = [1, 1]} : vector<8x32xbf16> to vector<8x8xbf16>
    %55 = vector.extract_strided_slice %52 {offsets = [0, 16], sizes = [8, 8], strides = [1, 1]} : vector<8x32xbf16> to vector<8x8xbf16>
    %56 = vector.extract_strided_slice %52 {offsets = [0, 24], sizes = [8, 8], strides = [1, 1]} : vector<8x32xbf16> to vector<8x8xbf16>
    %57 = tpu.concatenate %53, %54, %55, %56 in 0 : vector<8x8xbf16>, vector<8x8xbf16>, vector<8x8xbf16>, vector<8x8xbf16> -> vector<32x8xbf16>
    %cst_31 = arith.constant dense<0.000000e+00> : vector<32x32xf32>
    %58 = tpu.matmul %45, %51, %cst_31 {dimension_numbers = #tpu.dot_dimension_numbers<[1], [1], [0], [0], [0, 0, 1, 0], [], []>} : vector<32x8xbf16>, vector<32x8xbf16>, vector<32x32xf32> -> vector<32x32xf32>
    %59 = arith.extf %3 : vector<32x32xbf16> to vector<32x32xf32>
    %60 = arith.addf %58, %59 : vector<32x32xf32>
    %cst_32 = arith.constant dense<0xFF800000> : vector<32xf32>
    %61 = vector.multi_reduction <maximumf>, %60, %cst_32 [1] : vector<32x32xf32> to vector<32xf32>
    %62 = vector.shape_cast %61 : vector<32xf32> to vector<32x1xf32>
    %63 = vector.broadcast %62 : vector<32x1xf32> to vector<32x32xf32>
    %64 = arith.subf %60, %63 : vector<32x32xf32>
    %65 = math.exp %64 : vector<32x32xf32>
    %cst_33 = arith.constant dense<0.000000e+00> : vector<32xf32>
    %66 = vector.multi_reduction <add>, %65, %cst_33 [1] : vector<32x32xf32> to vector<32xf32>
    %67 = vector.shape_cast %66 : vector<32xf32> to vector<32x1xf32>
    %68 = tpu.reciprocal %67 {approx = true} : vector<32x1xf32> -> vector<32x1xf32>
    %69 = vector.broadcast %68 : vector<32x1xf32> to vector<32x32xf32>
    %70 = arith.mulf %65, %69 : vector<32x32xf32>
    %71 = arith.truncf %70 : vector<32x32xf32> to vector<32x32xbf16>
    %cst_34 = arith.constant dense<0.000000e+00> : vector<32x8xf32>
    %72 = tpu.matmul %71, %57, %cst_34 {dimension_numbers = #tpu.dot_dimension_numbers<[1], [0], [0], [1], [0, 0, 1, 1], [], []>} : vector<32x32xbf16>, vector<32x8xbf16>, vector<32x8xf32> -> vector<32x8xf32>
    %73 = arith.truncf %72 : vector<32x8xf32> to vector<32x8xbf16>
    %74 = vector.extract_strided_slice %73 {offsets = [0, 0], sizes = [8, 8], strides = [1, 1]} : vector<32x8xbf16> to vector<8x8xbf16>
    %75 = vector.extract_strided_slice %73 {offsets = [8, 0], sizes = [8, 8], strides = [1, 1]} : vector<32x8xbf16> to vector<8x8xbf16>
    %76 = vector.extract_strided_slice %73 {offsets = [16, 0], sizes = [8, 8], strides = [1, 1]} : vector<32x8xbf16> to vector<8x8xbf16>
    %77 = vector.extract_strided_slice %73 {offsets = [24, 0], sizes = [8, 8], strides = [1, 1]} : vector<32x8xbf16> to vector<8x8xbf16>
    %78 = tpu.concatenate %74, %75, %76, %77 in 1 : vector<8x8xbf16>, vector<8x8xbf16>, vector<8x8xbf16>, vector<8x8xbf16> -> vector<8x32xbf16>
    %cst_35 = arith.constant dense<0.000000e+00> : vector<8x32xf32>
    %79 = tpu.matmul %78, %24, %cst_35 {dimension_numbers = #tpu.dot_dimension_numbers<[1], [0], [0], [1], [0, 0, 1, 1], [], []>} : vector<8x32xbf16>, vector<32x32xbf16>, vector<8x32xf32> -> vector<8x32xf32>
    %80 = vector.broadcast %8 : vector<1x32xf32> to vector<8x32xf32>
    %81 = arith.addf %79, %80 : vector<8x32xf32>
    %82 = arith.addf %1, %81 : vector<8x32xf32>
    %cst_36 = arith.constant dense<0.000000e+00> : vector<8xf32>
    %83 = vector.multi_reduction <add>, %82, %cst_36 [1] : vector<8x32xf32> to vector<8xf32>
    %84 = vector.shape_cast %83 : vector<8xf32> to vector<8x1xf32>
    %cst_37 = arith.constant 3.200000e+01 : f32
    %85 = vector.broadcast %cst_37 : f32 to vector<8x1xf32>
    %86 = arith.divf %84, %85 : vector<8x1xf32>
    %87 = vector.broadcast %86 : vector<8x1xf32> to vector<8x32xf32>
    %88 = arith.subf %82, %87 : vector<8x32xf32>
    %89 = arith.mulf %88, %88 : vector<8x32xf32>
    %cst_38 = arith.constant dense<0.000000e+00> : vector<8xf32>
    %90 = vector.multi_reduction <add>, %89, %cst_38 [1] : vector<8x32xf32> to vector<8xf32>
    %91 = vector.shape_cast %90 : vector<8xf32> to vector<8x1xf32>
    %cst_39 = arith.constant 3.200000e+01 : f32
    %92 = vector.broadcast %cst_39 : f32 to vector<8x1xf32>
    %93 = arith.divf %91, %92 : vector<8x1xf32>
    %94 = vector.broadcast %86 : vector<8x1xf32> to vector<8x32xf32>
    %95 = arith.subf %82, %94 : vector<8x32xf32>
    %cst_40 = arith.constant 9.99999974E-6 : f32
    %96 = vector.broadcast %cst_40 : f32 to vector<8x1xf32>
    %97 = arith.addf %93, %96 : vector<8x1xf32>
    %98 = math.rsqrt %97 : vector<8x1xf32>
    %99 = vector.broadcast %98 : vector<8x1xf32> to vector<8x32xf32>
    %100 = arith.mulf %95, %99 : vector<8x32xf32>
    %101 = vector.broadcast %13 : vector<1x32xf32> to vector<8x32xf32>
    %102 = arith.mulf %100, %101 : vector<8x32xf32>
    %103 = vector.broadcast %14 : vector<1x32xf32> to vector<8x32xf32>
    %104 = arith.addf %102, %103 : vector<8x32xf32>
    %105 = arith.truncf %104 : vector<8x32xf32> to vector<8x32xbf16>
    %106 = vector.extract_strided_slice %22 {offsets = [0, 0], sizes = [32, 32], strides = [1, 1]} : vector<32x96xbf16> to vector<32x32xbf16>
    %cst_41 = arith.constant dense<0.000000e+00> : vector<8x32xf32>
    %107 = tpu.matmul %105, %106, %cst_41 {dimension_numbers = #tpu.dot_dimension_numbers<[1], [0], [0], [1], [0, 0, 1, 1], [], []>} : vector<8x32xbf16>, vector<32x32xbf16>, vector<8x32xf32> -> vector<8x32xf32>
    %108 = vector.extract_strided_slice %9 {offsets = [0, 0], sizes = [1, 32], strides = [1, 1]} : vector<1x96xf32> to vector<1x32xf32>
    %109 = vector.broadcast %108 : vector<1x32xf32> to vector<8x32xf32>
    %110 = arith.addf %107, %109 : vector<8x32xf32>
    %111 = vector.extract_strided_slice %22 {offsets = [0, 32], sizes = [32, 64], strides = [1, 1]} : vector<32x96xbf16> to vector<32x64xbf16>
    %cst_42 = arith.constant dense<0.000000e+00> : vector<8x64xf32>
    %112 = tpu.matmul %2, %111, %cst_42 {dimension_numbers = #tpu.dot_dimension_numbers<[1], [0], [0], [1], [0, 0, 1, 1], [], []>} : vector<8x32xbf16>, vector<32x64xbf16>, vector<8x64xf32> -> vector<8x64xf32>
    %113 = vector.extract_strided_slice %9 {offsets = [0, 32], sizes = [1, 64], strides = [1, 1]} : vector<1x96xf32> to vector<1x64xf32>
    %114 = vector.broadcast %113 : vector<1x64xf32> to vector<8x64xf32>
    %115 = arith.addf %112, %114 : vector<8x64xf32>
    %116 = vector.extract_strided_slice %115 {offsets = [0, 0], sizes = [8, 32], strides = [1, 1]} : vector<8x64xf32> to vector<8x32xf32>
    %117 = vector.extract_strided_slice %115 {offsets = [0, 32], sizes = [8, 32], strides = [1, 1]} : vector<8x64xf32> to vector<8x32xf32>
    %cst_43 = arith.constant 0.353553385 : f32
    %118 = vector.broadcast %cst_43 : f32 to vector<8x32xf32>
    %119 = arith.mulf %110, %118 : vector<8x32xf32>
    %120 = arith.truncf %119 : vector<8x32xf32> to vector<8x32xbf16>
    %121 = vector.extract_strided_slice %120 {offsets = [0, 0], sizes = [8, 8], strides = [1, 1]} : vector<8x32xbf16> to vector<8x8xbf16>
    %122 = vector.extract_strided_slice %120 {offsets = [0, 8], sizes = [8, 8], strides = [1, 1]} : vector<8x32xbf16> to vector<8x8xbf16>
    %123 = vector.extract_strided_slice %120 {offsets = [0, 16], sizes = [8, 8], strides = [1, 1]} : vector<8x32xbf16> to vector<8x8xbf16>
    %124 = vector.extract_strided_slice %120 {offsets = [0, 24], sizes = [8, 8], strides = [1, 1]} : vector<8x32xbf16> to vector<8x8xbf16>
    %125 = tpu.concatenate %121, %122, %123, %124 in 0 : vector<8x8xbf16>, vector<8x8xbf16>, vector<8x8xbf16>, vector<8x8xbf16> -> vector<32x8xbf16>
    %126 = arith.truncf %116 : vector<8x32xf32> to vector<8x32xbf16>
    %127 = vector.extract_strided_slice %126 {offsets = [0, 0], sizes = [8, 8], strides = [1, 1]} : vector<8x32xbf16> to vector<8x8xbf16>
    %128 = vector.extract_strided_slice %126 {offsets = [0, 8], sizes = [8, 8], strides = [1, 1]} : vector<8x32xbf16> to vector<8x8xbf16>
    %129 = vector.extract_strided_slice %126 {offsets = [0, 16], sizes = [8, 8], strides = [1, 1]} : vector<8x32xbf16> to vector<8x8xbf16>
    %130 = vector.extract_strided_slice %126 {offsets = [0, 24], sizes = [8, 8], strides = [1, 1]} : vector<8x32xbf16> to vector<8x8xbf16>
    %131 = tpu.concatenate %127, %128, %129, %130 in 0 : vector<8x8xbf16>, vector<8x8xbf16>, vector<8x8xbf16>, vector<8x8xbf16> -> vector<32x8xbf16>
    %132 = arith.truncf %117 : vector<8x32xf32> to vector<8x32xbf16>
    %133 = vector.extract_strided_slice %132 {offsets = [0, 0], sizes = [8, 8], strides = [1, 1]} : vector<8x32xbf16> to vector<8x8xbf16>
    %134 = vector.extract_strided_slice %132 {offsets = [0, 8], sizes = [8, 8], strides = [1, 1]} : vector<8x32xbf16> to vector<8x8xbf16>
    %135 = vector.extract_strided_slice %132 {offsets = [0, 16], sizes = [8, 8], strides = [1, 1]} : vector<8x32xbf16> to vector<8x8xbf16>
    %136 = vector.extract_strided_slice %132 {offsets = [0, 24], sizes = [8, 8], strides = [1, 1]} : vector<8x32xbf16> to vector<8x8xbf16>
    %137 = tpu.concatenate %133, %134, %135, %136 in 0 : vector<8x8xbf16>, vector<8x8xbf16>, vector<8x8xbf16>, vector<8x8xbf16> -> vector<32x8xbf16>
    %cst_44 = arith.constant dense<0.000000e+00> : vector<32x32xf32>
    %138 = tpu.matmul %125, %131, %cst_44 {dimension_numbers = #tpu.dot_dimension_numbers<[1], [1], [0], [0], [0, 0, 1, 0], [], []>} : vector<32x8xbf16>, vector<32x8xbf16>, vector<32x32xf32> -> vector<32x32xf32>
    %139 = arith.extf %4 : vector<32x32xbf16> to vector<32x32xf32>
    %140 = arith.addf %138, %139 : vector<32x32xf32>
    %cst_45 = arith.constant dense<0xFF800000> : vector<32xf32>
    %141 = vector.multi_reduction <maximumf>, %140, %cst_45 [1] : vector<32x32xf32> to vector<32xf32>
    %142 = vector.shape_cast %141 : vector<32xf32> to vector<32x1xf32>
    %143 = vector.broadcast %142 : vector<32x1xf32> to vector<32x32xf32>
    %144 = arith.subf %140, %143 : vector<32x32xf32>
    %145 = math.exp %144 : vector<32x32xf32>
    %cst_46 = arith.constant dense<0.000000e+00> : vector<32xf32>
    %146 = vector.multi_reduction <add>, %145, %cst_46 [1] : vector<32x32xf32> to vector<32xf32>
    %147 = vector.shape_cast %146 : vector<32xf32> to vector<32x1xf32>
    %148 = tpu.reciprocal %147 {approx = true} : vector<32x1xf32> -> vector<32x1xf32>
    %149 = vector.broadcast %148 : vector<32x1xf32> to vector<32x32xf32>
    %150 = arith.mulf %145, %149 : vector<32x32xf32>
    %151 = arith.truncf %150 : vector<32x32xf32> to vector<32x32xbf16>
    %cst_47 = arith.constant dense<0.000000e+00> : vector<32x8xf32>
    %152 = tpu.matmul %151, %137, %cst_47 {dimension_numbers = #tpu.dot_dimension_numbers<[1], [0], [0], [1], [0, 0, 1, 1], [], []>} : vector<32x32xbf16>, vector<32x8xbf16>, vector<32x8xf32> -> vector<32x8xf32>
    %153 = arith.truncf %152 : vector<32x8xf32> to vector<32x8xbf16>
    %154 = vector.extract_strided_slice %153 {offsets = [0, 0], sizes = [8, 8], strides = [1, 1]} : vector<32x8xbf16> to vector<8x8xbf16>
    %155 = vector.extract_strided_slice %153 {offsets = [8, 0], sizes = [8, 8], strides = [1, 1]} : vector<32x8xbf16> to vector<8x8xbf16>
    %156 = vector.extract_strided_slice %153 {offsets = [16, 0], sizes = [8, 8], strides = [1, 1]} : vector<32x8xbf16> to vector<8x8xbf16>
    %157 = vector.extract_strided_slice %153 {offsets = [24, 0], sizes = [8, 8], strides = [1, 1]} : vector<32x8xbf16> to vector<8x8xbf16>
    %158 = tpu.concatenate %154, %155, %156, %157 in 1 : vector<8x8xbf16>, vector<8x8xbf16>, vector<8x8xbf16>, vector<8x8xbf16> -> vector<8x32xbf16>
    %cst_48 = arith.constant dense<0.000000e+00> : vector<8x32xf32>
    %159 = tpu.matmul %158, %26, %cst_48 {dimension_numbers = #tpu.dot_dimension_numbers<[1], [0], [0], [1], [0, 0, 1, 1], [], []>} : vector<8x32xbf16>, vector<32x32xbf16>, vector<8x32xf32> -> vector<8x32xf32>
    %160 = vector.broadcast %10 : vector<1x32xf32> to vector<8x32xf32>
    %161 = arith.addf %159, %160 : vector<8x32xf32>
    %162 = arith.addf %104, %161 : vector<8x32xf32>
    %cst_49 = arith.constant dense<0.000000e+00> : vector<8xf32>
    %163 = vector.multi_reduction <add>, %162, %cst_49 [1] : vector<8x32xf32> to vector<8xf32>
    %164 = vector.shape_cast %163 : vector<8xf32> to vector<8x1xf32>
    %cst_50 = arith.constant 3.200000e+01 : f32
    %165 = vector.broadcast %cst_50 : f32 to vector<8x1xf32>
    %166 = arith.divf %164, %165 : vector<8x1xf32>
    %167 = vector.broadcast %166 : vector<8x1xf32> to vector<8x32xf32>
    %168 = arith.subf %162, %167 : vector<8x32xf32>
    %169 = arith.mulf %168, %168 : vector<8x32xf32>
    %cst_51 = arith.constant dense<0.000000e+00> : vector<8xf32>
    %170 = vector.multi_reduction <add>, %169, %cst_51 [1] : vector<8x32xf32> to vector<8xf32>
    %171 = vector.shape_cast %170 : vector<8xf32> to vector<8x1xf32>
    %cst_52 = arith.constant 3.200000e+01 : f32
    %172 = vector.broadcast %cst_52 : f32 to vector<8x1xf32>
    %173 = arith.divf %171, %172 : vector<8x1xf32>
    %174 = vector.broadcast %166 : vector<8x1xf32> to vector<8x32xf32>
    %175 = arith.subf %162, %174 : vector<8x32xf32>
    %cst_53 = arith.constant 9.99999974E-6 : f32
    %176 = vector.broadcast %cst_53 : f32 to vector<8x1xf32>
    %177 = arith.addf %173, %176 : vector<8x1xf32>
    %178 = math.rsqrt %177 : vector<8x1xf32>
    %179 = vector.broadcast %178 : vector<8x1xf32> to vector<8x32xf32>
    %180 = arith.mulf %175, %179 : vector<8x32xf32>
    %181 = vector.broadcast %15 : vector<1x32xf32> to vector<8x32xf32>
    %182 = arith.mulf %180, %181 : vector<8x32xf32>
    %183 = vector.broadcast %16 : vector<1x32xf32> to vector<8x32xf32>
    %184 = arith.addf %182, %183 : vector<8x32xf32>
    %185 = arith.truncf %184 : vector<8x32xf32> to vector<8x32xbf16>
    %cst_54 = arith.constant dense<0.000000e+00> : vector<8x128xf32>
    %186 = tpu.matmul %185, %28, %cst_54 {dimension_numbers = #tpu.dot_dimension_numbers<[1], [0], [0], [1], [0, 0, 1, 1], [], []>} : vector<8x32xbf16>, vector<32x128xbf16>, vector<8x128xf32> -> vector<8x128xf32>
    %187 = vector.broadcast %11 : vector<1x128xf32> to vector<8x128xf32>
    %188 = arith.addf %186, %187 : vector<8x128xf32>
    %cst_55 = arith.constant 0.000000e+00 : f32
    %189 = vector.broadcast %cst_55 : f32 to vector<8x128xf32>
    %190 = arith.maximumf %188, %189 : vector<8x128xf32>
    %191 = arith.truncf %190 : vector<8x128xf32> to vector<8x128xbf16>
    %cst_56 = arith.constant dense<0.000000e+00> : vector<8x32xf32>
    %192 = tpu.matmul %191, %30, %cst_56 {dimension_numbers = #tpu.dot_dimension_numbers<[1], [0], [0], [1], [0, 0, 1, 1], [], []>} : vector<8x128xbf16>, vector<128x32xbf16>, vector<8x32xf32> -> vector<8x32xf32>
    %193 = vector.broadcast %12 : vector<1x32xf32> to vector<8x32xf32>
    %194 = arith.addf %192, %193 : vector<8x32xf32>
    %195 = arith.addf %184, %194 : vector<8x32xf32>
    %cst_57 = arith.constant dense<0.000000e+00> : vector<8xf32>
    %196 = vector.multi_reduction <add>, %195, %cst_57 [1] : vector<8x32xf32> to vector<8xf32>
    %197 = vector.shape_cast %196 : vector<8xf32> to vector<8x1xf32>
    %cst_58 = arith.constant 3.200000e+01 : f32
    %198 = vector.broadcast %cst_58 : f32 to vector<8x1xf32>
    %199 = arith.divf %197, %198 : vector<8x1xf32>
    %200 = vector.broadcast %199 : vector<8x1xf32> to vector<8x32xf32>
    %201 = arith.subf %195, %200 : vector<8x32xf32>
    %202 = arith.mulf %201, %201 : vector<8x32xf32>
    %cst_59 = arith.constant dense<0.000000e+00> : vector<8xf32>
    %203 = vector.multi_reduction <add>, %202, %cst_59 [1] : vector<8x32xf32> to vector<8xf32>
    %204 = vector.shape_cast %203 : vector<8xf32> to vector<8x1xf32>
    %cst_60 = arith.constant 3.200000e+01 : f32
    %205 = vector.broadcast %cst_60 : f32 to vector<8x1xf32>
    %206 = arith.divf %204, %205 : vector<8x1xf32>
    %207 = vector.broadcast %199 : vector<8x1xf32> to vector<8x32xf32>
    %208 = arith.subf %195, %207 : vector<8x32xf32>
    %cst_61 = arith.constant 9.99999974E-6 : f32
    %209 = vector.broadcast %cst_61 : f32 to vector<8x1xf32>
    %210 = arith.addf %206, %209 : vector<8x1xf32>
    %211 = math.rsqrt %210 : vector<8x1xf32>
    %212 = vector.broadcast %211 : vector<8x1xf32> to vector<8x32xf32>
    %213 = arith.mulf %208, %212 : vector<8x32xf32>
    %214 = vector.broadcast %17 : vector<1x32xf32> to vector<8x32xf32>
    %215 = arith.mulf %213, %214 : vector<8x32xf32>
    %216 = vector.broadcast %18 : vector<1x32xf32> to vector<8x32xf32>
    %217 = arith.addf %215, %216 : vector<8x32xf32>
    %c1_62 = arith.constant 1 : index
    %c0_63 = arith.constant 0 : index
    %c0_64 = arith.constant 0 : index
    %218 = vector.load %arg8[%c1_62, %c0_63, %c0_64] : memref<2x12x128xf32, #tpu.memory_space<vmem>>, vector<1x12x128xf32>
    %219 = vector.shape_cast %218 : vector<1x12x128xf32> to vector<12x128xf32>
    %220 = vector.extract_strided_slice %219 {offsets = [0, 0], sizes = [1, 96], strides = [1, 1]} : vector<12x128xf32> to vector<1x96xf32>
    %221 = vector.extract_strided_slice %219 {offsets = [1, 0], sizes = [1, 32], strides = [1, 1]} : vector<12x128xf32> to vector<1x32xf32>
    %222 = vector.extract_strided_slice %219 {offsets = [2, 0], sizes = [1, 96], strides = [1, 1]} : vector<12x128xf32> to vector<1x96xf32>
    %223 = vector.extract_strided_slice %219 {offsets = [3, 0], sizes = [1, 32], strides = [1, 1]} : vector<12x128xf32> to vector<1x32xf32>
    %224 = vector.extract_strided_slice %219 {offsets = [4, 0], sizes = [1, 128], strides = [1, 1]} : vector<12x128xf32> to vector<1x128xf32>
    %225 = vector.extract_strided_slice %219 {offsets = [5, 0], sizes = [1, 32], strides = [1, 1]} : vector<12x128xf32> to vector<1x32xf32>
    %226 = vector.extract_strided_slice %219 {offsets = [6, 0], sizes = [1, 32], strides = [1, 1]} : vector<12x128xf32> to vector<1x32xf32>
    %227 = vector.extract_strided_slice %219 {offsets = [7, 0], sizes = [1, 32], strides = [1, 1]} : vector<12x128xf32> to vector<1x32xf32>
    %228 = vector.extract_strided_slice %219 {offsets = [8, 0], sizes = [1, 32], strides = [1, 1]} : vector<12x128xf32> to vector<1x32xf32>
    %229 = vector.extract_strided_slice %219 {offsets = [9, 0], sizes = [1, 32], strides = [1, 1]} : vector<12x128xf32> to vector<1x32xf32>
    %230 = vector.extract_strided_slice %219 {offsets = [10, 0], sizes = [1, 32], strides = [1, 1]} : vector<12x128xf32> to vector<1x32xf32>
    %231 = vector.extract_strided_slice %219 {offsets = [11, 0], sizes = [1, 32], strides = [1, 1]} : vector<12x128xf32> to vector<1x32xf32>
    %c1_65 = arith.constant 1 : index
    %c0_66 = arith.constant 0 : index
    %c0_67 = arith.constant 0 : index
    %c0_68 = arith.constant 0 : index
    %232 = vector.load %arg4[%c1_65, %c0_66, %c0_67, %c0_68] : memref<2x2x32x96xbf16, #tpu.memory_space<vmem>>, vector<1x1x32x96xbf16>
    %233 = vector.shape_cast %232 : vector<1x1x32x96xbf16> to vector<32x96xbf16>
    %c1_69 = arith.constant 1 : index
    %c1_70 = arith.constant 1 : index
    %c0_71 = arith.constant 0 : index
    %c0_72 = arith.constant 0 : index
    %234 = vector.load %arg4[%c1_69, %c1_70, %c0_71, %c0_72] : memref<2x2x32x96xbf16, #tpu.memory_space<vmem>>, vector<1x1x32x96xbf16>
    %235 = vector.shape_cast %234 : vector<1x1x32x96xbf16> to vector<32x96xbf16>
    %c1_73 = arith.constant 1 : index
    %c0_74 = arith.constant 0 : index
    %c0_75 = arith.constant 0 : index
    %c0_76 = arith.constant 0 : index
    %236 = vector.load %arg5[%c1_73, %c0_74, %c0_75, %c0_76] : memref<2x2x32x32xbf16, #tpu.memory_space<vmem>>, vector<1x1x32x32xbf16>
    %237 = vector.shape_cast %236 : vector<1x1x32x32xbf16> to vector<32x32xbf16>
    %c1_77 = arith.constant 1 : index
    %c1_78 = arith.constant 1 : index
    %c0_79 = arith.constant 0 : index
    %c0_80 = arith.constant 0 : index
    %238 = vector.load %arg5[%c1_77, %c1_78, %c0_79, %c0_80] : memref<2x2x32x32xbf16, #tpu.memory_space<vmem>>, vector<1x1x32x32xbf16>
    %239 = vector.shape_cast %238 : vector<1x1x32x32xbf16> to vector<32x32xbf16>
    %c1_81 = arith.constant 1 : index
    %c0_82 = arith.constant 0 : index
    %c0_83 = arith.constant 0 : index
    %240 = vector.load %arg6[%c1_81, %c0_82, %c0_83] : memref<2x32x128xbf16, #tpu.memory_space<vmem>>, vector<1x32x128xbf16>
    %241 = vector.shape_cast %240 : vector<1x32x128xbf16> to vector<32x128xbf16>
    %c1_84 = arith.constant 1 : index
    %c0_85 = arith.constant 0 : index
    %c0_86 = arith.constant 0 : index
    %242 = vector.load %arg7[%c1_84, %c0_85, %c0_86] : memref<2x128x32xbf16, #tpu.memory_space<vmem>>, vector<1x128x32xbf16>
    %243 = vector.shape_cast %242 : vector<1x128x32xbf16> to vector<128x32xbf16>
    %244 = arith.truncf %217 : vector<8x32xf32> to vector<8x32xbf16>
    %cst_87 = arith.constant dense<0.000000e+00> : vector<8x96xf32>
    %245 = tpu.matmul %244, %233, %cst_87 {dimension_numbers = #tpu.dot_dimension_numbers<[1], [0], [0], [1], [0, 0, 1, 1], [], []>} : vector<8x32xbf16>, vector<32x96xbf16>, vector<8x96xf32> -> vector<8x96xf32>
    %246 = vector.broadcast %220 : vector<1x96xf32> to vector<8x96xf32>
    %247 = arith.addf %245, %246 : vector<8x96xf32>
    %248 = vector.extract_strided_slice %247 {offsets = [0, 0], sizes = [8, 32], strides = [1, 1]} : vector<8x96xf32> to vector<8x32xf32>
    %249 = vector.extract_strided_slice %247 {offsets = [0, 32], sizes = [8, 32], strides = [1, 1]} : vector<8x96xf32> to vector<8x32xf32>
    %250 = vector.extract_strided_slice %247 {offsets = [0, 64], sizes = [8, 32], strides = [1, 1]} : vector<8x96xf32> to vector<8x32xf32>
    %cst_88 = arith.constant 0.353553385 : f32
    %251 = vector.broadcast %cst_88 : f32 to vector<8x32xf32>
    %252 = arith.mulf %248, %251 : vector<8x32xf32>
    %253 = arith.truncf %252 : vector<8x32xf32> to vector<8x32xbf16>
    %254 = vector.extract_strided_slice %253 {offsets = [0, 0], sizes = [8, 8], strides = [1, 1]} : vector<8x32xbf16> to vector<8x8xbf16>
    %255 = vector.extract_strided_slice %253 {offsets = [0, 8], sizes = [8, 8], strides = [1, 1]} : vector<8x32xbf16> to vector<8x8xbf16>
    %256 = vector.extract_strided_slice %253 {offsets = [0, 16], sizes = [8, 8], strides = [1, 1]} : vector<8x32xbf16> to vector<8x8xbf16>
    %257 = vector.extract_strided_slice %253 {offsets = [0, 24], sizes = [8, 8], strides = [1, 1]} : vector<8x32xbf16> to vector<8x8xbf16>
    %258 = tpu.concatenate %254, %255, %256, %257 in 0 : vector<8x8xbf16>, vector<8x8xbf16>, vector<8x8xbf16>, vector<8x8xbf16> -> vector<32x8xbf16>
    %259 = arith.truncf %249 : vector<8x32xf32> to vector<8x32xbf16>
    %260 = vector.extract_strided_slice %259 {offsets = [0, 0], sizes = [8, 8], strides = [1, 1]} : vector<8x32xbf16> to vector<8x8xbf16>
    %261 = vector.extract_strided_slice %259 {offsets = [0, 8], sizes = [8, 8], strides = [1, 1]} : vector<8x32xbf16> to vector<8x8xbf16>
    %262 = vector.extract_strided_slice %259 {offsets = [0, 16], sizes = [8, 8], strides = [1, 1]} : vector<8x32xbf16> to vector<8x8xbf16>
    %263 = vector.extract_strided_slice %259 {offsets = [0, 24], sizes = [8, 8], strides = [1, 1]} : vector<8x32xbf16> to vector<8x8xbf16>
    %264 = tpu.concatenate %260, %261, %262, %263 in 0 : vector<8x8xbf16>, vector<8x8xbf16>, vector<8x8xbf16>, vector<8x8xbf16> -> vector<32x8xbf16>
    %265 = arith.truncf %250 : vector<8x32xf32> to vector<8x32xbf16>
    %266 = vector.extract_strided_slice %265 {offsets = [0, 0], sizes = [8, 8], strides = [1, 1]} : vector<8x32xbf16> to vector<8x8xbf16>
    %267 = vector.extract_strided_slice %265 {offsets = [0, 8], sizes = [8, 8], strides = [1, 1]} : vector<8x32xbf16> to vector<8x8xbf16>
    %268 = vector.extract_strided_slice %265 {offsets = [0, 16], sizes = [8, 8], strides = [1, 1]} : vector<8x32xbf16> to vector<8x8xbf16>
    %269 = vector.extract_strided_slice %265 {offsets = [0, 24], sizes = [8, 8], strides = [1, 1]} : vector<8x32xbf16> to vector<8x8xbf16>
    %270 = tpu.concatenate %266, %267, %268, %269 in 0 : vector<8x8xbf16>, vector<8x8xbf16>, vector<8x8xbf16>, vector<8x8xbf16> -> vector<32x8xbf16>
    %cst_89 = arith.constant dense<0.000000e+00> : vector<32x32xf32>
    %271 = tpu.matmul %258, %264, %cst_89 {dimension_numbers = #tpu.dot_dimension_numbers<[1], [1], [0], [0], [0, 0, 1, 0], [], []>} : vector<32x8xbf16>, vector<32x8xbf16>, vector<32x32xf32> -> vector<32x32xf32>
    %272 = arith.extf %3 : vector<32x32xbf16> to vector<32x32xf32>
    %273 = arith.addf %271, %272 : vector<32x32xf32>
    %cst_90 = arith.constant dense<0xFF800000> : vector<32xf32>
    %274 = vector.multi_reduction <maximumf>, %273, %cst_90 [1] : vector<32x32xf32> to vector<32xf32>
    %275 = vector.shape_cast %274 : vector<32xf32> to vector<32x1xf32>
    %276 = vector.broadcast %275 : vector<32x1xf32> to vector<32x32xf32>
    %277 = arith.subf %273, %276 : vector<32x32xf32>
    %278 = math.exp %277 : vector<32x32xf32>
    %cst_91 = arith.constant dense<0.000000e+00> : vector<32xf32>
    %279 = vector.multi_reduction <add>, %278, %cst_91 [1] : vector<32x32xf32> to vector<32xf32>
    %280 = vector.shape_cast %279 : vector<32xf32> to vector<32x1xf32>
    %281 = tpu.reciprocal %280 {approx = true} : vector<32x1xf32> -> vector<32x1xf32>
    %282 = vector.broadcast %281 : vector<32x1xf32> to vector<32x32xf32>
    %283 = arith.mulf %278, %282 : vector<32x32xf32>
    %284 = arith.truncf %283 : vector<32x32xf32> to vector<32x32xbf16>
    %cst_92 = arith.constant dense<0.000000e+00> : vector<32x8xf32>
    %285 = tpu.matmul %284, %270, %cst_92 {dimension_numbers = #tpu.dot_dimension_numbers<[1], [0], [0], [1], [0, 0, 1, 1], [], []>} : vector<32x32xbf16>, vector<32x8xbf16>, vector<32x8xf32> -> vector<32x8xf32>
    %286 = arith.truncf %285 : vector<32x8xf32> to vector<32x8xbf16>
    %287 = vector.extract_strided_slice %286 {offsets = [0, 0], sizes = [8, 8], strides = [1, 1]} : vector<32x8xbf16> to vector<8x8xbf16>
    %288 = vector.extract_strided_slice %286 {offsets = [8, 0], sizes = [8, 8], strides = [1, 1]} : vector<32x8xbf16> to vector<8x8xbf16>
    %289 = vector.extract_strided_slice %286 {offsets = [16, 0], sizes = [8, 8], strides = [1, 1]} : vector<32x8xbf16> to vector<8x8xbf16>
    %290 = vector.extract_strided_slice %286 {offsets = [24, 0], sizes = [8, 8], strides = [1, 1]} : vector<32x8xbf16> to vector<8x8xbf16>
    %291 = tpu.concatenate %287, %288, %289, %290 in 1 : vector<8x8xbf16>, vector<8x8xbf16>, vector<8x8xbf16>, vector<8x8xbf16> -> vector<8x32xbf16>
    %cst_93 = arith.constant dense<0.000000e+00> : vector<8x32xf32>
    %292 = tpu.matmul %291, %237, %cst_93 {dimension_numbers = #tpu.dot_dimension_numbers<[1], [0], [0], [1], [0, 0, 1, 1], [], []>} : vector<8x32xbf16>, vector<32x32xbf16>, vector<8x32xf32> -> vector<8x32xf32>
    %293 = vector.broadcast %221 : vector<1x32xf32> to vector<8x32xf32>
    %294 = arith.addf %292, %293 : vector<8x32xf32>
    %295 = arith.addf %217, %294 : vector<8x32xf32>
    %cst_94 = arith.constant dense<0.000000e+00> : vector<8xf32>
    %296 = vector.multi_reduction <add>, %295, %cst_94 [1] : vector<8x32xf32> to vector<8xf32>
    %297 = vector.shape_cast %296 : vector<8xf32> to vector<8x1xf32>
    %cst_95 = arith.constant 3.200000e+01 : f32
    %298 = vector.broadcast %cst_95 : f32 to vector<8x1xf32>
    %299 = arith.divf %297, %298 : vector<8x1xf32>
    %300 = vector.broadcast %299 : vector<8x1xf32> to vector<8x32xf32>
    %301 = arith.subf %295, %300 : vector<8x32xf32>
    %302 = arith.mulf %301, %301 : vector<8x32xf32>
    %cst_96 = arith.constant dense<0.000000e+00> : vector<8xf32>
    %303 = vector.multi_reduction <add>, %302, %cst_96 [1] : vector<8x32xf32> to vector<8xf32>
    %304 = vector.shape_cast %303 : vector<8xf32> to vector<8x1xf32>
    %cst_97 = arith.constant 3.200000e+01 : f32
    %305 = vector.broadcast %cst_97 : f32 to vector<8x1xf32>
    %306 = arith.divf %304, %305 : vector<8x1xf32>
    %307 = vector.broadcast %299 : vector<8x1xf32> to vector<8x32xf32>
    %308 = arith.subf %295, %307 : vector<8x32xf32>
    %cst_98 = arith.constant 9.99999974E-6 : f32
    %309 = vector.broadcast %cst_98 : f32 to vector<8x1xf32>
    %310 = arith.addf %306, %309 : vector<8x1xf32>
    %311 = math.rsqrt %310 : vector<8x1xf32>
    %312 = vector.broadcast %311 : vector<8x1xf32> to vector<8x32xf32>
    %313 = arith.mulf %308, %312 : vector<8x32xf32>
    %314 = vector.broadcast %226 : vector<1x32xf32> to vector<8x32xf32>
    %315 = arith.mulf %313, %314 : vector<8x32xf32>
    %316 = vector.broadcast %227 : vector<1x32xf32> to vector<8x32xf32>
    %317 = arith.addf %315, %316 : vector<8x32xf32>
    %318 = arith.truncf %317 : vector<8x32xf32> to vector<8x32xbf16>
    %319 = vector.extract_strided_slice %235 {offsets = [0, 0], sizes = [32, 32], strides = [1, 1]} : vector<32x96xbf16> to vector<32x32xbf16>
    %cst_99 = arith.constant dense<0.000000e+00> : vector<8x32xf32>
    %320 = tpu.matmul %318, %319, %cst_99 {dimension_numbers = #tpu.dot_dimension_numbers<[1], [0], [0], [1], [0, 0, 1, 1], [], []>} : vector<8x32xbf16>, vector<32x32xbf16>, vector<8x32xf32> -> vector<8x32xf32>
    %321 = vector.extract_strided_slice %222 {offsets = [0, 0], sizes = [1, 32], strides = [1, 1]} : vector<1x96xf32> to vector<1x32xf32>
    %322 = vector.broadcast %321 : vector<1x32xf32> to vector<8x32xf32>
    %323 = arith.addf %320, %322 : vector<8x32xf32>
    %324 = vector.extract_strided_slice %235 {offsets = [0, 32], sizes = [32, 64], strides = [1, 1]} : vector<32x96xbf16> to vector<32x64xbf16>
    %cst_100 = arith.constant dense<0.000000e+00> : vector<8x64xf32>
    %325 = tpu.matmul %2, %324, %cst_100 {dimension_numbers = #tpu.dot_dimension_numbers<[1], [0], [0], [1], [0, 0, 1, 1], [], []>} : vector<8x32xbf16>, vector<32x64xbf16>, vector<8x64xf32> -> vector<8x64xf32>
    %326 = vector.extract_strided_slice %222 {offsets = [0, 32], sizes = [1, 64], strides = [1, 1]} : vector<1x96xf32> to vector<1x64xf32>
    %327 = vector.broadcast %326 : vector<1x64xf32> to vector<8x64xf32>
    %328 = arith.addf %325, %327 : vector<8x64xf32>
    %329 = vector.extract_strided_slice %328 {offsets = [0, 0], sizes = [8, 32], strides = [1, 1]} : vector<8x64xf32> to vector<8x32xf32>
    %330 = vector.extract_strided_slice %328 {offsets = [0, 32], sizes = [8, 32], strides = [1, 1]} : vector<8x64xf32> to vector<8x32xf32>
    %cst_101 = arith.constant 0.353553385 : f32
    %331 = vector.broadcast %cst_101 : f32 to vector<8x32xf32>
    %332 = arith.mulf %323, %331 : vector<8x32xf32>
    %333 = arith.truncf %332 : vector<8x32xf32> to vector<8x32xbf16>
    %334 = vector.extract_strided_slice %333 {offsets = [0, 0], sizes = [8, 8], strides = [1, 1]} : vector<8x32xbf16> to vector<8x8xbf16>
    %335 = vector.extract_strided_slice %333 {offsets = [0, 8], sizes = [8, 8], strides = [1, 1]} : vector<8x32xbf16> to vector<8x8xbf16>
    %336 = vector.extract_strided_slice %333 {offsets = [0, 16], sizes = [8, 8], strides = [1, 1]} : vector<8x32xbf16> to vector<8x8xbf16>
    %337 = vector.extract_strided_slice %333 {offsets = [0, 24], sizes = [8, 8], strides = [1, 1]} : vector<8x32xbf16> to vector<8x8xbf16>
    %338 = tpu.concatenate %334, %335, %336, %337 in 0 : vector<8x8xbf16>, vector<8x8xbf16>, vector<8x8xbf16>, vector<8x8xbf16> -> vector<32x8xbf16>
    %339 = arith.truncf %329 : vector<8x32xf32> to vector<8x32xbf16>
    %340 = vector.extract_strided_slice %339 {offsets = [0, 0], sizes = [8, 8], strides = [1, 1]} : vector<8x32xbf16> to vector<8x8xbf16>
    %341 = vector.extract_strided_slice %339 {offsets = [0, 8], sizes = [8, 8], strides = [1, 1]} : vector<8x32xbf16> to vector<8x8xbf16>
    %342 = vector.extract_strided_slice %339 {offsets = [0, 16], sizes = [8, 8], strides = [1, 1]} : vector<8x32xbf16> to vector<8x8xbf16>
    %343 = vector.extract_strided_slice %339 {offsets = [0, 24], sizes = [8, 8], strides = [1, 1]} : vector<8x32xbf16> to vector<8x8xbf16>
    %344 = tpu.concatenate %340, %341, %342, %343 in 0 : vector<8x8xbf16>, vector<8x8xbf16>, vector<8x8xbf16>, vector<8x8xbf16> -> vector<32x8xbf16>
    %345 = arith.truncf %330 : vector<8x32xf32> to vector<8x32xbf16>
    %346 = vector.extract_strided_slice %345 {offsets = [0, 0], sizes = [8, 8], strides = [1, 1]} : vector<8x32xbf16> to vector<8x8xbf16>
    %347 = vector.extract_strided_slice %345 {offsets = [0, 8], sizes = [8, 8], strides = [1, 1]} : vector<8x32xbf16> to vector<8x8xbf16>
    %348 = vector.extract_strided_slice %345 {offsets = [0, 16], sizes = [8, 8], strides = [1, 1]} : vector<8x32xbf16> to vector<8x8xbf16>
    %349 = vector.extract_strided_slice %345 {offsets = [0, 24], sizes = [8, 8], strides = [1, 1]} : vector<8x32xbf16> to vector<8x8xbf16>
    %350 = tpu.concatenate %346, %347, %348, %349 in 0 : vector<8x8xbf16>, vector<8x8xbf16>, vector<8x8xbf16>, vector<8x8xbf16> -> vector<32x8xbf16>
    %cst_102 = arith.constant dense<0.000000e+00> : vector<32x32xf32>
    %351 = tpu.matmul %338, %344, %cst_102 {dimension_numbers = #tpu.dot_dimension_numbers<[1], [1], [0], [0], [0, 0, 1, 0], [], []>} : vector<32x8xbf16>, vector<32x8xbf16>, vector<32x32xf32> -> vector<32x32xf32>
    %352 = arith.extf %4 : vector<32x32xbf16> to vector<32x32xf32>
    %353 = arith.addf %351, %352 : vector<32x32xf32>
    %cst_103 = arith.constant dense<0xFF800000> : vector<32xf32>
    %354 = vector.multi_reduction <maximumf>, %353, %cst_103 [1] : vector<32x32xf32> to vector<32xf32>
    %355 = vector.shape_cast %354 : vector<32xf32> to vector<32x1xf32>
    %356 = vector.broadcast %355 : vector<32x1xf32> to vector<32x32xf32>
    %357 = arith.subf %353, %356 : vector<32x32xf32>
    %358 = math.exp %357 : vector<32x32xf32>
    %cst_104 = arith.constant dense<0.000000e+00> : vector<32xf32>
    %359 = vector.multi_reduction <add>, %358, %cst_104 [1] : vector<32x32xf32> to vector<32xf32>
    %360 = vector.shape_cast %359 : vector<32xf32> to vector<32x1xf32>
    %361 = tpu.reciprocal %360 {approx = true} : vector<32x1xf32> -> vector<32x1xf32>
    %362 = vector.broadcast %361 : vector<32x1xf32> to vector<32x32xf32>
    %363 = arith.mulf %358, %362 : vector<32x32xf32>
    %364 = arith.truncf %363 : vector<32x32xf32> to vector<32x32xbf16>
    %cst_105 = arith.constant dense<0.000000e+00> : vector<32x8xf32>
    %365 = tpu.matmul %364, %350, %cst_105 {dimension_numbers = #tpu.dot_dimension_numbers<[1], [0], [0], [1], [0, 0, 1, 1], [], []>} : vector<32x32xbf16>, vector<32x8xbf16>, vector<32x8xf32> -> vector<32x8xf32>
    %366 = arith.truncf %365 : vector<32x8xf32> to vector<32x8xbf16>
    %367 = vector.extract_strided_slice %366 {offsets = [0, 0], sizes = [8, 8], strides = [1, 1]} : vector<32x8xbf16> to vector<8x8xbf16>
    %368 = vector.extract_strided_slice %366 {offsets = [8, 0], sizes = [8, 8], strides = [1, 1]} : vector<32x8xbf16> to vector<8x8xbf16>
    %369 = vector.extract_strided_slice %366 {offsets = [16, 0], sizes = [8, 8], strides = [1, 1]} : vector<32x8xbf16> to vector<8x8xbf16>
    %370 = vector.extract_strided_slice %366 {offsets = [24, 0], sizes = [8, 8], strides = [1, 1]} : vector<32x8xbf16> to vector<8x8xbf16>
    %371 = tpu.concatenate %367, %368, %369, %370 in 1 : vector<8x8xbf16>, vector<8x8xbf16>, vector<8x8xbf16>, vector<8x8xbf16> -> vector<8x32xbf16>
    %cst_106 = arith.constant dense<0.000000e+00> : vector<8x32xf32>
    %372 = tpu.matmul %371, %239, %cst_106 {dimension_numbers = #tpu.dot_dimension_numbers<[1], [0], [0], [1], [0, 0, 1, 1], [], []>} : vector<8x32xbf16>, vector<32x32xbf16>, vector<8x32xf32> -> vector<8x32xf32>
    %373 = vector.broadcast %223 : vector<1x32xf32> to vector<8x32xf32>
    %374 = arith.addf %372, %373 : vector<8x32xf32>
    %375 = arith.addf %317, %374 : vector<8x32xf32>
    %cst_107 = arith.constant dense<0.000000e+00> : vector<8xf32>
    %376 = vector.multi_reduction <add>, %375, %cst_107 [1] : vector<8x32xf32> to vector<8xf32>
    %377 = vector.shape_cast %376 : vector<8xf32> to vector<8x1xf32>
    %cst_108 = arith.constant 3.200000e+01 : f32
    %378 = vector.broadcast %cst_108 : f32 to vector<8x1xf32>
    %379 = arith.divf %377, %378 : vector<8x1xf32>
    %380 = vector.broadcast %379 : vector<8x1xf32> to vector<8x32xf32>
    %381 = arith.subf %375, %380 : vector<8x32xf32>
    %382 = arith.mulf %381, %381 : vector<8x32xf32>
    %cst_109 = arith.constant dense<0.000000e+00> : vector<8xf32>
    %383 = vector.multi_reduction <add>, %382, %cst_109 [1] : vector<8x32xf32> to vector<8xf32>
    %384 = vector.shape_cast %383 : vector<8xf32> to vector<8x1xf32>
    %cst_110 = arith.constant 3.200000e+01 : f32
    %385 = vector.broadcast %cst_110 : f32 to vector<8x1xf32>
    %386 = arith.divf %384, %385 : vector<8x1xf32>
    %387 = vector.broadcast %379 : vector<8x1xf32> to vector<8x32xf32>
    %388 = arith.subf %375, %387 : vector<8x32xf32>
    %cst_111 = arith.constant 9.99999974E-6 : f32
    %389 = vector.broadcast %cst_111 : f32 to vector<8x1xf32>
    %390 = arith.addf %386, %389 : vector<8x1xf32>
    %391 = math.rsqrt %390 : vector<8x1xf32>
    %392 = vector.broadcast %391 : vector<8x1xf32> to vector<8x32xf32>
    %393 = arith.mulf %388, %392 : vector<8x32xf32>
    %394 = vector.broadcast %228 : vector<1x32xf32> to vector<8x32xf32>
    %395 = arith.mulf %393, %394 : vector<8x32xf32>
    %396 = vector.broadcast %229 : vector<1x32xf32> to vector<8x32xf32>
    %397 = arith.addf %395, %396 : vector<8x32xf32>
    %398 = arith.truncf %397 : vector<8x32xf32> to vector<8x32xbf16>
    %cst_112 = arith.constant dense<0.000000e+00> : vector<8x128xf32>
    %399 = tpu.matmul %398, %241, %cst_112 {dimension_numbers = #tpu.dot_dimension_numbers<[1], [0], [0], [1], [0, 0, 1, 1], [], []>} : vector<8x32xbf16>, vector<32x128xbf16>, vector<8x128xf32> -> vector<8x128xf32>
    %400 = vector.broadcast %224 : vector<1x128xf32> to vector<8x128xf32>
    %401 = arith.addf %399, %400 : vector<8x128xf32>
    %cst_113 = arith.constant 0.000000e+00 : f32
    %402 = vector.broadcast %cst_113 : f32 to vector<8x128xf32>
    %403 = arith.maximumf %401, %402 : vector<8x128xf32>
    %404 = arith.truncf %403 : vector<8x128xf32> to vector<8x128xbf16>
    %cst_114 = arith.constant dense<0.000000e+00> : vector<8x32xf32>
    %405 = tpu.matmul %404, %243, %cst_114 {dimension_numbers = #tpu.dot_dimension_numbers<[1], [0], [0], [1], [0, 0, 1, 1], [], []>} : vector<8x128xbf16>, vector<128x32xbf16>, vector<8x32xf32> -> vector<8x32xf32>
    %406 = vector.broadcast %225 : vector<1x32xf32> to vector<8x32xf32>
    %407 = arith.addf %405, %406 : vector<8x32xf32>
    %408 = arith.addf %397, %407 : vector<8x32xf32>
    %cst_115 = arith.constant dense<0.000000e+00> : vector<8xf32>
    %409 = vector.multi_reduction <add>, %408, %cst_115 [1] : vector<8x32xf32> to vector<8xf32>
    %410 = vector.shape_cast %409 : vector<8xf32> to vector<8x1xf32>
    %cst_116 = arith.constant 3.200000e+01 : f32
    %411 = vector.broadcast %cst_116 : f32 to vector<8x1xf32>
    %412 = arith.divf %410, %411 : vector<8x1xf32>
    %413 = vector.broadcast %412 : vector<8x1xf32> to vector<8x32xf32>
    %414 = arith.subf %408, %413 : vector<8x32xf32>
    %415 = arith.mulf %414, %414 : vector<8x32xf32>
    %cst_117 = arith.constant dense<0.000000e+00> : vector<8xf32>
    %416 = vector.multi_reduction <add>, %415, %cst_117 [1] : vector<8x32xf32> to vector<8xf32>
    %417 = vector.shape_cast %416 : vector<8xf32> to vector<8x1xf32>
    %cst_118 = arith.constant 3.200000e+01 : f32
    %418 = vector.broadcast %cst_118 : f32 to vector<8x1xf32>
    %419 = arith.divf %417, %418 : vector<8x1xf32>
    %420 = vector.broadcast %412 : vector<8x1xf32> to vector<8x32xf32>
    %421 = arith.subf %408, %420 : vector<8x32xf32>
    %cst_119 = arith.constant 9.99999974E-6 : f32
    %422 = vector.broadcast %cst_119 : f32 to vector<8x1xf32>
    %423 = arith.addf %419, %422 : vector<8x1xf32>
    %424 = math.rsqrt %423 : vector<8x1xf32>
    %425 = vector.broadcast %424 : vector<8x1xf32> to vector<8x32xf32>
    %426 = arith.mulf %421, %425 : vector<8x32xf32>
    %427 = vector.broadcast %230 : vector<1x32xf32> to vector<8x32xf32>
    %428 = arith.mulf %426, %427 : vector<8x32xf32>
    %429 = vector.broadcast %231 : vector<1x32xf32> to vector<8x32xf32>
    %430 = arith.addf %428, %429 : vector<8x32xf32>
    %c0_120 = arith.constant 0 : index
    %c0_121 = arith.constant 0 : index
    %431 = vector.load %arg11[%c0_120, %c0_121] : memref<3x32xf32, #tpu.memory_space<vmem>>, vector<3x32xf32>
    %432 = vector.extract_strided_slice %431 {offsets = [0, 0], sizes = [1, 32], strides = [1, 1]} : vector<3x32xf32> to vector<1x32xf32>
    %433 = vector.extract_strided_slice %431 {offsets = [1, 0], sizes = [1, 32], strides = [1, 1]} : vector<3x32xf32> to vector<1x32xf32>
    %434 = vector.extract_strided_slice %431 {offsets = [2, 0], sizes = [1, 32], strides = [1, 1]} : vector<3x32xf32> to vector<1x32xf32>
    %435 = arith.truncf %430 : vector<8x32xf32> to vector<8x32xbf16>
    %c0_122 = arith.constant 0 : index
    %c0_123 = arith.constant 0 : index
    %436 = vector.load %arg9[%c0_122, %c0_123] : memref<32x32xbf16, #tpu.memory_space<vmem>>, vector<32x32xbf16>
    %cst_124 = arith.constant dense<0.000000e+00> : vector<8x32xf32>
    %437 = tpu.matmul %435, %436, %cst_124 {dimension_numbers = #tpu.dot_dimension_numbers<[1], [0], [0], [1], [0, 0, 1, 1], [], []>} : vector<8x32xbf16>, vector<32x32xbf16>, vector<8x32xf32> -> vector<8x32xf32>
    %438 = vector.broadcast %432 : vector<1x32xf32> to vector<8x32xf32>
    %439 = arith.mulf %437, %438 : vector<8x32xf32>
    %440 = vector.broadcast %433 : vector<1x32xf32> to vector<8x32xf32>
    %441 = arith.addf %439, %440 : vector<8x32xf32>
    %cst_125 = arith.constant 0.000000e+00 : f32
    %442 = vector.broadcast %cst_125 : f32 to vector<8x32xf32>
    %443 = arith.maximumf %441, %442 : vector<8x32xf32>
    %cst_126 = arith.constant 6.000000e+00 : f32
    %444 = vector.broadcast %cst_126 : f32 to vector<8x32xf32>
    %445 = arith.minimumf %443, %444 : vector<8x32xf32>
    %446 = vector.extract_strided_slice %445 {offsets = [0, 0], sizes = [1, 32], strides = [1, 1]} : vector<8x32xf32> to vector<1x32xf32>
    %447 = vector.extract_strided_slice %445 {offsets = [1, 0], sizes = [1, 32], strides = [1, 1]} : vector<8x32xf32> to vector<1x32xf32>
    %448 = vector.extract_strided_slice %445 {offsets = [2, 0], sizes = [1, 32], strides = [1, 1]} : vector<8x32xf32> to vector<1x32xf32>
    %449 = vector.extract_strided_slice %445 {offsets = [3, 0], sizes = [1, 32], strides = [1, 1]} : vector<8x32xf32> to vector<1x32xf32>
    %450 = vector.extract_strided_slice %445 {offsets = [4, 0], sizes = [1, 32], strides = [1, 1]} : vector<8x32xf32> to vector<1x32xf32>
    %451 = vector.extract_strided_slice %445 {offsets = [5, 0], sizes = [1, 32], strides = [1, 1]} : vector<8x32xf32> to vector<1x32xf32>
    %452 = vector.extract_strided_slice %445 {offsets = [6, 0], sizes = [1, 32], strides = [1, 1]} : vector<8x32xf32> to vector<1x32xf32>
    %453 = vector.extract_strided_slice %445 {offsets = [7, 0], sizes = [1, 32], strides = [1, 1]} : vector<8x32xf32> to vector<1x32xf32>
    %454 = tpu.concatenate %446, %447, %448, %449, %450, %451, %452, %453 in 1 : vector<1x32xf32>, vector<1x32xf32>, vector<1x32xf32>, vector<1x32xf32>, vector<1x32xf32>, vector<1x32xf32>, vector<1x32xf32>, vector<1x32xf32> -> vector<1x256xf32>
    %455 = arith.truncf %454 : vector<1x256xf32> to vector<1x256xbf16>
    %c0_127 = arith.constant 0 : index
    %c0_128 = arith.constant 0 : index
    %456 = vector.load %arg10[%c0_127, %c0_128] : memref<256x32xbf16, #tpu.memory_space<vmem>>, vector<256x32xbf16>
    %cst_129 = arith.constant dense<0.000000e+00> : vector<1x32xf32>
    %457 = tpu.matmul %455, %456, %cst_129 {dimension_numbers = #tpu.dot_dimension_numbers<[1], [0], [0], [1], [0, 0, 1, 1], [], []>} : vector<1x256xbf16>, vector<256x32xbf16>, vector<1x32xf32> -> vector<1x32xf32>
    %458 = arith.addf %457, %434 : vector<1x32xf32>
    %c0_130 = arith.constant 0 : index
    %c0_131 = arith.constant 0 : index
    %c0_132 = arith.constant 0 : index
    %459 = vector.load %arg12[%c0_130, %c0_131, %c0_132] : memref<1x1x32xf32, #tpu.memory_space<vmem>>, vector<1x1x32xf32>
    %460 = vector.shape_cast %459 : vector<1x1x32xf32> to vector<1x32xf32>
    %461 = vector.shape_cast %458 : vector<1x32xf32> to vector<1x1x32xf32>
    tpu.vector_store %arg12[%c0_130, %c0_131, %c0_132], %461 {strides = array<i32>} : memref<1x1x32xf32, #tpu.memory_space<vmem>>, vector<1x1x32xf32>,
    return
  }
  func.func @transform_0(%arg0: i32) -> (i32, i32, i32) {
    %c0_i32 = arith.constant 0 : i32
    %c0_i32_0 = arith.constant 0 : i32
    %c0_i32_1 = arith.constant 0 : i32
    return %arg0, %c0_i32, %c0_i32_0 : i32, i32, i32
  }
  func.func @transform_1(%arg0: i32) -> (i32, i32) {
    %c0_i32 = arith.constant 0 : i32
    %c0_i32_0 = arith.constant 0 : i32
    %c0_i32_1 = arith.constant 0 : i32
    return %c0_i32, %c0_i32_0 : i32, i32
  }
  func.func @transform_2(%arg0: i32) -> (i32, i32) {
    %c0_i32 = arith.constant 0 : i32
    %c0_i32_0 = arith.constant 0 : i32
    %c0_i32_1 = arith.constant 0 : i32
    return %c0_i32, %c0_i32_0 : i32, i32
  }
  func.func @transform_3(%arg0: i32) -> (i32, i32, i32, i32) {
    %c0_i32 = arith.constant 0 : i32
    %c0_i32_0 = arith.constant 0 : i32
    %c0_i32_1 = arith.constant 0 : i32
    %c0_i32_2 = arith.constant 0 : i32
    %c0_i32_3 = arith.constant 0 : i32
    return %c0_i32, %c0_i32_0, %c0_i32_1, %c0_i32_2 : i32, i32, i32, i32
  }
  func.func @transform_4(%arg0: i32) -> (i32, i32, i32, i32) {
    %c0_i32 = arith.constant 0 : i32
    %c0_i32_0 = arith.constant 0 : i32
    %c0_i32_1 = arith.constant 0 : i32
    %c0_i32_2 = arith.constant 0 : i32
    %c0_i32_3 = arith.constant 0 : i32
    return %c0_i32, %c0_i32_0, %c0_i32_1, %c0_i32_2 : i32, i32, i32, i32
  }
  func.func @transform_5(%arg0: i32) -> (i32, i32, i32) {
    %c0_i32 = arith.constant 0 : i32
    %c0_i32_0 = arith.constant 0 : i32
    %c0_i32_1 = arith.constant 0 : i32
    %c0_i32_2 = arith.constant 0 : i32
    return %c0_i32, %c0_i32_0, %c0_i32_1 : i32, i32, i32
  }
  func.func @transform_6(%arg0: i32) -> (i32, i32, i32) {
    %c0_i32 = arith.constant 0 : i32
    %c0_i32_0 = arith.constant 0 : i32
    %c0_i32_1 = arith.constant 0 : i32
    %c0_i32_2 = arith.constant 0 : i32
    return %c0_i32, %c0_i32_0, %c0_i32_1 : i32, i32, i32
  }
  func.func @transform_7(%arg0: i32) -> (i32, i32, i32) {
    %c0_i32 = arith.constant 0 : i32
    %c0_i32_0 = arith.constant 0 : i32
    %c0_i32_1 = arith.constant 0 : i32
    %c0_i32_2 = arith.constant 0 : i32
    return %c0_i32, %c0_i32_0, %c0_i32_1 : i32, i32, i32
  }
  func.func @transform_8(%arg0: i32) -> (i32, i32) {
    %c0_i32 = arith.constant 0 : i32
    %c0_i32_0 = arith.constant 0 : i32
    %c0_i32_1 = arith.constant 0 : i32
    return %c0_i32, %c0_i32_0 : i32, i32
  }
  func.func @transform_9(%arg0: i32) -> (i32, i32) {
    %c0_i32 = arith.constant 0 : i32
    %c0_i32_0 = arith.constant 0 : i32
    %c0_i32_1 = arith.constant 0 : i32
    return %c0_i32, %c0_i32_0 : i32, i32
  }
  func.func @transform_10(%arg0: i32) -> (i32, i32) {
    %c0_i32 = arith.constant 0 : i32
    %c0_i32_0 = arith.constant 0 : i32
    %c0_i32_1 = arith.constant 0 : i32
    return %c0_i32, %c0_i32_0 : i32, i32
  }
  func.func @transform_11(%arg0: i32) -> (i32, i32, i32) {
    %c0_i32 = arith.constant 0 : i32
    %c0_i32_0 = arith.constant 0 : i32
    %c0_i32_1 = arith.constant 0 : i32
    return %arg0, %c0_i32, %c0_i32_0 : i32, i32, i32
  }
}

</mosaic_0001>

<llo_original>
// kernel: tile.8
$region0: #{tile.8}
  #allocation0 [shape = 's32[1]{0}', space=sflag, size = 0x4, scoped, tag = 'scoped memory for tile.8']
  %s0 = inlined_call_operand.vmem [shape: bf16[8,8], index: 0, kind: input, shape index: {}]
  %s1 = inlined_call_operand.vmem [shape: bf16[4,8,4,8], index: 1, kind: output, shape index: {}]
  // Predicated region
  $region2: #{tile.8} parent=0 // pred_check
    _
  $region3: #{tile.8} parent=0 // pred_check_branch
    %3 = sbr.rel (0) target = $region5
  $region4: #{tile.8} parent=0 // pred_region
    _
  $region5: #{tile.8} parent=0 // pred_fallthru
    _
  %v4 = vld [vmem:[%s0] ss:$0 sm:$0xff]
  %v5 = vunpack.i.l.bf16 %v4
  %v7 = vunpack.i.h.bf16 %v4
  %v9 = vpack.c.bf16 0.0, %v5
  %10 = vst [vmem:[%s1] sm:$0x3] %v9
  %s11 = scalar_lea.vmem %s1, 16
  %v12 = vpack.c.bf16 0.0, %v5
  %13 = vst [vmem:[%s11] sm:$0x3] %v12
  %s14 = scalar_lea.vmem %s1, 32
  %v15 = vpack.c.bf16 0.0, %v5
  %16 = vst [vmem:[%s14] sm:$0x3] %v15
  %s17 = scalar_lea.vmem %s1, 48
  %v18 = vpack.c.bf16 0.0, %v5
  %19 = vst [vmem:[%s17] sm:$0x3] %v18
  %v20 = vld [vmem:[%s0] ss:$0 sm:$0xff]
  %v21 = vunpack.i.l.bf16 %v20
  %v23 = vunpack.i.h.bf16 %v20
  %s25 = scalar_lea.vmem %s1, 2
  %v26 = vpack.c.bf16 0.0, %v23
  %27 = vst [vmem:[%s25] sm:$0x3] %v26
  %s28 = scalar_lea.vmem %s1, 18
  %v29 = vpack.c.bf16 0.0, %v23
  %30 = vst [vmem:[%s28] sm:$0x3] %v29
  %s31 = scalar_lea.vmem %s1, 34
  %v32 = vpack.c.bf16 0.0, %v23
  %33 = vst [vmem:[%s31] sm:$0x3] %v32
  %s34 = scalar_lea.vmem %s1, 50
  %v35 = vpack.c.bf16 0.0, %v23
  %36 = vst [vmem:[%s34] sm:$0x3] %v35
  %s37 = scalar_lea.vmem %s0, 1
  %v38 = vld [vmem:[%s37] ss:$0 sm:$0xff]
  %v39 = vunpack.i.l.bf16 %v38
  %v41 = vunpack.i.h.bf16 %v38
  %s43 = scalar_lea.vmem %s1, 4
  %v44 = vpack.c.bf16 0.0, %v39
  %45 = vst [vmem:[%s43] sm:$0x3] %v44
  %s46 = scalar_lea.vmem %s1, 20
  %v47 = vpack.c.bf16 0.0, %v39
  %48 = vst [vmem:[%s46] sm:$0x3] %v47
  %s49 = scalar_lea.vmem %s1, 36
  %v50 = vpack.c.bf16 0.0, %v39
  %51 = vst [vmem:[%s49] sm:$0x3] %v50
  %s52 = scalar_lea.vmem %s1, 52
  %v53 = vpack.c.bf16 0.0, %v39
  %54 = vst [vmem:[%s52] sm:$0x3] %v53
  %s55 = scalar_lea.vmem %s0, 1
  %v56 = vld [vmem:[%s55] ss:$0 sm:$0xff]
  %v57 = vunpack.i.l.bf16 %v56
  %v59 = vunpack.i.h.bf16 %v56
  %s61 = scalar_lea.vmem %s1, 6
  %v62 = vpack.c.bf16 0.0, %v59
  %63 = vst [vmem:[%s61] sm:$0x3] %v62
  %s64 = scalar_lea.vmem %s1, 22
  %v65 = vpack.c.bf16 0.0, %v59
  %66 = vst [vmem:[%s64] sm:$0x3] %v65
  %s67 = scalar_lea.vmem %s1, 38
  %v68 = vpack.c.bf16 0.0, %v59
  %69 = vst [vmem:[%s67] sm:$0x3] %v68
  %s70 = scalar_lea.vmem %s1, 54
  %v71 = vpack.c.bf16 0.0, %v59
  %72 = vst [vmem:[%s70] sm:$0x3] %v71
  %s73 = scalar_lea.vmem %s0, 2
  %v74 = vld [vmem:[%s73] ss:$0 sm:$0xff]
  %v75 = vunpack.i.l.bf16 %v74
  %v77 = vunpack.i.h.bf16 %v74
  %s79 = scalar_lea.vmem %s1, 8
  %v80 = vpack.c.bf16 0.0, %v75
  %81 = vst [vmem:[%s79] sm:$0x3] %v80
  %s82 = scalar_lea.vmem %s1, 24
  %v83 = vpack.c.bf16 0.0, %v75
  %84 = vst [vmem:[%s82] sm:$0x3] %v83
  %s85 = scalar_lea.vmem %s1, 40
  %v86 = vpack.c.bf16 0.0, %v75
  %87 = vst [vmem:[%s85] sm:$0x3] %v86
  %s88 = scalar_lea.vmem %s1, 56
  %v89 = vpack.c.bf16 0.0, %v75
  %90 = vst [vmem:[%s88] sm:$0x3] %v89
  %s91 = scalar_lea.vmem %s0, 2
  %v92 = vld [vmem:[%s91] ss:$0 sm:$0xff]
  %v93 = vunpack.i.l.bf16 %v92
  %v95 = vunpack.i.h.bf16 %v92
  %s97 = scalar_lea.vmem %s1, 10
  %v98 = vpack.c.bf16 0.0, %v95
  %99 = vst [vmem:[%s97] sm:$0x3] %v98
  %s100 = scalar_lea.vmem %s1, 26
  %v101 = vpack.c.bf16 0.0, %v95
  %102 = vst [vmem:[%s100] sm:$0x3] %v101
  %s103 = scalar_lea.vmem %s1, 42
  %v104 = vpack.c.bf16 0.0, %v95
  %105 = vst [vmem:[%s103] sm:$0x3] %v104
  %s106 = scalar_lea.vmem %s1, 58
  %v107 = vpack.c.bf16 0.0, %v95
  %108 = vst [vmem:[%s106] sm:$0x3] %v107
  %s109 = scalar_lea.vmem %s0, 3
  %v110 = vld [vmem:[%s109] ss:$0 sm:$0xff]
  %v111 = vunpack.i.l.bf16 %v110
  %v113 = vunpack.i.h.bf16 %v110
  %s115 = scalar_lea.vmem %s1, 12
  %v116 = vpack.c.bf16 0.0, %v111
  %117 = vst [vmem:[%s115] sm:$0x3] %v116
  %s118 = scalar_lea.vmem %s1, 28
  %v119 = vpack.c.bf16 0.0, %v111
  %120 = vst [vmem:[%s118] sm:$0x3] %v119
  %s121 = scalar_lea.vmem %s1, 44
  %v122 = vpack.c.bf16 0.0, %v111
  %123 = vst [vmem:[%s121] sm:$0x3] %v122
  %s124 = scalar_lea.vmem %s1, 60
  %v125 = vpack.c.bf16 0.0, %v111
  %126 = vst [vmem:[%s124] sm:$0x3] %v125
  %s127 = scalar_lea.vmem %s0, 3
  %v128 = vld [vmem:[%s127] ss:$0 sm:$0xff]
  %v129 = vunpack.i.l.bf16 %v128
  %v131 = vunpack.i.h.bf16 %v128
  %s133 = scalar_lea.vmem %s1, 14
  %v134 = vpack.c.bf16 0.0, %v131
  %135 = vst [vmem:[%s133] sm:$0x3] %v134
  %s136 = scalar_lea.vmem %s1, 30
  %v137 = vpack.c.bf16 0.0, %v131
  %138 = vst [vmem:[%s136] sm:$0x3] %v137
  %s139 = scalar_lea.vmem %s1, 46
  %v140 = vpack.c.bf16 0.0, %v131
  %141 = vst [vmem:[%s139] sm:$0x3] %v140
  %s142 = scalar_lea.vmem %s1, 62
  %v143 = vpack.c.bf16 0.0, %v131
  %144 = vst [vmem:[%s142] sm:$0x3] %v143

// kernel: tile.9
$region0: #{tile.9}
  %s0 = inlined_call_operand.vmem [shape: bf16[4,8,4,8], index: 0, kind: input, shape index: {}]
  %s1 = inlined_call_operand.vmem [shape: bf16[32,32], index: 1, kind: output, shape index: {}]
  $region1: #{tile.9} parent=0
    #allocation0 [shape = 'u8[16384]{0}', space=vmem, size = 0x4000, scoped, tag = 'scoped mem for output reshape']
    #allocation1 [shape = 'u8[131072]{0}', space=vmem, size = 0x20000, scoped, tag = 'scoped mem for input reshape']
    %s3 = smul.u32 2, 2
    %s4 = sshllo.u32 0, %s3
    %s5 = smul.addr 2, 31
    %s6 = scalar_lea.vmem %s0, %s5
    %s7 = sshrl.u32 %s4, 1
    %s8 = sor.u32 %s4, %s7
    %s9 = sand.u32 %s8, 85
    %s10 = sshrl.u32 %s9, 1
    %s11 = sor.u32 %s9, %s10
    %s12 = sand.u32 51, %s11
    %s13 = sshrl.u32 %s12, 2
    %s14 = sor.u32 %s12, %s13
    %s15 = sand.u32 15, %s14
    %v16 = vld [vmem:[%s6] sm:%s15]
    %v17 = vunpack.c.l.bf16 %v16
    %v18 = vunpack.c.h.bf16 %v16
    %s19 = scalar_lea.vmem [#allocation1], 248
    %20 = vst [vmem:[%s19] sm:%s4] %v17
    %s21 = smul.addr 2, 30
    %s22 = scalar_lea.vmem %s0, %s21
    %s23 = sshrl.u32 %s4, 1
    %s24 = sor.u32 %s4, %s23
    %s25 = sand.u32 %s24, 85
    %s26 = sshrl.u32 %s25, 1
    %s27 = sor.u32 %s25, %s26
    %s28 = sand.u32 51, %s27
    %s29 = sshrl.u32 %s28, 2
    %s30 = sor.u32 %s28, %s29
    %s31 = sand.u32 15, %s30
    %v32 = vld [vmem:[%s22] sm:%s31]
    %v33 = vunpack.c.l.bf16 %v32
    %v34 = vunpack.c.h.bf16 %v32
    %s35 = scalar_lea.vmem [#allocation1], 240
    %36 = vst [vmem:[%s35] sm:%s4] %v33
    %s37 = smul.addr 2, 29
    %s38 = scalar_lea.vmem %s0, %s37
    %s39 = sshrl.u32 %s4, 1
    %s40 = sor.u32 %s4, %s39
    %s41 = sand.u32 %s40, 85
    %s42 = sshrl.u32 %s41, 1
    %s43 = sor.u32 %s41, %s42
    %s44 = sand.u32 51, %s43
    %s45 = sshrl.u32 %s44, 2
    %s46 = sor.u32 %s44, %s45
    %s47 = sand.u32 15, %s46
    %v48 = vld [vmem:[%s38] sm:%s47]
    %v49 = vunpack.c.l.bf16 %v48
    %v50 = vunpack.c.h.bf16 %v48
    %s51 = scalar_lea.vmem [#allocation1], 232
    %52 = vst [vmem:[%s51] sm:%s4] %v49
    %s53 = smul.addr 2, 28
    %s54 = scalar_lea.vmem %s0, %s53
    %s55 = sshrl.u32 %s4, 1
    %s56 = sor.u32 %s4, %s55
    %s57 = sand.u32 %s56, 85
    %s58 = sshrl.u32 %s57, 1
    %s59 = sor.u32 %s57, %s58
    %s60 = sand.u32 51, %s59
    %s61 = sshrl.u32 %s60, 2
    %s62 = sor.u32 %s60, %s61
    %s63 = sand.u32 15, %s62
    %v64 = vld [vmem:[%s54] sm:%s63]
    %v65 = vunpack.c.l.bf16 %v64
    %v66 = vunpack.c.h.bf16 %v64
    %s67 = scalar_lea.vmem [#allocation1], 224
    %68 = vst [vmem:[%s67] sm:%s4] %v65
    %s69 = smul.addr 2, 27
    %s70 = scalar_lea.vmem %s0, %s69
    %s71 = sshrl.u32 %s4, 1
    %s72 = sor.u32 %s4, %s71
    %s73 = sand.u32 %s72, 85
    %s74 = sshrl.u32 %s73, 1
    %s75 = sor.u32 %s73, %s74
    %s76 = sand.u32 51, %s75
    %s77 = sshrl.u32 %s76, 2
    %s78 = sor.u32 %s76, %s77
    %s79 = sand.u32 15, %s78
    %v80 = vld [vmem:[%s70] sm:%s79]
    %v81 = vunpack.c.l.bf16 %v80
    %v82 = vunpack.c.h.bf16 %v80
    %s83 = scalar_lea.vmem [#allocation1], 216
    %84 = vst [vmem:[%s83] sm:%s4] %v81
    %s85 = smul.addr 2, 26
    %s86 = scalar_lea.vmem %s0, %s85
    %s87 = sshrl.u32 %s4, 1
    %s88 = sor.u32 %s4, %s87
    %s89 = sand.u32 %s88, 85
    %s90 = sshrl.u32 %s89, 1
    %s91 = sor.u32 %s89, %s90
    %s92 = sand.u32 51, %s91
    %s93 = sshrl.u32 %s92, 2
    %s94 = sor.u32 %s92, %s93
    %s95 = sand.u32 15, %s94
    %v96 = vld [vmem:[%s86] sm:%s95]
    %v97 = vunpack.c.l.bf16 %v96
    %v98 = vunpack.c.h.bf16 %v96
    %s99 = scalar_lea.vmem [#allocation1], 208
    %100 = vst [vmem:[%s99] sm:%s4] %v97
    %s101 = smul.addr 2, 25
    %s102 = scalar_lea.vmem %s0, %s101
    %s103 = sshrl.u32 %s4, 1
    %s104 = sor.u32 %s4, %s103
    %s105 = sand.u32 %s104, 85
    %s106 = sshrl.u32 %s105, 1
    %s107 = sor.u32 %s105, %s106
    %s108 = sand.u32 51, %s107
    %s109 = sshrl.u32 %s108, 2
    %s110 = sor.u32 %s108, %s109
    %s111 = sand.u32 15, %s110
    %v112 = vld [vmem:[%s102] sm:%s111]
    %v113 = vunpack.c.l.bf16 %v112
    %v114 = vunpack.c.h.bf16 %v112
    %s115 = scalar_lea.vmem [#allocation1], 200
    %116 = vst [vmem:[%s115] sm:%s4] %v113
    %s117 = smul.addr 2, 24
    %s118 = scalar_lea.vmem %s0, %s117
    %s119 = sshrl.u32 %s4, 1
    %s120 = sor.u32 %s4, %s119
    %s121 = sand.u32 %s120, 85
    %s122 = sshrl.u32 %s121, 1
    %s123 = sor.u32 %s121, %s122
    %s124 = sand.u32 51, %s123
    %s125 = sshrl.u32 %s124, 2
    %s126 = sor.u32 %s124, %s125
    %s127 = sand.u32 15, %s126
    %v128 = vld [vmem:[%s118] sm:%s127]
    %v129 = vunpack.c.l.bf16 %v128
    %v130 = vunpack.c.h.bf16 %v128
    %s131 = scalar_lea.vmem [#allocation1], 192
    %132 = vst [vmem:[%s131] sm:%s4] %v129
    %s133 = smul.addr 2, 23
    %s134 = scalar_lea.vmem %s0, %s133
    %s135 = sshrl.u32 %s4, 1
    %s136 = sor.u32 %s4, %s135
    %s137 = sand.u32 %s136, 85
    %s138 = sshrl.u32 %s137, 1
    %s139 = sor.u32 %s137, %s138
    %s140 = sand.u32 51, %s139
    %s141 = sshrl.u32 %s140, 2
    %s142 = sor.u32 %s140, %s141
    %s143 = sand.u32 15, %s142
    %v144 = vld [vmem:[%s134] sm:%s143]
    %v145 = vunpack.c.l.bf16 %v144
    %v146 = vunpack.c.h.bf16 %v144
    %s147 = scalar_lea.vmem [#allocation1], 184
    %148 = vst [vmem:[%s147] sm:%s4] %v145
    %s149 = smul.addr 2, 22
    %s150 = scalar_lea.vmem %s0, %s149
    %s151 = sshrl.u32 %s4, 1
    %s152 = sor.u32 %s4, %s151
    %s153 = sand.u32 %s152, 85
    %s154 = sshrl.u32 %s153, 1
    %s155 = sor.u32 %s153, %s154
    %s156 = sand.u32 51, %s155
    %s157 = sshrl.u32 %s156, 2
    %s158 = sor.u32 %s156, %s157
    %s159 = sand.u32 15, %s158
    %v160 = vld [vmem:[%s150] sm:%s159]
    %v161 = vunpack.c.l.bf16 %v160
    %v162 = vunpack.c.h.bf16 %v160
    %s163 = scalar_lea.vmem [#allocation1], 176
    %164 = vst [vmem:[%s163] sm:%s4] %v161
    %s165 = smul.addr 2, 21
    %s166 = scalar_lea.vmem %s0, %s165
    %s167 = sshrl.u32 %s4, 1
    %s168 = sor.u32 %s4, %s167
    %s169 = sand.u32 %s168, 85
    %s170 = sshrl.u32 %s169, 1
    %s171 = sor.u32 %s169, %s170
    %s172 = sand.u32 51, %s171
    %s173 = sshrl.u32 %s172, 2
    %s174 = sor.u32 %s172, %s173
    %s175 = sand.u32 15, %s174
    %v176 = vld [vmem:[%s166] sm:%s175]
    %v177 = vunpack.c.l.bf16 %v176
    %v178 = vunpack.c.h.bf16 %v176
    %s179 = scalar_lea.vmem [#allocation1], 168
    %180 = vst [vmem:[%s179] sm:%s4] %v177
    %s181 = smul.addr 2, 20
    %s182 = scalar_lea.vmem %s0, %s181
    %s183 = sshrl.u32 %s4, 1
    %s184 = sor.u32 %s4, %s183
    %s185 = sand.u32 %s184, 85
    %s186 = sshrl.u32 %s185, 1
    %s187 = sor.u32 %s185, %s186
    %s188 = sand.u32 51, %s187
    %s189 = sshrl.u32 %s188, 2
    %s190 = sor.u32 %s188, %s189
    %s191 = sand.u32 15, %s190
    %v192 = vld [vmem:[%s182] sm:%s191]
    %v193 = vunpack.c.l.bf16 %v192
    %v194 = vunpack.c.h.bf16 %v192
    %s195 = scalar_lea.vmem [#allocation1], 160
    %196 = vst [vmem:[%s195] sm:%s4] %v193
    %s197 = smul.addr 2, 19
    %s198 = scalar_lea.vmem %s0, %s197
    %s199 = sshrl.u32 %s4, 1
    %s200 = sor.u32 %s4, %s199
    %s201 = sand.u32 %s200, 85
    %s202 = sshrl.u32 %s201, 1
    %s203 = sor.u32 %s201, %s202
    %s204 = sand.u32 51, %s203
    %s205 = sshrl.u32 %s204, 2
    %s206 = sor.u32 %s204, %s205
    %s207 = sand.u32 15, %s206
    %v208 = vld [vmem:[%s198] sm:%s207]
    %v209 = vunpack.c.l.bf16 %v208
    %v210 = vunpack.c.h.bf16 %v208
    %s211 = scalar_lea.vmem [#allocation1], 152
    %212 = vst [vmem:[%s211] sm:%s4] %v209
    %s213 = smul.addr 2, 18
    %s214 = scalar_lea.vmem %s0, %s213
    %s215 = sshrl.u32 %s4, 1
    %s216 = sor.u32 %s4, %s215
    %s217 = sand.u32 %s216, 85
    %s218 = sshrl.u32 %s217, 1
    %s219 = sor.u32 %s217, %s218
    %s220 = sand.u32 51, %s219
    %s221 = sshrl.u32 %s220, 2
    %s222 = sor.u32 %s220, %s221
    %s223 = sand.u32 15, %s222
    %v224 = vld [vmem:[%s214] sm:%s223]
    %v225 = vunpack.c.l.bf16 %v224
    %v226 = vunpack.c.h.bf16 %v224
    %s227 = scalar_lea.vmem [#allocation1], 144
    %228 = vst [vmem:[%s227] sm:%s4] %v225
    %s229 = smul.addr 2, 17
    %s230 = scalar_lea.vmem %s0, %s229
    %s231 = sshrl.u32 %s4, 1
    %s232 = sor.u32 %s4, %s231
    %s233 = sand.u32 %s232, 85
    %s234 = sshrl.u32 %s233, 1
    %s235 = sor.u32 %s233, %s234
    %s236 = sand.u32 51, %s235
    %s237 = sshrl.u32 %s236, 2
    %s238 = sor.u32 %s236, %s237
    %s239 = sand.u32 15, %s238
    %v240 = vld [vmem:[%s230] sm:%s239]
    %v241 = vunpack.c.l.bf16 %v240
    %v242 = vunpack.c.h.bf16 %v240
    %s243 = scalar_lea.vmem [#allocation1], 136
    %244 = vst [vmem:[%s243] sm:%s4] %v241
    %s245 = smul.addr 2, 16
    %s246 = scalar_lea.vmem %s0, %s245
    %s247 = sshrl.u32 %s4, 1
    %s248 = sor.u32 %s4, %s247
    %s249 = sand.u32 %s248, 85
    %s250 = sshrl.u32 %s249, 1
    %s251 = sor.u32 %s249, %s250
    %s252 = sand.u32 51, %s251
    %s253 = sshrl.u32 %s252, 2
    %s254 = sor.u32 %s252, %s253
    %s255 = sand.u32 15, %s254
    %v256 = vld [vmem:[%s246] sm:%s255]
    %v257 = vunpack.c.l.bf16 %v256
    %v258 = vunpack.c.h.bf16 %v256
    %s259 = scalar_lea.vmem [#allocation1], 128
    %260 = vst [vmem:[%s259] sm:%s4] %v257
    %s261 = smul.addr 2, 15
    %s262 = scalar_lea.vmem %s0, %s261
    %s263 = sshrl.u32 %s4, 1
    %s264 = sor.u32 %s4, %s263
    %s265 = sand.u32 %s264, 85
    %s266 = sshrl.u32 %s265, 1
    %s267 = sor.u32 %s265, %s266
    %s268 = sand.u32 51, %s267
    %s269 = sshrl.u32 %s268, 2
    %s270 = sor.u32 %s268, %s269
    %s271 = sand.u32 15, %s270
    %v272 = vld [vmem:[%s262] sm:%s271]
    %v273 = vunpack.c.l.bf16 %v272
    %v274 = vunpack.c.h.bf16 %v272
    %s275 = scalar_lea.vmem [#allocation1], 120
    %276 = vst [vmem:[%s275] sm:%s4] %v273
    %s277 = smul.addr 2, 14
    %s278 = scalar_lea.vmem %s0, %s277
    %s279 = sshrl.u32 %s4, 1
    %s280 = sor.u32 %s4, %s279
    %s281 = sand.u32 %s280, 85
    %s282 = sshrl.u32 %s281, 1
    %s283 = sor.u32 %s281, %s282
    %s284 = sand.u32 51, %s283
    %s285 = sshrl.u32 %s284, 2
    %s286 = sor.u32 %s284, %s285
    %s287 = sand.u32 15, %s286
    %v288 = vld [vmem:[%s278] sm:%s287]
    %v289 = vunpack.c.l.bf16 %v288
    %v290 = vunpack.c.h.bf16 %v288
    %s291 = scalar_lea.vmem [#allocation1], 112
    %292 = vst [vmem:[%s291] sm:%s4] %v289
    %s293 = smul.addr 2, 13
    %s294 = scalar_lea.vmem %s0, %s293
    %s295 = sshrl.u32 %s4, 1
    %s296 = sor.u32 %s4, %s295
    %s297 = sand.u32 %s296, 85
    %s298 = sshrl.u32 %s297, 1
    %s299 = sor.u32 %s297, %s298
    %s300 = sand.u32 51, %s299
    %s301 = sshrl.u32 %s300, 2
    %s302 = sor.u32 %s300, %s301
    %s303 = sand.u32 15, %s302
    %v304 = vld [vmem:[%s294] sm:%s303]
    %v305 = vunpack.c.l.bf16 %v304
    %v306 = vunpack.c.h.bf16 %v304
    %s307 = scalar_lea.vmem [#allocation1], 104
    %308 = vst [vmem:[%s307] sm:%s4] %v305
    %s309 = smul.addr 2, 12
    %s310 = scalar_lea.vmem %s0, %s309
    %s311 = sshrl.u32 %s4, 1
    %s312 = sor.u32 %s4, %s311
    %s313 = sand.u32 %s312, 85
    %s314 = sshrl.u32 %s313, 1
    %s315 = sor.u32 %s313, %s314
    %s316 = sand.u32 51, %s315
    %s317 = sshrl.u32 %s316, 2
    %s318 = sor.u32 %s316, %s317
    %s319 = sand.u32 15, %s318
    %v320 = vld [vmem:[%s310] sm:%s319]
    %v321 = vunpack.c.l.bf16 %v320
    %v322 = vunpack.c.h.bf16 %v320
    %s323 = scalar_lea.vmem [#allocation1], 96
    %324 = vst [vmem:[%s323] sm:%s4] %v321
    %s325 = smul.addr 2, 11
    %s326 = scalar_lea.vmem %s0, %s325
    %s327 = sshrl.u32 %s4, 1
    %s328 = sor.u32 %s4, %s327
    %s329 = sand.u32 %s328, 85
    %s330 = sshrl.u32 %s329, 1
    %s331 = sor.u32 %s329, %s330
    %s332 = sand.u32 51, %s331
    %s333 = sshrl.u32 %s332, 2
    %s334 = sor.u32 %s332, %s333
    %s335 = sand.u32 15, %s334
    %v336 = vld [vmem:[%s326] sm:%s335]
    %v337 = vunpack.c.l.bf16 %v336
    %v338 = vunpack.c.h.bf16 %v336
    %s339 = scalar_lea.vmem [#allocation1], 88
    %340 = vst [vmem:[%s339] sm:%s4] %v337
    %s341 = smul.addr 2, 10
    %s342 = scalar_lea.vmem %s0, %s341
    %s343 = sshrl.u32 %s4, 1
    %s344 = sor.u32 %s4, %s343
    %s345 = sand.u32 %s344, 85
    %s346 = sshrl.u32 %s345, 1
    %s347 = sor.u32 %s345, %s346
    %s348 = sand.u32 51, %s347
    %s349 = sshrl.u32 %s348, 2
    %s350 = sor.u32 %s348, %s349
    %s351 = sand.u32 15, %s350
    %v352 = vld [vmem:[%s342] sm:%s351]
    %v353 = vunpack.c.l.bf16 %v352
    %v354 = vunpack.c.h.bf16 %v352
    %s355 = scalar_lea.vmem [#allocation1], 80
    %356 = vst [vmem:[%s355] sm:%s4] %v353
    %s357 = smul.addr 2, 9
    %s358 = scalar_lea.vmem %s0, %s357
    %s359 = sshrl.u32 %s4, 1
    %s360 = sor.u32 %s4, %s359
    %s361 = sand.u32 %s360, 85
    %s362 = sshrl.u32 %s361, 1
    %s363 = sor.u32 %s361, %s362
    %s364 = sand.u32 51, %s363
    %s365 = sshrl.u32 %s364, 2
    %s366 = sor.u32 %s364, %s365
    %s367 = sand.u32 15, %s366
    %v368 = vld [vmem:[%s358] sm:%s367]
    %v369 = vunpack.c.l.bf16 %v368
    %v370 = vunpack.c.h.bf16 %v368
    %s371 = scalar_lea.vmem [#allocation1], 72
    %372 = vst [vmem:[%s371] sm:%s4] %v369
    %s373 = smul.addr 2, 8
    %s374 = scalar_lea.vmem %s0, %s373
    %s375 = sshrl.u32 %s4, 1
    %s376 = sor.u32 %s4, %s375
    %s377 = sand.u32 %s376, 85
    %s378 = sshrl.u32 %s377, 1
    %s379 = sor.u32 %s377, %s378
    %s380 = sand.u32 51, %s379
    %s381 = sshrl.u32 %s380, 2
    %s382 = sor.u32 %s380, %s381
    %s383 = sand.u32 15, %s382
    %v384 = vld [vmem:[%s374] sm:%s383]
    %v385 = vunpack.c.l.bf16 %v384
    %v386 = vunpack.c.h.bf16 %v384
    %s387 = scalar_lea.vmem [#allocation1], 64
    %388 = vst [vmem:[%s387] sm:%s4] %v385
    %s389 = smul.addr 2, 7
    %s390 = scalar_lea.vmem %s0, %s389
    %s391 = sshrl.u32 %s4, 1
    %s392 = sor.u32 %s4, %s391
    %s393 = sand.u32 %s392, 85
    %s394 = sshrl.u32 %s393, 1
    %s395 = sor.u32 %s393, %s394
    %s396 = sand.u32 51, %s395
    %s397 = sshrl.u32 %s396, 2
    %s398 = sor.u32 %s396, %s397
    %s399 = sand.u32 15, %s398
    %v400 = vld [vmem:[%s390] sm:%s399]
    %v401 = vunpack.c.l.bf16 %v400
    %v402 = vunpack.c.h.bf16 %v400
    %s403 = scalar_lea.vmem [#allocation1], 56
    %404 = vst [vmem:[%s403] sm:%s4] %v401
    %s405 = smul.addr 2, 6
    %s406 = scalar_lea.vmem %s0, %s405
    %s407 = sshrl.u32 %s4, 1
    %s408 = sor.u32 %s4, %s407
    %s409 = sand.u32 %s408, 85
    %s410 = sshrl.u32 %s409, 1
    %s411 = sor.u32 %s409, %s410
    %s412 = sand.u32 51, %s411
    %s413 = sshrl.u32 %s412, 2
    %s414 = sor.u32 %s412, %s413
    %s415 = sand.u32 15, %s414
    %v416 = vld [vmem:[%s406] sm:%s415]
    %v417 = vunpack.c.l.bf16 %v416
    %v418 = vunpack.c.h.bf16 %v416
    %s419 = scalar_lea.vmem [#allocation1], 48
    %420 = vst [vmem:[%s419] sm:%s4] %v417
    %s421 = smul.addr 2, 5
    %s422 = scalar_lea.vmem %s0, %s421
    %s423 = sshrl.u32 %s4, 1
    %s424 = sor.u32 %s4, %s423
    %s425 = sand.u32 %s424, 85
    %s426 = sshrl.u32 %s425, 1
    %s427 = sor.u32 %s425, %s426
    %s428 = sand.u32 51, %s427
    %s429 = sshrl.u32 %s428, 2
    %s430 = sor.u32 %s428, %s429
    %s431 = sand.u32 15, %s430
    %v432 = vld [vmem:[%s422] sm:%s431]
    %v433 = vunpack.c.l.bf16 %v432
    %v434 = vunpack.c.h.bf16 %v432
    %s435 = scalar_lea.vmem [#allocation1], 40
    %436 = vst [vmem:[%s435] sm:%s4] %v433
    %s437 = smul.addr 2, 4
    %s438 = scalar_lea.vmem %s0, %s437
    %s439 = sshrl.u32 %s4, 1
    %s440 = sor.u32 %s4, %s439
    %s441 = sand.u32 %s440, 85
    %s442 = sshrl.u32 %s441, 1
    %s443 = sor.u32 %s441, %s442
    %s444 = sand.u32 51, %s443
    %s445 = sshrl.u32 %s444, 2
    %s446 = sor.u32 %s444, %s445
    %s447 = sand.u32 15, %s446
    %v448 = vld [vmem:[%s438] sm:%s447]
    %v449 = vunpack.c.l.bf16 %v448
    %v450 = vunpack.c.h.bf16 %v448
    %s451 = scalar_lea.vmem [#allocation1], 32
    %452 = vst [vmem:[%s451] sm:%s4] %v449
    %s453 = smul.addr 2, 3
    %s454 = scalar_lea.vmem %s0, %s453
    %s455 = sshrl.u32 %s4, 1
    %s456 = sor.u32 %s4, %s455
    %s457 = sand.u32 %s456, 85
    %s458 = sshrl.u32 %s457, 1
    %s459 = sor.u32 %s457, %s458
    %s460 = sand.u32 51, %s459
    %s461 = sshrl.u32 %s460, 2
    %s462 = sor.u32 %s460, %s461
    %s463 = sand.u32 15, %s462
    %v464 = vld [vmem:[%s454] sm:%s463]
    %v465 = vunpack.c.l.bf16 %v464
    %v466 = vunpack.c.h.bf16 %v464
    %s467 = scalar_lea.vmem [#allocation1], 24
    %468 = vst [vmem:[%s467] sm:%s4] %v465
    %s469 = smul.addr 2, 2
    %s470 = scalar_lea.vmem %s0, %s469
    %s471 = sshrl.u32 %s4, 1
    %s472 = sor.u32 %s4, %s471
    %s473 = sand.u32 %s472, 85
    %s474 = sshrl.u32 %s473, 1
    %s475 = sor.u32 %s473, %s474
    %s476 = sand.u32 51, %s475
    %s477 = sshrl.u32 %s476, 2
    %s478 = sor.u32 %s476, %s477
    %s479 = sand.u32 15, %s478
    %v480 = vld [vmem:[%s470] sm:%s479]
    %v481 = vunpack.c.l.bf16 %v480
    %v482 = vunpack.c.h.bf16 %v480
    %s483 = scalar_lea.vmem [#allocation1], 16
    %484 = vst [vmem:[%s483] sm:%s4] %v481
    %s485 = scalar_lea.vmem %s0, 2
    %s486 = sshrl.u32 %s4, 1
    %s487 = sor.u32 %s4, %s486
    %s488 = sand.u32 %s487, 85
    %s489 = sshrl.u32 %s488, 1
    %s490 = sor.u32 %s488, %s489
    %s491 = sand.u32 51, %s490
    %s492 = sshrl.u32 %s491, 2
    %s493 = sor.u32 %s491, %s492
    %s494 = sand.u32 15, %s493
    %v495 = vld [vmem:[%s485] sm:%s494]
    %v496 = vunpack.c.l.bf16 %v495
    %v497 = vunpack.c.h.bf16 %v495
    %s498 = scalar_lea.vmem [#allocation1], 8
    %499 = vst [vmem:[%s498] sm:%s4] %v496
    %s500 = sshrl.u32 %s4, 1
    %s501 = sor.u32 %s4, %s500
    %s502 = sand.u32 %s501, 85
    %s503 = sshrl.u32 %s502, 1
    %s504 = sor.u32 %s502, %s503
    %s505 = sand.u32 51, %s504
    %s506 = sshrl.u32 %s505, 2
    %s507 = sor.u32 %s505, %s506
    %s508 = sand.u32 15, %s507
    %v509 = vld [vmem:[%s0] sm:%s508]
    %v510 = vunpack.c.l.bf16 %v509
    %v511 = vunpack.c.h.bf16 %v509
    %512 = vst [vmem:[#allocation1] sm:%s4] %v510
    %v513 = vld [vmem:[#allocation1] ss:$8 sm:$0xf]
    %v514 = vld [vmem:[#allocation1] ss:$8 sm:$0xf0]
    %vm515 = vcmask 1047556
    %v516 = vsel %vm515, %v514, %v513
    %vm517 = vcmask 64512
    %518 = vst.msk [vmem:[#allocation0] sm:$0xff] %vm517, %v516
    %s519 = scalar_lea.vmem [#allocation1], 64
    %v520 = vld [vmem:[%s519] ss:$8 sm:$0xf]
    %s521 = scalar_lea.vmem [#allocation1], 64
    %v522 = vld [vmem:[%s521] ss:$8 sm:$0xf0]
    %vm523 = vcmask 1047556
    %v524 = vsel %vm523, %v522, %v520
    %vm525 = vcmask 64512
    %s526 = scalar_lea.vmem [#allocation0], 8
    %527 = vst.msk [vmem:[%s526] sm:$0xff] %vm525, %v524
    %s528 = scalar_lea.vmem [#allocation1], 128
    %v529 = vld [vmem:[%s528] ss:$8 sm:$0xf]
    %s530 = scalar_lea.vmem [#allocation1], 128
    %v531 = vld [vmem:[%s530] ss:$8 sm:$0xf0]
    %vm532 = vcmask 1047556
    %v533 = vsel %vm532, %v531, %v529
    %vm534 = vcmask 64512
    %s535 = scalar_lea.vmem [#allocation0], 16
    %536 = vst.msk [vmem:[%s535] sm:$0xff] %vm534, %v533
    %s537 = scalar_lea.vmem [#allocation1], 192
    %v538 = vld [vmem:[%s537] ss:$8 sm:$0xf]
    %s539 = scalar_lea.vmem [#allocation1], 192
    %v540 = vld [vmem:[%s539] ss:$8 sm:$0xf0]
    %vm541 = vcmask 1047556
    %v542 = vsel %vm541, %v540, %v538
    %vm543 = vcmask 64512
    %s544 = scalar_lea.vmem [#allocation0], 24
    %545 = vst.msk [vmem:[%s544] sm:$0xff] %vm543, %v542
    %s546 = scalar_lea.vmem [#allocation1], 3
    %v547 = vld [vmem:[%s546] ss:$8 sm:$0xf]
    %s548 = scalar_lea.vmem [#allocation1], 3
    %v549 = vld [vmem:[%s548] ss:$8 sm:$0xf0]
    %vm550 = vcmask 1047556
    %v551 = vsel %vm550, %v549, %v547
    %552 = vrot.lane.b32.xlu0 %v551, 24
    %v553 = vpop.permute.xlu0 %552
    %vm554 = vcmask 261312
    %555 = vst.msk [vmem:[#allocation0] sm:$0xff] %vm554, %v553
    %s556 = scalar_lea.vmem [#allocation1], 67
    %v557 = vld [vmem:[%s556] ss:$8 sm:$0xf]
    %s558 = scalar_lea.vmem [#allocation1], 67
    %v559 = vld [vmem:[%s558] ss:$8 sm:$0xf0]
    %vm560 = vcmask 1047556
    %v561 = vsel %vm560, %v559, %v557
    %562 = vrot.lane.b32.xlu0 %v561, 24
    %v563 = vpop.permute.xlu0 %562
    %vm564 = vcmask 261312
    %s565 = scalar_lea.vmem [#allocation0], 8
    %566 = vst.msk [vmem:[%s565] sm:$0xff] %vm564, %v563
    %s567 = scalar_lea.vmem [#allocation1], 131
    %v568 = vld [vmem:[%s567] ss:$8 sm:$0xf]
    %s569 = scalar_lea.vmem [#allocation1], 131
    %v570 = vld [vmem:[%s569] ss:$8 sm:$0xf0]
    %vm571 = vcmask 1047556
    %v572 = vsel %vm571, %v570, %v568
    %573 = vrot.lane.b32.xlu0 %v572, 24
    %v574 = vpop.permute.xlu0 %573
    %vm575 = vcmask 261312
    %s576 = scalar_lea.vmem [#allocation0], 16
    %577 = vst.msk [vmem:[%s576] sm:$0xff] %vm575, %v574
    %s578 = scalar_lea.vmem [#allocation1], 195
    %v579 = vld [vmem:[%s578] ss:$8 sm:$0xf]
    %s580 = scalar_lea.vmem [#allocation1], 195
    %v581 = vld [vmem:[%s580] ss:$8 sm:$0xf0]
    %vm582 = vcmask 1047556
    %v583 = vsel %vm582, %v581, %v579
    %584 = vrot.lane.b32.xlu0 %v583, 24
    %v585 = vpop.permute.xlu0 %584
    %vm586 = vcmask 261312
    %s587 = scalar_lea.vmem [#allocation0], 24
    %588 = vst.msk [vmem:[%s587] sm:$0xff] %vm586, %v585
    %s589 = scalar_lea.vmem [#allocation1], 2
    %v590 = vld [vmem:[%s589] ss:$8 sm:$0xf]
    %s591 = scalar_lea.vmem [#allocation1], 2
    %v592 = vld [vmem:[%s591] ss:$8 sm:$0xf0]
    %vm593 = vcmask 1047556
    %v594 = vsel %vm593, %v592, %v590
    %595 = vrot.lane.b32.xlu0 %v594, 16
    %v596 = vpop.permute.xlu0 %595
    %vm597 = vcmask 195712
    %598 = vst.msk [vmem:[#allocation0] sm:$0xff] %vm597, %v596
    %s599 = scalar_lea.vmem [#allocation1], 66
    %v600 = vld [vmem:[%s599] ss:$8 sm:$0xf]
    %s601 = scalar_lea.vmem [#allocation1], 66
    %v602 = vld [vmem:[%s601] ss:$8 sm:$0xf0]
    %vm603 = vcmask 1047556
    %v604 = vsel %vm603, %v602, %v600
    %605 = vrot.lane.b32.xlu0 %v604, 16
    %v606 = vpop.permute.xlu0 %605
    %vm607 = vcmask 195712
    %s608 = scalar_lea.vmem [#allocation0], 8
    %609 = vst.msk [vmem:[%s608] sm:$0xff] %vm607, %v606
    %s610 = scalar_lea.vmem [#allocation1], 130
    %v611 = vld [vmem:[%s610] ss:$8 sm:$0xf]
    %s612 = scalar_lea.vmem [#allocation1], 130
    %v613 = vld [vmem:[%s612] ss:$8 sm:$0xf0]
    %vm614 = vcmask 1047556
    %v615 = vsel %vm614, %v613, %v611
    %616 = vrot.lane.b32.xlu0 %v615, 16
    %v617 = vpop.permute.xlu0 %616
    %vm618 = vcmask 195712
    %s619 = scalar_lea.vmem [#allocation0], 16
    %620 = vst.msk [vmem:[%s619] sm:$0xff] %vm618, %v617
    %s621 = scalar_lea.vmem [#allocation1], 194
    %v622 = vld [vmem:[%s621] ss:$8 sm:$0xf]
    %s623 = scalar_lea.vmem [#allocation1], 194
    %v624 = vld [vmem:[%s623] ss:$8 sm:$0xf0]
    %vm625 = vcmask 1047556
    %v626 = vsel %vm625, %v624, %v622
    %627 = vrot.lane.b32.xlu0 %v626, 16
    %v628 = vpop.permute.xlu0 %627
    %vm629 = vcmask 195712
    %s630 = scalar_lea.vmem [#allocation0], 24
    %631 = vst.msk [vmem:[%s630] sm:$0xff] %vm629, %v628
    %s632 = scalar_lea.vmem [#allocation1], 1
    %v633 = vld [vmem:[%s632] ss:$8 sm:$0xf]
    %s634 = scalar_lea.vmem [#allocation1], 1
    %v635 = vld [vmem:[%s634] ss:$8 sm:$0xf0]
    %vm636 = vcmask 1047556
    %v637 = vsel %vm636, %v635, %v633
    %638 = vrot.lane.b32.xlu0 %v637, 8
    %v639 = vpop.permute.xlu0 %638
    %vm640 = vcmask 130112
    %641 = vst.msk [vmem:[#allocation0] sm:$0xff] %vm640, %v639
    %s642 = scalar_lea.vmem [#allocation1], 65
    %v643 = vld [vmem:[%s642] ss:$8 sm:$0xf]
    %s644 = scalar_lea.vmem [#allocation1], 65
    %v645 = vld [vmem:[%s644] ss:$8 sm:$0xf0]
    %vm646 = vcmask 1047556
    %v647 = vsel %vm646, %v645, %v643
    %648 = vrot.lane.b32.xlu0 %v647, 8
    %v649 = vpop.permute.xlu0 %648
    %vm650 = vcmask 130112
    %s651 = scalar_lea.vmem [#allocation0], 8
    %652 = vst.msk [vmem:[%s651] sm:$0xff] %vm650, %v649
    %s653 = scalar_lea.vmem [#allocation1], 129
    %v654 = vld [vmem:[%s653] ss:$8 sm:$0xf]
    %s655 = scalar_lea.vmem [#allocation1], 129
    %v656 = vld [vmem:[%s655] ss:$8 sm:$0xf0]
    %vm657 = vcmask 1047556
    %v658 = vsel %vm657, %v656, %v654
    %659 = vrot.lane.b32.xlu0 %v658, 8
    %v660 = vpop.permute.xlu0 %659
    %vm661 = vcmask 130112
    %s662 = scalar_lea.vmem [#allocation0], 16
    %663 = vst.msk [vmem:[%s662] sm:$0xff] %vm661, %v660
    %s664 = scalar_lea.vmem [#allocation1], 193
    %v665 = vld [vmem:[%s664] ss:$8 sm:$0xf]
    %s666 = scalar_lea.vmem [#allocation1], 193
    %v667 = vld [vmem:[%s666] ss:$8 sm:$0xf0]
    %vm668 = vcmask 1047556
    %v669 = vsel %vm668, %v667, %v665
    %670 = vrot.lane.b32.xlu0 %v669, 8
    %v671 = vpop.permute.xlu0 %670
    %vm672 = vcmask 130112
    %s673 = scalar_lea.vmem [#allocation0], 24
    %674 = vst.msk [vmem:[%s673] sm:$0xff] %vm672, %v671
    %s676 = smul.u32 4, 2
    %s677 = sshllo.u32 0, %s676
    %s678 = sshrl.u32 %s676, 1
    %v679 = vld [vmem:[#allocation0] sm:%s677]
    %v680 = vpack.c.bf16 0.0, %v679
    %s681 = sshllo.u32 0, %s678
    %682 = vst [vmem:[%s1] sm:%s681] %v680
    %s683 = scalar_lea.vmem [#allocation0], 8
    %v684 = vld [vmem:[%s683] sm:%s677]
    %v685 = vpack.c.bf16 0.0, %v684
    %s686 = sshllo.u32 0, %s678
    %s687 = scalar_lea.vmem %s1, 4
    %688 = vst [vmem:[%s687] sm:%s686] %v685
    %s689 = scalar_lea.vmem [#allocation0], 16
    %v690 = vld [vmem:[%s689] sm:%s677]
    %v691 = vpack.c.bf16 0.0, %v690
    %s692 = sshllo.u32 0, %s678
    %s693 = smul.addr 4, 2
    %s694 = scalar_lea.vmem %s1, %s693
    %695 = vst [vmem:[%s694] sm:%s692] %v691
    %s696 = scalar_lea.vmem [#allocation0], 24
    %v697 = vld [vmem:[%s696] sm:%s677]
    %v698 = vpack.c.bf16 0.0, %v697
    %s699 = sshllo.u32 0, %s678
    %s700 = smul.addr 4, 3
    %s701 = scalar_lea.vmem %s1, %s700
    %702 = vst [vmem:[%s701] sm:%s699] %v698

// kernel: model_forward.1
$region0: #{model_forward.1}
  #allocation0 [shape = 'u32[]', space=smem, size = 0x4, offset = 0x4, fixed_abs, tag = 'smem constant byte address 0x4 - core index']
  #allocation1 [shape = 'u32[144,128]{1,0:T(1,128)}', space=vmem, size = 0x12000, scoped, tag = 'internal scratch']
  %s0 = inlined_call_operand.vmem [shape: f32[2,8,32], index: 0, kind: input, shape index: {}]
  %s1 = inlined_call_operand.vmem [shape: bf16[32,32], index: 1, kind: input, shape index: {}]
  %s2 = inlined_call_operand.vmem [shape: bf16[32,32], index: 2, kind: input, shape index: {}]
  %s3 = inlined_call_operand.vmem [shape: bf16[2,2,32,96], index: 3, kind: input, shape index: {}]
  %s4 = inlined_call_operand.vmem [shape: bf16[2,2,32,32], index: 4, kind: input, shape index: {}]
  %s5 = inlined_call_operand.vmem [shape: bf16[2,32,128], index: 5, kind: input, shape index: {}]
  %s6 = inlined_call_operand.vmem [shape: bf16[2,128,32], index: 6, kind: input, shape index: {}]
  %s7 = inlined_call_operand.vmem [shape: f32[2,12,128], index: 7, kind: input, shape index: {}]
  %s8 = inlined_call_operand.vmem [shape: bf16[32,32], index: 8, kind: input, shape index: {}]
  %s9 = inlined_call_operand.vmem [shape: bf16[256,32], index: 9, kind: input, shape index: {}]
  %s10 = inlined_call_operand.vmem [shape: f32[3,32], index: 10, kind: input, shape index: {}]
  %s11 = inlined_call_operand.hbm [shape: f32[2,1,32], index: 11, kind: output, shape index: {}]
  %s12 = sld [smem:[#allocation0]]
  $region77: #{model_forward.1} parent=0
    _
  %s14 = ssub.s32 1, %s12
  %s15 = scalar_select 0, %s14, %s12
  $region1: #{model_forward.1} parent=0
    #allocation2 [shape = 'u8[1024]{0}', space=vmem, size = 0x400, scoped, tag = 'output window, operand 0']
    #allocation3 [shape = 's32[2]{0}', space=sflag, size = 0x8, scoped, tag = 'scoped memory for model_forward.1']
    %16 = vsyncpa [#allocation3], 0
    %s17 = scalar_lea.sflag [#allocation3], 1
    %18 = vsyncpa %s17, 0
    loop: start=0, step=1, limit=4
    $region2: #{model_forward.1} parent=1 // loop_pre_header
      _
    $region3: #{model_forward.1} parent=1 // loop_header
      %s20 = sphi 0, %s24
      %p21 = scmp.ge.s32.totalorder %s20, 4
      %s30 = sphi 0, %s32
      %s33 = sphi 0, %s30
      %s34 = sphi 0, %s33
      %s50 = sphi 0, %s34
      %s54 = sphi 0, %s54
      %s56 = sphi 0, %s54
      %s57 = sphi 0, %s56
      %s71 = sphi 0, %s57
      %s75 = sphi 0, %s75
      %s77 = sphi 0, %s75
      %s78 = sphi 0, %s77
      %s92 = sphi 0, %s78
      %s96 = sphi 0, %s96
      %s98 = sphi 0, %s96
      %s99 = sphi 0, %s98
      %s113 = sphi 0, %s99
      %s117 = sphi 0, %s117
      %s119 = sphi 0, %s117
      %s120 = sphi 0, %s119
      %s134 = sphi 0, %s120
      %s138 = sphi 0, %s138
      %s140 = sphi 0, %s138
      %s141 = sphi 0, %s140
      %s155 = sphi 0, %s141
      %s159 = sphi 0, %s159
      %s161 = sphi 0, %s159
      %s162 = sphi 0, %s161
      %s176 = sphi 0, %s162
      %s180 = sphi 0, %s180
      %s182 = sphi 0, %s180
      %s183 = sphi 0, %s182
      %s197 = sphi 0, %s183
      %s201 = sphi 0, %s201
      %s203 = sphi 0, %s201
      %s204 = sphi 0, %s203
      %s218 = sphi 0, %s204
      %s222 = sphi 0, %s222
      %s224 = sphi 0, %s222
      %s225 = sphi 0, %s224
      %s239 = sphi 0, %s225
      %s243 = sphi 0, %s243
      %s245 = sphi 0, %s243
      %s246 = sphi 0, %s245
      %s260 = sphi 0, %s246
      %s266 = sphi 0, %s268
      %s269 = sphi 0, %s266
      %s270 = sphi 0, %s269
      %s286 = sphi 0, %s270
    $region4: #{model_forward.1} parent=1 // loop_header_branch
      %23 = sbr.rel (%p21) target = $region8
    $region5: #{model_forward.1} parent=1 // loop_body
      %s25 = ssub.s32 %s20, 1
      %s26 = ssub.s32 %s20, 2
      %s27 = sadd.s32 %s20, 1
      %s28 = ssub.s32 %s20, %s27
      %p29 = scmp.eq.s32.totalorder %s28, 0
      %s31 = sadd.s32 %s30, 1
      %s32 = scalar_select %p29, %s30, %s31
      %p35 = pneg %p29
      %p36 = scmp.eq.s32.totalorder %s20, 1
      %p37 = por %p35, %p36
      %p38 = scmp.ne.s32.totalorder %s30, %s33
      %p39 = scmp.eq.s32.totalorder %s20, 0
      %p40 = por %p38, %p39
      %p41 = scmp.ne.s32.totalorder %s30, %s33
      %p42 = scmp.eq.s32.totalorder %s25, 1
      %p43 = por %p41, %p42
      %p44 = scmp.ne.s32.totalorder %s33, %s34
      %p45 = scmp.eq.s32.totalorder %s25, 0
      %p46 = por %p44, %p45
      %p47 = scmp.ne.s32.totalorder %s33, %s34
      %p48 = scmp.eq.s32.totalorder %s26, 1
      %p49 = por %p47, %p48
      %p51 = scmp.ne.s32.totalorder %s34, %s50
      %p52 = scmp.eq.s32.totalorder %s26, 0
      %p53 = por %p51, %p52
      %s55 = sadd.s32 %s54, 1
      %p58 = scmp.eq.s32.totalorder %s20, 1
      %p59 = scmp.ne.s32.totalorder %s54, %s56
      %p60 = scmp.eq.s32.totalorder %s20, 0
      %p61 = por %p59, %p60
      %p62 = scmp.ne.s32.totalorder %s54, %s56
      %p63 = scmp.eq.s32.totalorder %s25, 1
      %p64 = por %p62, %p63
      %p65 = scmp.ne.s32.totalorder %s56, %s57
      %p66 = scmp.eq.s32.totalorder %s25, 0
      %p67 = por %p65, %p66
      %p68 = scmp.ne.s32.totalorder %s56, %s57
      %p69 = scmp.eq.s32.totalorder %s26, 1
      %p70 = por %p68, %p69
      %p72 = scmp.ne.s32.totalorder %s57, %s71
      %p73 = scmp.eq.s32.totalorder %s26, 0
      %p74 = por %p72, %p73
      %s76 = sadd.s32 %s75, 1
      %p79 = scmp.eq.s32.totalorder %s20, 1
      %p80 = scmp.ne.s32.totalorder %s75, %s77
      %p81 = scmp.eq.s32.totalorder %s20, 0
      %p82 = por %p80, %p81
      %p83 = scmp.ne.s32.totalorder %s75, %s77
      %p84 = scmp.eq.s32.totalorder %s25, 1
      %p85 = por %p83, %p84
      %p86 = scmp.ne.s32.totalorder %s77, %s78
      %p87 = scmp.eq.s32.totalorder %s25, 0
      %p88 = por %p86, %p87
      %p89 = scmp.ne.s32.totalorder %s77, %s78
      %p90 = scmp.eq.s32.totalorder %s26, 1
      %p91 = por %p89, %p90
      %p93 = scmp.ne.s32.totalorder %s78, %s92
      %p94 = scmp.eq.s32.totalorder %s26, 0
      %p95 = por %p93, %p94
      %s97 = sadd.s32 %s96, 1
      %p100 = scmp.eq.s32.totalorder %s20, 1
      %p101 = scmp.ne.s32.totalorder %s96, %s98
      %p102 = scmp.eq.s32.totalorder %s20, 0
      %p103 = por %p101, %p102
      %p104 = scmp.ne.s32.totalorder %s96, %s98
      %p105 = scmp.eq.s32.totalorder %s25, 1
      %p106 = por %p104, %p105
      %p107 = scmp.ne.s32.totalorder %s98, %s99
      %p108 = scmp.eq.s32.totalorder %s25, 0
      %p109 = por %p107, %p108
      %p110 = scmp.ne.s32.totalorder %s98, %s99
      %p111 = scmp.eq.s32.totalorder %s26, 1
      %p112 = por %p110, %p111
      %p114 = scmp.ne.s32.totalorder %s99, %s113
      %p115 = scmp.eq.s32.totalorder %s26, 0
      %p116 = por %p114, %p115
      %s118 = sadd.s32 %s117, 1
      %p121 = scmp.eq.s32.totalorder %s20, 1
      %p122 = scmp.ne.s32.totalorder %s117, %s119
      %p123 = scmp.eq.s32.totalorder %s20, 0
      %p124 = por %p122, %p123
      %p125 = scmp.ne.s32.totalorder %s117, %s119
      %p126 = scmp.eq.s32.totalorder %s25, 1
      %p127 = por %p125, %p126
      %p128 = scmp.ne.s32.totalorder %s119, %s120
      %p129 = scmp.eq.s32.totalorder %s25, 0
      %p130 = por %p128, %p129
      %p131 = scmp.ne.s32.totalorder %s119, %s120
      %p132 = scmp.eq.s32.totalorder %s26, 1
      %p133 = por %p131, %p132
      %p135 = scmp.ne.s32.totalorder %s120, %s134
      %p136 = scmp.eq.s32.totalorder %s26, 0
      %p137 = por %p135, %p136
      %s139 = sadd.s32 %s138, 1
      %p142 = scmp.eq.s32.totalorder %s20, 1
      %p143 = scmp.ne.s32.totalorder %s138, %s140
      %p144 = scmp.eq.s32.totalorder %s20, 0
      %p145 = por %p143, %p144
      %p146 = scmp.ne.s32.totalorder %s138, %s140
      %p147 = scmp.eq.s32.totalorder %s25, 1
      %p148 = por %p146, %p147
      %p149 = scmp.ne.s32.totalorder %s140, %s141
      %p150 = scmp.eq.s32.totalorder %s25, 0
      %p151 = por %p149, %p150
      %p152 = scmp.ne.s32.totalorder %s140, %s141
      %p153 = scmp.eq.s32.totalorder %s26, 1
      %p154 = por %p152, %p153
      %p156 = scmp.ne.s32.totalorder %s141, %s155
      %p157 = scmp.eq.s32.totalorder %s26, 0
      %p158 = por %p156, %p157
      %s160 = sadd.s32 %s159, 1
      %p163 = scmp.eq.s32.totalorder %s20, 1
      %p164 = scmp.ne.s32.totalorder %s159, %s161
      %p165 = scmp.eq.s32.totalorder %s20, 0
      %p166 = por %p164, %p165
      %p167 = scmp.ne.s32.totalorder %s159, %s161
      %p168 = scmp.eq.s32.totalorder %s25, 1
      %p169 = por %p167, %p168
      %p170 = scmp.ne.s32.totalorder %s161, %s162
      %p171 = scmp.eq.s32.totalorder %s25, 0
      %p172 = por %p170, %p171
      %p173 = scmp.ne.s32.totalorder %s161, %s162
      %p174 = scmp.eq.s32.totalorder %s26, 1
      %p175 = por %p173, %p174
      %p177 = scmp.ne.s32.totalorder %s162, %s176
      %p178 = scmp.eq.s32.totalorder %s26, 0
      %p179 = por %p177, %p178
      %s181 = sadd.s32 %s180, 1
      %p184 = scmp.eq.s32.totalorder %s20, 1
      %p185 = scmp.ne.s32.totalorder %s180, %s182
      %p186 = scmp.eq.s32.totalorder %s20, 0
      %p187 = por %p185, %p186
      %p188 = scmp.ne.s32.totalorder %s180, %s182
      %p189 = scmp.eq.s32.totalorder %s25, 1
      %p190 = por %p188, %p189
      %p191 = scmp.ne.s32.totalorder %s182, %s183
      %p192 = scmp.eq.s32.totalorder %s25, 0
      %p193 = por %p191, %p192
      %p194 = scmp.ne.s32.totalorder %s182, %s183
      %p195 = scmp.eq.s32.totalorder %s26, 1
      %p196 = por %p194, %p195
      %p198 = scmp.ne.s32.totalorder %s183, %s197
      %p199 = scmp.eq.s32.totalorder %s26, 0
      %p200 = por %p198, %p199
      %s202 = sadd.s32 %s201, 1
      %p205 = scmp.eq.s32.totalorder %s20, 1
      %p206 = scmp.ne.s32.totalorder %s201, %s203
      %p207 = scmp.eq.s32.totalorder %s20, 0
      %p208 = por %p206, %p207
      %p209 = scmp.ne.s32.totalorder %s201, %s203
      %p210 = scmp.eq.s32.totalorder %s25, 1
      %p211 = por %p209, %p210
      %p212 = scmp.ne.s32.totalorder %s203, %s204
      %p213 = scmp.eq.s32.totalorder %s25, 0
      %p214 = por %p212, %p213
      %p215 = scmp.ne.s32.totalorder %s203, %s204
      %p216 = scmp.eq.s32.totalorder %s26, 1
      %p217 = por %p215, %p216
      %p219 = scmp.ne.s32.totalorder %s204, %s218
      %p220 = scmp.eq.s32.totalorder %s26, 0
      %p221 = por %p219, %p220
      %s223 = sadd.s32 %s222, 1
      %p226 = scmp.eq.s32.totalorder %s20, 1
      %p227 = scmp.ne.s32.totalorder %s222, %s224
      %p228 = scmp.eq.s32.totalorder %s20, 0
      %p229 = por %p227, %p228
      %p230 = scmp.ne.s32.totalorder %s222, %s224
      %p231 = scmp.eq.s32.totalorder %s25, 1
      %p232 = por %p230, %p231
      %p233 = scmp.ne.s32.totalorder %s224, %s225
      %p234 = scmp.eq.s32.totalorder %s25, 0
      %p235 = por %p233, %p234
      %p236 = scmp.ne.s32.totalorder %s224, %s225
      %p237 = scmp.eq.s32.totalorder %s26, 1
      %p238 = por %p236, %p237
      %p240 = scmp.ne.s32.totalorder %s225, %s239
      %p241 = scmp.eq.s32.totalorder %s26, 0
      %p242 = por %p240, %p241
      %s244 = sadd.s32 %s243, 1
      %p247 = scmp.eq.s32.totalorder %s20, 1
      %p248 = scmp.ne.s32.totalorder %s243, %s245
      %p249 = scmp.eq.s32.totalorder %s20, 0
      %p250 = por %p248, %p249
      %p251 = scmp.ne.s32.totalorder %s243, %s245
      %p252 = scmp.eq.s32.totalorder %s25, 1
      %p253 = por %p251, %p252
      %p254 = scmp.ne.s32.totalorder %s245, %s246
      %p255 = scmp.eq.s32.totalorder %s25, 0
      %p256 = por %p254, %p255
      %p257 = scmp.ne.s32.totalorder %s245, %s246
      %p258 = scmp.eq.s32.totalorder %s26, 1
      %p259 = por %p257, %p258
      %p261 = scmp.ne.s32.totalorder %s246, %s260
      %p262 = scmp.eq.s32.totalorder %s26, 0
      %p263 = por %p261, %p262
      %s264 = ssub.s32 %s20, %s27
      %p265 = scmp.eq.s32.totalorder %s264, 0
      %s267 = sadd.s32 %s266, 1
      %s268 = scalar_select %p265, %s266, %s267
      %p271 = pneg %p265
      %p272 = scmp.eq.s32.totalorder %s20, 1
      %p273 = por %p271, %p272
      %p274 = scmp.ne.s32.totalorder %s266, %s269
      %p275 = scmp.eq.s32.totalorder %s20, 0
      %p276 = por %p274, %p275
      %p277 = scmp.ne.s32.totalorder %s266, %s269
      %p278 = scmp.eq.s32.totalorder %s25, 1
      %p279 = por %p277, %p278
      %p280 = scmp.ne.s32.totalorder %s269, %s270
      %p281 = scmp.eq.s32.totalorder %s25, 0
      %p282 = por %p280, %p281
      %p283 = scmp.ne.s32.totalorder %s269, %s270
      %p284 = scmp.eq.s32.totalorder %s26, 1
      %p285 = por %p283, %p284
      %p287 = scmp.ne.s32.totalorder %s270, %s286
      %p288 = scmp.eq.s32.totalorder %s26, 0
      %p289 = por %p287, %p288
      %p290 = scmp.le.s32.totalorder 1, %s20
      %p291 = scmp.lt.s32.totalorder %s20, 3
      %p292 = pnand %p290, %p291
      %p293 = pneg %p292
      // Predicated region
      $region9: #{model_forward.1} parent=5 // pred_check
        _
      $region10: #{model_forward.1} parent=5 // pred_check_branch
        %295 = sbr.rel (%p292) target = $region12
      $region11: #{model_forward.1} parent=5 // pred_region
        %s296 = ssub.s32 %s20, 1
        // Predicated region
        $region13: #{model_forward.1} parent=11 // pred_check
          %p297 = pneg %p67
        $region14: #{model_forward.1} parent=11 // pred_check_branch
          %299 = sbr.rel (%p297) target = $region16
        $region15: #{model_forward.1} parent=11 // pred_region
          _
        $region16: #{model_forward.1} parent=11 // pred_fallthru
          _
        // Predicated region
        $region17: #{model_forward.1} parent=11 // pred_check
          %p300 = pneg %p88
        $region18: #{model_forward.1} parent=11 // pred_check_branch
          %302 = sbr.rel (%p300) target = $region20
        $region19: #{model_forward.1} parent=11 // pred_region
          _
        $region20: #{model_forward.1} parent=11 // pred_fallthru
          _
        // Predicated region
        $region21: #{model_forward.1} parent=11 // pred_check
          %p303 = pneg %p109
        $region22: #{model_forward.1} parent=11 // pred_check_branch
          %305 = sbr.rel (%p303) target = $region24
        $region23: #{model_forward.1} parent=11 // pred_region
          _
        $region24: #{model_forward.1} parent=11 // pred_fallthru
          _
        // Predicated region
        $region25: #{model_forward.1} parent=11 // pred_check
          %p306 = pneg %p130
        $region26: #{model_forward.1} parent=11 // pred_check_branch
          %308 = sbr.rel (%p306) target = $region28
        $region27: #{model_forward.1} parent=11 // pred_region
          _
        $region28: #{model_forward.1} parent=11 // pred_fallthru
          _
        // Predicated region
        $region29: #{model_forward.1} parent=11 // pred_check
          %p309 = pneg %p151
        $region30: #{model_forward.1} parent=11 // pred_check_branch
          %311 = sbr.rel (%p309) target = $region32
        $region31: #{model_forward.1} parent=11 // pred_region
          _
        $region32: #{model_forward.1} parent=11 // pred_fallthru
          _
        // Predicated region
        $region33: #{model_forward.1} parent=11 // pred_check
          %p312 = pneg %p172
        $region34: #{model_forward.1} parent=11 // pred_check_branch
          %314 = sbr.rel (%p312) target = $region36
        $region35: #{model_forward.1} parent=11 // pred_region
          _
        $region36: #{model_forward.1} parent=11 // pred_fallthru
          _
        // Predicated region
        $region37: #{model_forward.1} parent=11 // pred_check
          %p315 = pneg %p193
        $region38: #{model_forward.1} parent=11 // pred_check_branch
          %317 = sbr.rel (%p315) target = $region40
        $region39: #{model_forward.1} parent=11 // pred_region
          _
        $region40: #{model_forward.1} parent=11 // pred_fallthru
          _
        // Predicated region
        $region41: #{model_forward.1} parent=11 // pred_check
          %p318 = pneg %p214
        $region42: #{model_forward.1} parent=11 // pred_check_branch
          %320 = sbr.rel (%p318) target = $region44
        $region43: #{model_forward.1} parent=11 // pred_region
          _
        $region44: #{model_forward.1} parent=11 // pred_fallthru
          _
        // Predicated region
        $region45: #{model_forward.1} parent=11 // pred_check
          %p321 = pneg %p235
        $region46: #{model_forward.1} parent=11 // pred_check_branch
          %323 = sbr.rel (%p321) target = $region48
        $region47: #{model_forward.1} parent=11 // pred_region
          _
        $region48: #{model_forward.1} parent=11 // pred_fallthru
          _
        // Predicated region
        $region49: #{model_forward.1} parent=11 // pred_check
          %p324 = pneg %p256
        $region50: #{model_forward.1} parent=11 // pred_check_branch
          %326 = sbr.rel (%p324) target = $region52
        $region51: #{model_forward.1} parent=11 // pred_region
          _
        $region52: #{model_forward.1} parent=11 // pred_fallthru
          _
      $region12: #{model_forward.1} parent=5 // pred_fallthru
        _
      %p327 = scmp.lt.s32.totalorder %s20, 2
      // Predicated region
      $region53: #{model_forward.1} parent=5 // pred_check
        %p328 = pneg %p327
      $region54: #{model_forward.1} parent=5 // pred_check_branch
        %330 = sbr.rel (%p328) target = $region56
      $region55: #{model_forward.1} parent=5 // pred_region
        // Predicated region
        $region57: #{model_forward.1} parent=55 // pred_check
          %p331 = pneg %p40
        $region58: #{model_forward.1} parent=55 // pred_check_branch
          %333 = sbr.rel (%p331) target = $region60
        $region59: #{model_forward.1} parent=55 // pred_region
          %p334 = scmp.lt.s32.totalorder %s20, 1
          %s335 = scalar_select %p334, %s20, 1
          %s336 = smul.addr %s335, 8
          %s337 = scalar_lea.vmem %s0, %s336
        $region60: #{model_forward.1} parent=55 // pred_fallthru
          _
      $region56: #{model_forward.1} parent=5 // pred_fallthru
        _
      %p338 = scmp.le.s32.totalorder 1, %s20
      %p339 = scmp.lt.s32.totalorder %s20, 3
      %p340 = pnand %p338, %p339
      %p341 = pneg %p340
      // Predicated region
      $region61: #{model_forward.1} parent=5 // pred_check
        _
      $region62: #{model_forward.1} parent=5 // pred_check_branch
        %343 = sbr.rel (%p340) target = $region64
      $region63: #{model_forward.1} parent=5 // pred_region
        %s344 = ssub.s32 %s20, 1
        %p345 = scmp.lt.s32.totalorder %s25, 1
        %s346 = scalar_select %p345, %s25, 1
        %s347 = smul.addr %s346, 8
        %s348 = scalar_lea.vmem %s0, %s347
        %p349 = pneg %p46
        %p350 = pneg %p43
        %p351 = pneg %p67
        %p352 = pneg %p64
        %p353 = pneg %p88
        %p354 = pneg %p85
        %p355 = pneg %p109
        %p356 = pneg %p106
        %p357 = pneg %p130
        %p358 = pneg %p127
        %p359 = pneg %p151
        %p360 = pneg %p148
        %p361 = pneg %p172
        %p362 = pneg %p169
        %p363 = pneg %p193
        %p364 = pneg %p190
        %p365 = pneg %p214
        %p366 = pneg %p211
        %p367 = pneg %p235
        %p368 = pneg %p232
        %p369 = pneg %p256
        %p370 = pneg %p253
        %p371 = pneg %p282
        %p372 = pneg %p279
        %s373 = sand.u32 %s269, 1
        %s374 = scalar_lea.sflag [#allocation3], %s373
        %s375 = sand.u32 %s269, 1
        %s376 = scalar_lea.vmem [#allocation2], %s375
        %p377 = scmp.lt.s32.totalorder %s25, 1
        %s378 = scalar_select %p377, %s25, 1
        %s379 = smul.addr %s378, 8
        %s380 = scalar_lea.vmem %s0, %s379
        %v382 = vld [vmem:[%s380] sm:$0xff]
        %v383 = vpack.c.bf16 %v382, %v382
        %v384 = vld [vmem:[%s1] sm:$0xf]
        %v385 = vld [vmem:[%s1 + $0x4] sm:$0xf]
        %v386 = vld [vmem:[%s1 + $0x8] sm:$0xf]
        %v387 = vld [vmem:[%s1 + $0xc] sm:$0xf]
        %v388 = vld [vmem:[%s2] sm:$0xf]
        %v389 = vld [vmem:[%s2 + $0x4] sm:$0xf]
        %v390 = vld [vmem:[%s2 + $0x8] sm:$0xf]
        %v391 = vld [vmem:[%s2 + $0xc] sm:$0xf]
        %v392 = vld [vmem:[%s7] sm:$0xff]
        %v393 = vld [vmem:[%s7 + $0x8] sm:$0xf]
        %v394 = vld [vmem:[%s3] sm:$0xf]
        %v395 = vld [vmem:[%s3 + $0x4] sm:$0xf]
        %v396 = vld [vmem:[%s3 + $0x8] sm:$0xf]
        %v397 = vld [vmem:[%s3 + $0xc] sm:$0xf]
        %s398 = scalar_lea.vmem %s3, 16
        %v399 = vld [vmem:[%s398] sm:$0xf]
        %v400 = vld [vmem:[%s398 + $0x4] sm:$0xf]
        %v401 = vld [vmem:[%s398 + $0x8] sm:$0xf]
        %v402 = vld [vmem:[%s398 + $0xc] sm:$0xf]
        %v403 = vld [vmem:[%s4] sm:$0xf]
        %v404 = vld [vmem:[%s4 + $0x4] sm:$0xf]
        %v405 = vld [vmem:[%s4 + $0x8] sm:$0xf]
        %v406 = vld [vmem:[%s4 + $0xc] sm:$0xf]
        %s407 = scalar_lea.vmem %s4, 16
        %v408 = vld [vmem:[%s407] sm:$0xf]
        %v409 = vld [vmem:[%s407 + $0x4] sm:$0xf]
        %v410 = vld [vmem:[%s407 + $0x8] sm:$0xf]
        %v411 = vld [vmem:[%s407 + $0xc] sm:$0xf]
        %v412 = vld [vmem:[%s5] sm:$0xf]
        %v413 = vld [vmem:[%s5 + $0x4] sm:$0xf]
        %v414 = vld [vmem:[%s5 + $0x8] sm:$0xf]
        %v415 = vld [vmem:[%s5 + $0xc] sm:$0xf]
        %v416 = vld [vmem:[%s6] sm:$0xf]
        %v417 = vld [vmem:[%s6 + $0x4] sm:$0xf]
        %v418 = vld [vmem:[%s6 + $0x8] sm:$0xf]
        %v419 = vld [vmem:[%s6 + $0xc] sm:$0xf]
        %v420 = vld [vmem:[%s6 + $0x10] sm:$0xf]
        %v421 = vld [vmem:[%s6 + $0x14] sm:$0xf]
        %v422 = vld [vmem:[%s6 + $0x18] sm:$0xf]
        %v423 = vld [vmem:[%s6 + $0x1c] sm:$0xf]
        %v424 = vld [vmem:[%s6 + $0x20] sm:$0xf]
        %v425 = vld [vmem:[%s6 + $0x24] sm:$0xf]
        %v426 = vld [vmem:[%s6 + $0x28] sm:$0xf]
        %v427 = vld [vmem:[%s6 + $0x2c] sm:$0xf]
        %v428 = vld [vmem:[%s6 + $0x30] sm:$0xf]
        %v429 = vld [vmem:[%s6 + $0x34] sm:$0xf]
        %v430 = vld [vmem:[%s6 + $0x38] sm:$0xf]
        %v431 = vld [vmem:[%s6 + $0x3c] sm:$0xf]
        %v432 = vlaneseq
        %v433 = vshrl.u32 %v432, 7
        %v434 = vsub.s32 0, %v433
        %v435 = vrot.slane %v392, %v434
        %v440 = vunpack.c.l.b16 %v394
        %v441 = vunpack.c.l.b16 %v395
        %v442 = vunpack.c.l.b16 %v396
        %v443 = vunpack.c.l.b16 %v397
        %v444 = vpack.c.b16 %v441, %v440
        %v445 = vpack.c.b16 %v443, %v442
        %vm448 = vcmask 261120
        %v450 = vsel %vm448, %v383, 0
        %452 = vmatprep.subr.bf16.mxu0 0
        %453 = vmatpush1.bf16.msra.mxu0 %v444
        %454 = vmatprep.subr.bf16.mxu0 0
        %455 = vmatpush1.bf16.msra.mxu0 %v445
        %456 = vmatprep.subr.bf16.mxu0 0
        %457 = vmatpush1.bf16.msra.mxu0 0
        %458 = vmatprep.subr.bf16.mxu0 0
        %459 = vmatpush1.bf16.msra.mxu0 0
        %460 = vmatprep.subr.bf16.mxu0 0
        %461 = vmatpush1.bf16.msra.mxu0 0
        %462 = vmatprep.subr.bf16.mxu0 0
        %463 = vmatpush1.bf16.msra.mxu0 0
        %464 = vmatprep.subr.bf16.mxu0 0
        %465 = vmatpush1.bf16.msra.mxu0 0
        %466 = vmatprep.subr.bf16.mxu0 0
        %467 = vmatpush1.bf16.msra.mxu0 0
        %468 = vmatprep.subr.bf16.mxu0 0
        %469 = vmatpush1.bf16.msra.mxu0 0
        %470 = vmatprep.subr.bf16.mxu0 0
        %471 = vmatpush1.bf16.msra.mxu0 0
        %472 = vmatprep.subr.bf16.mxu0 0
        %473 = vmatpush1.bf16.msra.mxu0 0
        %474 = vmatprep.subr.bf16.mxu0 0
        %475 = vmatpush1.bf16.msra.mxu0 0
        %476 = vmatprep.subr.bf16.mxu0 0
        %477 = vmatpush1.bf16.msra.mxu0 0
        %478 = vmatprep.subr.bf16.mxu0 0
        %479 = vmatpush1.bf16.msra.mxu0 0
        %480 = vmatprep.subr.bf16.mxu0 0
        %481 = vmatpush1.bf16.msra.mxu0 0
        %482 = vmatprep.subr.bf16.mxu0 0
        %483 = vmatpush1.bf16.msra.mxu0 0
        %484 = vmatprep.mubr.bf16.mxu0 0
        %485 = vmatmul.mubr.bf16.gmra.mrb[0].mxu0 %v450
        %v486 = vpop.f32.mrb[0].mxu0
        %v487 = vadd.f32 %v435, %v486
        %v488 = vpop.f32.mrb[0].mxu0
        %v489 = vpop.f32.mrb[0].mxu0
        %v490 = vpop.f32.mrb[0].mxu0
        %491 = vdwg.mxu0
        %v492 = vmul.f32 %v487, 0.35355338
        %v493 = vpack.c.bf16 %v492, %v492
        %v495 = vrot.slane %v493, 4
        %496 = vrot.lane.b32.xlu0 %v495, 120
        %v497 = vpop.permute.xlu0 %496
        %498 = vrot.lane.b32.xlu0 %v493, 112
        %v499 = vpop.permute.xlu0 %498
        %500 = vrot.lane.b32.xlu0 %v495, 104
        %v501 = vpop.permute.xlu0 %500
        %vm502 = vcmask 1043456
        %v505 = vsel %vm502, %v493, %v497
        %v508 = vsel %vm502, %v499, %v501
        %v509 = vpack.c.bf16 %v487, %v487
        %v511 = vrot.slane %v509, 4
        %512 = vrot.lane.b32.xlu0 %v511, 120
        %v513 = vpop.permute.xlu0 %512
        %514 = vrot.lane.b32.xlu0 %v509, 112
        %v515 = vpop.permute.xlu0 %514
        %516 = vrot.lane.b32.xlu0 %v511, 104
        %v517 = vpop.permute.xlu0 %516
        %v520 = vsel %vm502, %v509, %v513
        %v523 = vsel %vm502, %v515, %v517
        %v524 = vunpack.c.l.bf16 %v384
        %v525 = vunpack.c.l.bf16 %v385
        %v526 = vunpack.c.l.bf16 %v386
        %v527 = vunpack.c.l.bf16 %v387
        %530 = vrot.lane.b32.xlu0 %v520, 96
        %v531 = vpop.permute.xlu0 %530
        %532 = vrot.lane.b32.xlu0 %v523, 96
        %v533 = vpop.permute.xlu0 %532
        %vm534 = vcmask 64512
        %v535 = vsel %vm534, %v505, 0
        %v537 = vsel %vm534, %v508, 0
        %v540 = vsel %vm534, %v531, 0
        %v543 = vsel %vm534, %v533, 0
        %545 = vmatprep.subr.bf16.mxu0 0
        %546 = vmatpush1.bf16.xpose.msra.mxu0 %v540
        %547 = vmatprep.subr.bf16.mxu0 0
        %548 = vmatpush1.bf16.xpose.msra.mxu0 %v543
        %549 = vmatprep.subr.bf16.mxu0 0
        %550 = vmatpush1.bf16.xpose.msra.mxu0 0
        %551 = vmatprep.subr.bf16.mxu0 0
        %552 = vmatpush1.bf16.xpose.msra.mxu0 0
        %553 = vmatprep.subr.bf16.mxu0 0
        %554 = vmatpush1.bf16.xpose.msra.mxu0 0
        %555 = vmatprep.subr.bf16.mxu0 0
        %556 = vmatpush1.bf16.xpose.msra.mxu0 0
        %557 = vmatprep.subr.bf16.mxu0 0
        %558 = vmatpush1.bf16.xpose.msra.mxu0 0
        %559 = vmatprep.subr.bf16.mxu0 0
        %560 = vmatpush1.bf16.xpose.msra.mxu0 0
        %561 = vmatprep.subr.bf16.mxu0 0
        %562 = vmatpush1.bf16.xpose.msra.mxu0 0
        %563 = vmatprep.subr.bf16.mxu0 0
        %564 = vmatpush1.bf16.xpose.msra.mxu0 0
        %565 = vmatprep.subr.bf16.mxu0 0
        %566 = vmatpush1.bf16.xpose.msra.mxu0 0
        %567 = vmatprep.subr.bf16.mxu0 0
        %568 = vmatpush1.bf16.xpose.msra.mxu0 0
        %569 = vmatprep.subr.bf16.mxu0 0
        %570 = vmatpush1.bf16.xpose.msra.mxu0 0
        %571 = vmatprep.subr.bf16.mxu0 0
        %572 = vmatpush1.bf16.xpose.msra.mxu0 0
        %573 = vmatprep.subr.bf16.mxu0 0
        %574 = vmatpush1.bf16.xpose.msra.mxu0 0
        %575 = vmatprep.subr.bf16.mxu0 0
        %576 = vmatpush1.bf16.xpose.msra.mxu0 0
        %577 = vmatprep.mubr.bf16.mxu0 0
        %578 = vmatmul.mubr.bf16.gmra.mrb[0].mxu0 %v535
        %v579 = vpop.f32.mrb[0].mxu0
        %v580 = vadd.f32 %v524, %v579
        %v581 = vpop.f32.mrb[0].mxu0
        %v582 = vpop.f32.mrb[0].mxu0
        %v583 = vadd.f32 %v525, %v582
        %v584 = vpop.f32.mrb[0].mxu0
        %585 = vmatprep.mubr.bf16.mxu0 0
        %586 = vmatmul.mubr.bf16.gmra.mrb[0].mxu0 %v537
        %v587 = vpop.f32.mrb[0].mxu0
        %v588 = vadd.f32 %v526, %v587
        %v589 = vpop.f32.mrb[0].mxu0
        %v590 = vpop.f32.mrb[0].mxu0
        %v591 = vadd.f32 %v527, %v590
        %v592 = vpop.f32.mrb[0].mxu0
        %593 = vdwg.mxu0
        %v594 = vsel %vm448, %v580, -inf
        %595 = vmax.xlane.f32.xlu0 %v594
        %v596 = vpop.xlane.xlu0 %595
        %v597 = vsel %vm448, %v583, -inf
        %598 = vmax.xlane.f32.xlu0 %v597
        %v599 = vpop.xlane.xlu0 %598
        %v600 = vsel %vm448, %v588, -inf
        %601 = vmax.xlane.f32.xlu0 %v600
        %v602 = vpop.xlane.xlu0 %601
        %v603 = vsel %vm448, %v591, -inf
        %604 = vmax.xlane.f32.xlu0 %v603
        %v605 = vpop.xlane.xlu0 %604
        %v606 = vsub.f32 %v580, %v596
        %v607 = vsub.f32 %v583, %v599
        %v608 = vsub.f32 %v588, %v602
        %v609 = vsub.f32 %v591, %v605
        %v610 = vmul.f32 %v606, 1.442695
        %v611 = vpow.pop %v610
        %v612 = vmul.f32 %v607, 1.442695
        %v613 = vpow.pop %v612
        %v614 = vmul.f32 %v608, 1.442695
        %v615 = vpow.pop %v614
        %v616 = vmul.f32 %v609, 1.442695
        %v617 = vpow.pop %v616
        %v618 = vsel %vm448, %v611, 0.0
        %619 = vadd.xlane.f32.xlu0 %v618
        %v620 = vpop.xlane.xlu0 %619
        %v621 = vsel %vm448, %v613, 0.0
        %622 = vadd.xlane.f32.xlu0 %v621
        %v623 = vpop.xlane.xlu0 %622
        %v624 = vsel %vm448, %v615, 0.0
        %625 = vadd.xlane.f32.xlu0 %v624
        %v626 = vpop.xlane.xlu0 %625
        %v627 = vsel %vm448, %v617, 0.0
        %628 = vadd.xlane.f32.xlu0 %v627
        %v629 = vpop.xlane.xlu0 %628
        %v630 = vrcp.pop %v620
        %v631 = vrcp.pop %v623
        %v632 = vrcp.pop %v626
        %v633 = vrcp.pop %v629
        %v634 = vmul.f32 %v611, %v630
        %v635 = vmul.f32 %v613, %v631
        %v636 = vmul.f32 %v615, %v632
        %v637 = vmul.f32 %v617, %v633
        %v638 = vpack.c.bf16 %v635, %v634
        %v639 = vpack.c.bf16 %v637, %v636
        %640 = vrot.lane.b32.xlu0 %v520, 64
        %v641 = vpop.permute.xlu0 %640
        %642 = vrot.lane.b32.xlu0 %v523, 64
        %v643 = vpop.permute.xlu0 %642
        %v647 = vsel %vm448, %v638, 0
        %v650 = vsel %vm448, %v639, 0
        %652 = vmatprep.subr.bf16.mxu0 0
        %653 = vmatpush1.bf16.msra.mxu0 %v641
        %654 = vmatprep.subr.bf16.mxu0 0
        %655 = vmatpush1.bf16.msra.mxu0 %v643
        %656 = vmatprep.subr.bf16.mxu0 0
        %657 = vmatpush1.bf16.msra.mxu0 0
        %658 = vmatprep.subr.bf16.mxu0 0
        %659 = vmatpush1.bf16.msra.mxu0 0
        %660 = vmatprep.subr.bf16.mxu0 0
        %661 = vmatpush1.bf16.msra.mxu0 0
        %662 = vmatprep.subr.bf16.mxu0 0
        %663 = vmatpush1.bf16.msra.mxu0 0
        %664 = vmatprep.subr.bf16.mxu0 0
        %665 = vmatpush1.bf16.msra.mxu0 0
        %666 = vmatprep.subr.bf16.mxu0 0
        %667 = vmatpush1.bf16.msra.mxu0 0
        %668 = vmatprep.subr.bf16.mxu0 0
        %669 = vmatpush1.bf16.msra.mxu0 0
        %670 = vmatprep.subr.bf16.mxu0 0
        %671 = vmatpush1.bf16.msra.mxu0 0
        %672 = vmatprep.subr.bf16.mxu0 0
        %673 = vmatpush1.bf16.msra.mxu0 0
        %674 = vmatprep.subr.bf16.mxu0 0
        %675 = vmatpush1.bf16.msra.mxu0 0
        %676 = vmatprep.subr.bf16.mxu0 0
        %677 = vmatpush1.bf16.msra.mxu0 0
        %678 = vmatprep.subr.bf16.mxu0 0
        %679 = vmatpush1.bf16.msra.mxu0 0
        %680 = vmatprep.subr.bf16.mxu0 0
        %681 = vmatpush1.bf16.msra.mxu0 0
        %682 = vmatprep.subr.bf16.mxu0 0
        %683 = vmatpush1.bf16.msra.mxu0 0
        %684 = vmatprep.mubr.bf16.mxu0 0
        %685 = vmatmul.mubr.bf16.gmra.mrb[0].mxu0 %v647
        %v686 = vpop.f32.mrb[0].mxu0
        %v687 = vadd.f32 0.0, %v686
        %v688 = vpop.f32.mrb[0].mxu0
        %v689 = vpop.f32.mrb[0].mxu0
        %v690 = vadd.f32 0.0, %v689
        %v691 = vpop.f32.mrb[0].mxu0
        %692 = vmatprep.mubr.bf16.mxu0 0
        %693 = vmatmul.mubr.bf16.gmra.mrb[0].mxu0 %v650
        %v694 = vpop.f32.mrb[0].mxu0
        %v695 = vadd.f32 0.0, %v694
        %v696 = vpop.f32.mrb[0].mxu0
        %v697 = vpop.f32.mrb[0].mxu0
        %v698 = vadd.f32 0.0, %v697
        %v699 = vpop.f32.mrb[0].mxu0
        %700 = vdwg.mxu0
        %v701 = vpack.c.bf16 %v690, %v687
        %v702 = vpack.c.bf16 %v698, %v695
        %v704 = vrot.slane %v701, 4
        %705 = vrot.lane.b32.xlu0 %v704, 8
        %v706 = vpop.permute.xlu0 %705
        %708 = vrot.lane.b32.xlu0 %v702, 16
        %v709 = vpop.permute.xlu0 %708
        %v710 = vrot.slane %v702, 4
        %711 = vrot.lane.b32.xlu0 %v710, 24
        %v712 = vpop.permute.xlu0 %711
        %v715 = vsel %vm534, %v701, %v706
        %vm716 = vcmask 130048
        %v718 = vsel %vm716, %v715, %v709
        %vm719 = vcmask 195584
        %v721 = vsel %vm719, %v718, %v712
        %v722 = vlaneseq
        %v723 = vshrl.u32 %v722, 7
        %v724 = vsub.s32 1, %v723
        %v725 = vrot.slane %v392, %v724
        %v730 = vunpack.c.l.b16 %v403
        %v731 = vunpack.c.l.b16 %v404
        %v732 = vunpack.c.l.b16 %v405
        %v733 = vunpack.c.l.b16 %v406
        %v734 = vpack.c.b16 %v731, %v730
        %v735 = vpack.c.b16 %v733, %v732
        %v738 = vsel %vm448, %v721, 0
        %740 = vmatprep.subr.bf16.mxu0 0
        %741 = vmatpush1.bf16.msra.mxu0 %v734
        %742 = vmatprep.subr.bf16.mxu0 0
        %743 = vmatpush1.bf16.msra.mxu0 %v735
        %744 = vmatprep.subr.bf16.mxu0 0
        %745 = vmatpush1.bf16.msra.mxu0 0
        %746 = vmatprep.subr.bf16.mxu0 0
        %747 = vmatpush1.bf16.msra.mxu0 0
        %748 = vmatprep.subr.bf16.mxu0 0
        %749 = vmatpush1.bf16.msra.mxu0 0
        %750 = vmatprep.subr.bf16.mxu0 0
        %751 = vmatpush1.bf16.msra.mxu0 0
        %752 = vmatprep.subr.bf16.mxu0 0
        %753 = vmatpush1.bf16.msra.mxu0 0
        %754 = vmatprep.subr.bf16.mxu0 0
        %755 = vmatpush1.bf16.msra.mxu0 0
        %756 = vmatprep.subr.bf16.mxu0 0
        %757 = vmatpush1.bf16.msra.mxu0 0
        %758 = vmatprep.subr.bf16.mxu0 0
        %759 = vmatpush1.bf16.msra.mxu0 0
        %760 = vmatprep.subr.bf16.mxu0 0
        %761 = vmatpush1.bf16.msra.mxu0 0
        %762 = vmatprep.subr.bf16.mxu0 0
        %763 = vmatpush1.bf16.msra.mxu0 0
        %764 = vmatprep.subr.bf16.mxu0 0
        %765 = vmatpush1.bf16.msra.mxu0 0
        %766 = vmatprep.subr.bf16.mxu0 0
        %767 = vmatpush1.bf16.msra.mxu0 0
        %768 = vmatprep.subr.bf16.mxu0 0
        %769 = vmatpush1.bf16.msra.mxu0 0
        %770 = vmatprep.subr.bf16.mxu0 0
        %771 = vmatpush1.bf16.msra.mxu0 0
        %772 = vmatprep.mubr.bf16.mxu0 0
        %773 = vmatmul.mubr.bf16.gmra.mrb[0].mxu0 %v738
        %v774 = vpop.f32.mrb[0].mxu0
        %v775 = vadd.f32 %v725, %v774
        %v776 = vpop.f32.mrb[0].mxu0
        %v777 = vpop.f32.mrb[0].mxu0
        %v778 = vpop.f32.mrb[0].mxu0
        %779 = vdwg.mxu0
        %v780 = vadd.f32 %v382, %v775
        %v781 = vsel %vm448, %v780, 0.0
        %782 = vadd.xlane.f32.xlu0 %v781
        %v783 = vpop.xlane.xlu0 %782
        %v784 = vrcp.pop 32.0
        %v785 = vmul.f32 %v783, %v784
        %v786 = vsub.f32 %v780, %v785
        %v787 = vmul.f32 %v786, %v786
        %v788 = vsel %vm448, %v787, 0.0
        %789 = vadd.xlane.f32.xlu0 %v788
        %v790 = vpop.xlane.xlu0 %789
        %v791 = vmul.f32 %v790, %v784
        %v792 = vadd.f32 %v791, 1e-05
        %v793 = vrsqrt.pop %v792
        %v794 = vmul.f32 %v786, %v793
        %v795 = vlaneseq
        %v796 = vshrl.u32 %v795, 7
        %v797 = vsub.s32 6, %v796
        %v798 = vrot.slane %v392, %v797
        %v799 = vmul.f32 %v794, %v798
        %v800 = vlaneseq
        %v801 = vshrl.u32 %v800, 7
        %v802 = vsub.s32 7, %v801
        %v803 = vrot.slane %v392, %v802
        %v804 = vadd.f32 %v799, %v803
        %v805 = vpack.c.bf16 %v804, %v804
        %v806 = vlaneseq
        %v807 = vshrl.u32 %v806, 7
        %v808 = vsub.s32 2, %v807
        %v809 = vrot.slane %v392, %v808
        %v814 = vunpack.c.l.b16 %v399
        %v815 = vunpack.c.l.b16 %v400
        %v816 = vunpack.c.l.b16 %v401
        %v817 = vunpack.c.l.b16 %v402
        %v818 = vpack.c.b16 %v815, %v814
        %v819 = vpack.c.b16 %v817, %v816
        %v823 = vsel %vm448, %v805, 0
        %825 = vmatprep.subr.bf16.mxu0 0
        %826 = vmatpush1.bf16.msra.mxu0 %v818
        %827 = vmatprep.subr.bf16.mxu0 0
        %828 = vmatpush1.bf16.msra.mxu0 %v819
        %829 = vmatprep.subr.bf16.mxu0 0
        %830 = vmatpush1.bf16.msra.mxu0 0
        %831 = vmatprep.subr.bf16.mxu0 0
        %832 = vmatpush1.bf16.msra.mxu0 0
        %833 = vmatprep.subr.bf16.mxu0 0
        %834 = vmatpush1.bf16.msra.mxu0 0
        %835 = vmatprep.subr.bf16.mxu0 0
        %836 = vmatpush1.bf16.msra.mxu0 0
        %837 = vmatprep.subr.bf16.mxu0 0
        %838 = vmatpush1.bf16.msra.mxu0 0
        %839 = vmatprep.subr.bf16.mxu0 0
        %840 = vmatpush1.bf16.msra.mxu0 0
        %841 = vmatprep.subr.bf16.mxu0 0
        %842 = vmatpush1.bf16.msra.mxu0 0
        %843 = vmatprep.subr.bf16.mxu0 0
        %844 = vmatpush1.bf16.msra.mxu0 0
        %845 = vmatprep.subr.bf16.mxu0 0
        %846 = vmatpush1.bf16.msra.mxu0 0
        %847 = vmatprep.subr.bf16.mxu0 0
        %848 = vmatpush1.bf16.msra.mxu0 0
        %849 = vmatprep.subr.bf16.mxu0 0
        %850 = vmatpush1.bf16.msra.mxu0 0
        %851 = vmatprep.subr.bf16.mxu0 0
        %852 = vmatpush1.bf16.msra.mxu0 0
        %853 = vmatprep.subr.bf16.mxu0 0
        %854 = vmatpush1.bf16.msra.mxu0 0
        %855 = vmatprep.subr.bf16.mxu0 0
        %856 = vmatpush1.bf16.msra.mxu0 0
        %857 = vmatprep.mubr.bf16.mxu0 0
        %858 = vmatmul.mubr.bf16.gmra.mrb[0].mxu0 %v823
        %v859 = vpop.f32.mrb[0].mxu0
        %v860 = vadd.f32 %v809, %v859
        %v861 = vpop.f32.mrb[0].mxu0
        %v862 = vpop.f32.mrb[0].mxu0
        %v863 = vpop.f32.mrb[0].mxu0
        %864 = vdwg.mxu0
        %865 = vrot.lane.b32.xlu0 %v818, 96
        %v866 = vpop.permute.xlu0 %865
        %867 = vrot.lane.b32.xlu0 %v819, 96
        %v868 = vpop.permute.xlu0 %867
        %872 = vrot.lane.b32.xlu0 %v809, 96
        %v873 = vpop.permute.xlu0 %872
        %875 = vmatprep.subr.bf16.mxu0 0
        %876 = vmatpush1.bf16.msra.mxu0 %v866
        %877 = vmatprep.subr.bf16.mxu0 0
        %878 = vmatpush1.bf16.msra.mxu0 %v868
        %879 = vmatprep.subr.bf16.mxu0 0
        %880 = vmatpush1.bf16.msra.mxu0 0
        %881 = vmatprep.subr.bf16.mxu0 0
        %882 = vmatpush1.bf16.msra.mxu0 0
        %883 = vmatprep.subr.bf16.mxu0 0
        %884 = vmatpush1.bf16.msra.mxu0 0
        %885 = vmatprep.subr.bf16.mxu0 0
        %886 = vmatpush1.bf16.msra.mxu0 0
        %887 = vmatprep.subr.bf16.mxu0 0
        %888 = vmatpush1.bf16.msra.mxu0 0
        %889 = vmatprep.subr.bf16.mxu0 0
        %890 = vmatpush1.bf16.msra.mxu0 0
        %891 = vmatprep.subr.bf16.mxu0 0
        %892 = vmatpush1.bf16.msra.mxu0 0
        %893 = vmatprep.subr.bf16.mxu0 0
        %894 = vmatpush1.bf16.msra.mxu0 0
        %895 = vmatprep.subr.bf16.mxu0 0
        %896 = vmatpush1.bf16.msra.mxu0 0
        %897 = vmatprep.subr.bf16.mxu0 0
        %898 = vmatpush1.bf16.msra.mxu0 0
        %899 = vmatprep.subr.bf16.mxu0 0
        %900 = vmatpush1.bf16.msra.mxu0 0
        %901 = vmatprep.subr.bf16.mxu0 0
        %902 = vmatpush1.bf16.msra.mxu0 0
        %903 = vmatprep.subr.bf16.mxu0 0
        %904 = vmatpush1.bf16.msra.mxu0 0
        %905 = vmatprep.subr.bf16.mxu0 0
        %906 = vmatpush1.bf16.msra.mxu0 0
        %907 = vmatprep.mubr.bf16.mxu0 0
        %908 = vmatmul.mubr.bf16.gmra.mrb[0].mxu0 %v450
        %v909 = vpop.f32.mrb[0].mxu0
        %v910 = vadd.f32 %v873, %v909
        %v911 = vpop.f32.mrb[0].mxu0
        %v912 = vpop.f32.mrb[0].mxu0
        %v913 = vpop.f32.mrb[0].mxu0
        %914 = vdwg.mxu0
        %v915 = vmul.f32 %v860, 0.35355338
        %v916 = vpack.c.bf16 %v915, %v915
        %v918 = vrot.slane %v916, 4
        %919 = vrot.lane.b32.xlu0 %v918, 120
        %v920 = vpop.permute.xlu0 %919
        %921 = vrot.lane.b32.xlu0 %v916, 112
        %v922 = vpop.permute.xlu0 %921
        %923 = vrot.lane.b32.xlu0 %v918, 104
        %v924 = vpop.permute.xlu0 %923
        %v927 = vsel %vm502, %v916, %v920
        %v930 = vsel %vm502, %v922, %v924
        %v931 = vpack.c.bf16 %v910, %v910
        %v933 = vrot.slane %v931, 4
        %934 = vrot.lane.b32.xlu0 %v933, 120
        %v935 = vpop.permute.xlu0 %934
        %936 = vrot.lane.b32.xlu0 %v931, 112
        %v937 = vpop.permute.xlu0 %936
        %938 = vrot.lane.b32.xlu0 %v933, 104
        %v939 = vpop.permute.xlu0 %938
        %v942 = vsel %vm502, %v931, %v935
        %v945 = vsel %vm502, %v937, %v939
        %v946 = vunpack.c.l.bf16 %v388
        %v947 = vunpack.c.l.bf16 %v389
        %v948 = vunpack.c.l.bf16 %v390
        %v949 = vunpack.c.l.bf16 %v391
        %v950 = vsel %vm534, %v927, 0
        %v952 = vsel %vm534, %v930, 0
        %v954 = vsel %vm534, %v942, 0
        %v956 = vsel %vm534, %v945, 0
        %958 = vmatprep.subr.bf16.mxu0 0
        %959 = vmatpush1.bf16.xpose.msra.mxu0 %v954
        %960 = vmatprep.subr.bf16.mxu0 0
        %961 = vmatpush1.bf16.xpose.msra.mxu0 %v956
        %962 = vmatprep.subr.bf16.mxu0 0
        %963 = vmatpush1.bf16.xpose.msra.mxu0 0
        %964 = vmatprep.subr.bf16.mxu0 0
        %965 = vmatpush1.bf16.xpose.msra.mxu0 0
        %966 = vmatprep.subr.bf16.mxu0 0
        %967 = vmatpush1.bf16.xpose.msra.mxu0 0
        %968 = vmatprep.subr.bf16.mxu0 0
        %969 = vmatpush1.bf16.xpose.msra.mxu0 0
        %970 = vmatprep.subr.bf16.mxu0 0
        %971 = vmatpush1.bf16.xpose.msra.mxu0 0
        %972 = vmatprep.subr.bf16.mxu0 0
        %973 = vmatpush1.bf16.xpose.msra.mxu0 0
        %974 = vmatprep.subr.bf16.mxu0 0
        %975 = vmatpush1.bf16.xpose.msra.mxu0 0
        %976 = vmatprep.subr.bf16.mxu0 0
        %977 = vmatpush1.bf16.xpose.msra.mxu0 0
        %978 = vmatprep.subr.bf16.mxu0 0
        %979 = vmatpush1.bf16.xpose.msra.mxu0 0
        %980 = vmatprep.subr.bf16.mxu0 0
        %981 = vmatpush1.bf16.xpose.msra.mxu0 0
        %982 = vmatprep.subr.bf16.mxu0 0
        %983 = vmatpush1.bf16.xpose.msra.mxu0 0
        %984 = vmatprep.subr.bf16.mxu0 0
        %985 = vmatpush1.bf16.xpose.msra.mxu0 0
        %986 = vmatprep.subr.bf16.mxu0 0
        %987 = vmatpush1.bf16.xpose.msra.mxu0 0
        %988 = vmatprep.subr.bf16.mxu0 0
        %989 = vmatpush1.bf16.xpose.msra.mxu0 0
        %990 = vmatprep.mubr.bf16.mxu0 0
        %991 = vmatmul.mubr.bf16.gmra.mrb[0].mxu0 %v950
        %v992 = vpop.f32.mrb[0].mxu0
        %v993 = vadd.f32 %v946, %v992
        %v994 = vpop.f32.mrb[0].mxu0
        %v995 = vpop.f32.mrb[0].mxu0
        %v996 = vadd.f32 %v947, %v995
        %v997 = vpop.f32.mrb[0].mxu0
        %998 = vmatprep.mubr.bf16.mxu0 0
        %999 = vmatmul.mubr.bf16.gmra.mrb[0].mxu0 %v952
        %v1000 = vpop.f32.mrb[0].mxu0
        %v1001 = vadd.f32 %v948, %v1000
        %v1002 = vpop.f32.mrb[0].mxu0
        %v1003 = vpop.f32.mrb[0].mxu0
        %v1004 = vadd.f32 %v949, %v1003
        %v1005 = vpop.f32.mrb[0].mxu0
        %1006 = vdwg.mxu0
        %v1007 = vsel %vm448, %v993, -inf
        %1008 = vmax.xlane.f32.xlu0 %v1007
        %v1009 = vpop.xlane.xlu0 %1008
        %v1010 = vsel %vm448, %v996, -inf
        %1011 = vmax.xlane.f32.xlu0 %v1010
        %v1012 = vpop.xlane.xlu0 %1011
        %v1013 = vsel %vm448, %v1001, -inf
        %1014 = vmax.xlane.f32.xlu0 %v1013
        %v1015 = vpop.xlane.xlu0 %1014
        %v1016 = vsel %vm448, %v1004, -inf
        %1017 = vmax.xlane.f32.xlu0 %v1016
        %v1018 = vpop.xlane.xlu0 %1017
        %v1019 = vsub.f32 %v993, %v1009
        %v1020 = vsub.f32 %v996, %v1012
        %v1021 = vsub.f32 %v1001, %v1015
        %v1022 = vsub.f32 %v1004, %v1018
        %v1023 = vmul.f32 %v1019, 1.442695
        %v1024 = vpow.pop %v1023
        %v1025 = vmul.f32 %v1020, 1.442695
        %v1026 = vpow.pop %v1025
        %v1027 = vmul.f32 %v1021, 1.442695
        %v1028 = vpow.pop %v1027
        %v1029 = vmul.f32 %v1022, 1.442695
        %v1030 = vpow.pop %v1029
        %v1031 = vsel %vm448, %v1024, 0.0
        %1032 = vadd.xlane.f32.xlu0 %v1031
        %v1033 = vpop.xlane.xlu0 %1032
        %v1034 = vsel %vm448, %v1026, 0.0
        %1035 = vadd.xlane.f32.xlu0 %v1034
        %v1036 = vpop.xlane.xlu0 %1035
        %v1037 = vsel %vm448, %v1028, 0.0
        %1038 = vadd.xlane.f32.xlu0 %v1037
        %v1039 = vpop.xlane.xlu0 %1038
        %v1040 = vsel %vm448, %v1030, 0.0
        %1041 = vadd.xlane.f32.xlu0 %v1040
        %v1042 = vpop.xlane.xlu0 %1041
        %v1043 = vrcp.pop %v1033
        %v1044 = vrcp.pop %v1036
        %v1045 = vrcp.pop %v1039
        %v1046 = vrcp.pop %v1042
        %v1047 = vmul.f32 %v1024, %v1043
        %v1048 = vmul.f32 %v1026, %v1044
        %v1049 = vmul.f32 %v1028, %v1045
        %v1050 = vmul.f32 %v1030, %v1046
        %v1051 = vpack.c.bf16 %v1048, %v1047
        %v1052 = vpack.c.bf16 %v1050, %v1049
        %1055 = vrot.lane.b32.xlu0 %v942, 96
        %v1056 = vpop.permute.xlu0 %1055
        %1057 = vrot.lane.b32.xlu0 %v945, 96
        %v1058 = vpop.permute.xlu0 %1057
        %v1062 = vsel %vm448, %v1051, 0
        %v1065 = vsel %vm448, %v1052, 0
        %1067 = vmatprep.subr.bf16.mxu0 0
        %1068 = vmatpush1.bf16.msra.mxu0 %v1056
        %1069 = vmatprep.subr.bf16.mxu0 0
        %1070 = vmatpush1.bf16.msra.mxu0 %v1058
        %1071 = vmatprep.subr.bf16.mxu0 0
        %1072 = vmatpush1.bf16.msra.mxu0 0
        %1073 = vmatprep.subr.bf16.mxu0 0
        %1074 = vmatpush1.bf16.msra.mxu0 0
        %1075 = vmatprep.subr.bf16.mxu0 0
        %1076 = vmatpush1.bf16.msra.mxu0 0
        %1077 = vmatprep.subr.bf16.mxu0 0
        %1078 = vmatpush1.bf16.msra.mxu0 0
        %1079 = vmatprep.subr.bf16.mxu0 0
        %1080 = vmatpush1.bf16.msra.mxu0 0
        %1081 = vmatprep.subr.bf16.mxu0 0
        %1082 = vmatpush1.bf16.msra.mxu0 0
        %1083 = vmatprep.subr.bf16.mxu0 0
        %1084 = vmatpush1.bf16.msra.mxu0 0
        %1085 = vmatprep.subr.bf16.mxu0 0
        %1086 = vmatpush1.bf16.msra.mxu0 0
        %1087 = vmatprep.subr.bf16.mxu0 0
        %1088 = vmatpush1.bf16.msra.mxu0 0
        %1089 = vmatprep.subr.bf16.mxu0 0
        %1090 = vmatpush1.bf16.msra.mxu0 0
        %1091 = vmatprep.subr.bf16.mxu0 0
        %1092 = vmatpush1.bf16.msra.mxu0 0
        %1093 = vmatprep.subr.bf16.mxu0 0
        %1094 = vmatpush1.bf16.msra.mxu0 0
        %1095 = vmatprep.subr.bf16.mxu0 0
        %1096 = vmatpush1.bf16.msra.mxu0 0
        %1097 = vmatprep.subr.bf16.mxu0 0
        %1098 = vmatpush1.bf16.msra.mxu0 0
        %1099 = vmatprep.mubr.bf16.mxu0 0
        %1100 = vmatmul.mubr.bf16.gmra.mrb[0].mxu0 %v1062
        %v1101 = vpop.f32.mrb[0].mxu0
        %v1102 = vadd.f32 0.0, %v1101
        %v1103 = vpop.f32.mrb[0].mxu0
        %v1104 = vpop.f32.mrb[0].mxu0
        %v1105 = vadd.f32 0.0, %v1104
        %v1106 = vpop.f32.mrb[0].mxu0
        %1107 = vmatprep.mubr.bf16.mxu0 0
        %1108 = vmatmul.mubr.bf16.gmra.mrb[0].mxu0 %v1065
        %v1109 = vpop.f32.mrb[0].mxu0
        %v1110 = vadd.f32 0.0, %v1109
        %v1111 = vpop.f32.mrb[0].mxu0
        %v1112 = vpop.f32.mrb[0].mxu0
        %v1113 = vadd.f32 0.0, %v1112
        %v1114 = vpop.f32.mrb[0].mxu0
        %1115 = vdwg.mxu0
        %v1116 = vpack.c.bf16 %v1105, %v1102
        %v1117 = vpack.c.bf16 %v1113, %v1110
        %v1119 = vrot.slane %v1116, 4
        %1120 = vrot.lane.b32.xlu0 %v1119, 8
        %v1121 = vpop.permute.xlu0 %1120
        %1123 = vrot.lane.b32.xlu0 %v1117, 16
        %v1124 = vpop.permute.xlu0 %1123
        %v1125 = vrot.slane %v1117, 4
        %1126 = vrot.lane.b32.xlu0 %v1125, 24
        %v1127 = vpop.permute.xlu0 %1126
        %v1130 = vsel %vm534, %v1116, %v1121
        %v1132 = vsel %vm716, %v1130, %v1124
        %v1134 = vsel %vm719, %v1132, %v1127
        %v1135 = vlaneseq
        %v1136 = vshrl.u32 %v1135, 7
        %v1137 = vsub.s32 3, %v1136
        %v1138 = vrot.slane %v392, %v1137
        %v1143 = vunpack.c.l.b16 %v408
        %v1144 = vunpack.c.l.b16 %v409
        %v1145 = vunpack.c.l.b16 %v410
        %v1146 = vunpack.c.l.b16 %v411
        %v1147 = vpack.c.b16 %v1144, %v1143
        %v1148 = vpack.c.b16 %v1146, %v1145
        %v1151 = vsel %vm448, %v1134, 0
        %1153 = vmatprep.subr.bf16.mxu0 0
        %1154 = vmatpush1.bf16.msra.mxu0 %v1147
        %1155 = vmatprep.subr.bf16.mxu0 0
        %1156 = vmatpush1.bf16.msra.mxu0 %v1148
        %1157 = vmatprep.subr.bf16.mxu0 0
        %1158 = vmatpush1.bf16.msra.mxu0 0
        %1159 = vmatprep.subr.bf16.mxu0 0
        %1160 = vmatpush1.bf16.msra.mxu0 0
        %1161 = vmatprep.subr.bf16.mxu0 0
        %1162 = vmatpush1.bf16.msra.mxu0 0
        %1163 = vmatprep.subr.bf16.mxu0 0
        %1164 = vmatpush1.bf16.msra.mxu0 0
        %1165 = vmatprep.subr.bf16.mxu0 0
        %1166 = vmatpush1.bf16.msra.mxu0 0
        %1167 = vmatprep.subr.bf16.mxu0 0
        %1168 = vmatpush1.bf16.msra.mxu0 0
        %1169 = vmatprep.subr.bf16.mxu0 0
        %1170 = vmatpush1.bf16.msra.mxu0 0
        %1171 = vmatprep.subr.bf16.mxu0 0
        %1172 = vmatpush1.bf16.msra.mxu0 0
        %1173 = vmatprep.subr.bf16.mxu0 0
        %1174 = vmatpush1.bf16.msra.mxu0 0
        %1175 = vmatprep.subr.bf16.mxu0 0
        %1176 = vmatpush1.bf16.msra.mxu0 0
        %1177 = vmatprep.subr.bf16.mxu0 0
        %1178 = vmatpush1.bf16.msra.mxu0 0
        %1179 = vmatprep.subr.bf16.mxu0 0
        %1180 = vmatpush1.bf16.msra.mxu0 0
        %1181 = vmatprep.subr.bf16.mxu0 0
        %1182 = vmatpush1.bf16.msra.mxu0 0
        %1183 = vmatprep.subr.bf16.mxu0 0
        %1184 = vmatpush1.bf16.msra.mxu0 0
        %1185 = vmatprep.mubr.bf16.mxu0 0
        %1186 = vmatmul.mubr.bf16.gmra.mrb[0].mxu0 %v1151
        %v1187 = vpop.f32.mrb[0].mxu0
        %v1188 = vadd.f32 %v1138, %v1187
        %v1189 = vpop.f32.mrb[0].mxu0
        %v1190 = vpop.f32.mrb[0].mxu0
        %v1191 = vpop.f32.mrb[0].mxu0
        %1192 = vdwg.mxu0
        %v1193 = vadd.f32 %v804, %v1188
        %v1194 = vsel %vm448, %v1193, 0.0
        %1195 = vadd.xlane.f32.xlu0 %v1194
        %v1196 = vpop.xlane.xlu0 %1195
        %v1197 = vmul.f32 %v1196, %v784
        %v1198 = vsub.f32 %v1193, %v1197
        %v1199 = vmul.f32 %v1198, %v1198
        %v1200 = vsel %vm448, %v1199, 0.0
        %1201 = vadd.xlane.f32.xlu0 %v1200
        %v1202 = vpop.xlane.xlu0 %1201
        %v1203 = vmul.f32 %v1202, %v784
        %v1204 = vadd.f32 %v1203, 1e-05
        %v1205 = vrsqrt.pop %v1204
        %v1206 = vmul.f32 %v1198, %v1205
        %v1207 = vlaneseq
        %v1208 = vshrl.u32 %v1207, 7
        %v1209 = vsub.s32 0, %v1208
        %v1210 = vrot.slane %v393, %v1209
        %v1211 = vmul.f32 %v1206, %v1210
        %v1212 = vlaneseq
        %v1213 = vshrl.u32 %v1212, 7
        %v1214 = vsub.s32 1, %v1213
        %v1215 = vrot.slane %v393, %v1214
        %v1216 = vadd.f32 %v1211, %v1215
        %v1217 = vpack.c.bf16 %v1216, %v1216
        %v1218 = vlaneseq
        %v1219 = vshrl.u32 %v1218, 7
        %v1220 = vsub.s32 4, %v1219
        %v1221 = vrot.slane %v392, %v1220
        %v1226 = vunpack.c.l.b16 %v412
        %v1227 = vunpack.c.l.b16 %v413
        %v1228 = vunpack.c.l.b16 %v414
        %v1229 = vunpack.c.l.b16 %v415
        %v1230 = vpack.c.b16 %v1227, %v1226
        %v1231 = vpack.c.b16 %v1229, %v1228
        %v1235 = vsel %vm448, %v1217, 0
        %1237 = vmatprep.subr.bf16.mxu0 0
        %1238 = vmatpush1.bf16.msra.mxu0 %v1230
        %1239 = vmatprep.subr.bf16.mxu0 0
        %1240 = vmatpush1.bf16.msra.mxu0 %v1231
        %1241 = vmatprep.subr.bf16.mxu0 0
        %1242 = vmatpush1.bf16.msra.mxu0 0
        %1243 = vmatprep.subr.bf16.mxu0 0
        %1244 = vmatpush1.bf16.msra.mxu0 0
        %1245 = vmatprep.subr.bf16.mxu0 0
        %1246 = vmatpush1.bf16.msra.mxu0 0
        %1247 = vmatprep.subr.bf16.mxu0 0
        %1248 = vmatpush1.bf16.msra.mxu0 0
        %1249 = vmatprep.subr.bf16.mxu0 0
        %1250 = vmatpush1.bf16.msra.mxu0 0
        %1251 = vmatprep.subr.bf16.mxu0 0
        %1252 = vmatpush1.bf16.msra.mxu0 0
        %1253 = vmatprep.subr.bf16.mxu0 0
        %1254 = vmatpush1.bf16.msra.mxu0 0
        %1255 = vmatprep.subr.bf16.mxu0 0
        %1256 = vmatpush1.bf16.msra.mxu0 0
        %1257 = vmatprep.subr.bf16.mxu0 0
        %1258 = vmatpush1.bf16.msra.mxu0 0
        %1259 = vmatprep.subr.bf16.mxu0 0
        %1260 = vmatpush1.bf16.msra.mxu0 0
        %1261 = vmatprep.subr.bf16.mxu0 0
        %1262 = vmatpush1.bf16.msra.mxu0 0
        %1263 = vmatprep.subr.bf16.mxu0 0
        %1264 = vmatpush1.bf16.msra.mxu0 0
        %1265 = vmatprep.subr.bf16.mxu0 0
        %1266 = vmatpush1.bf16.msra.mxu0 0
        %1267 = vmatprep.subr.bf16.mxu0 0
        %1268 = vmatpush1.bf16.msra.mxu0 0
        %1269 = vmatprep.mubr.bf16.mxu0 0
        %1270 = vmatmul.mubr.bf16.gmra.mrb[0].mxu0 %v1235
        %v1271 = vpop.f32.mrb[0].mxu0
        %v1272 = vadd.f32 %v1221, %v1271
        %v1273 = vpop.f32.mrb[0].mxu0
        %v1274 = vpop.f32.mrb[0].mxu0
        %v1275 = vpop.f32.mrb[0].mxu0
        %1276 = vdwg.mxu0
        %v1277 = vmax.f32 %v1272, 0.0
        %v1278 = vpack.c.bf16 %v1277, %v1277
        %v1279 = vlaneseq
        %v1280 = vshrl.u32 %v1279, 7
        %v1281 = vsub.s32 5, %v1280
        %v1282 = vrot.slane %v392, %v1281
        %v1299 = vunpack.c.l.b16 %v416
        %v1300 = vunpack.c.l.b16 %v417
        %v1301 = vunpack.c.l.b16 %v418
        %v1302 = vunpack.c.l.b16 %v419
        %v1303 = vunpack.c.l.b16 %v420
        %v1304 = vunpack.c.l.b16 %v421
        %v1305 = vunpack.c.l.b16 %v422
        %v1306 = vunpack.c.l.b16 %v423
        %v1307 = vunpack.c.l.b16 %v424
        %v1308 = vunpack.c.l.b16 %v425
        %v1309 = vunpack.c.l.b16 %v426
        %v1310 = vunpack.c.l.b16 %v427
        %v1311 = vunpack.c.l.b16 %v428
        %v1312 = vunpack.c.l.b16 %v429
        %v1313 = vunpack.c.l.b16 %v430
        %v1314 = vunpack.c.l.b16 %v431
        %v1315 = vpack.c.b16 %v1300, %v1299
        %v1316 = vpack.c.b16 %v1302, %v1301
        %v1317 = vpack.c.b16 %v1304, %v1303
        %v1318 = vpack.c.b16 %v1306, %v1305
        %v1319 = vpack.c.b16 %v1308, %v1307
        %v1320 = vpack.c.b16 %v1310, %v1309
        %v1321 = vpack.c.b16 %v1312, %v1311
        %v1322 = vpack.c.b16 %v1314, %v1313
        %1331 = vmatprep.subr.bf16.mxu0 0
        %1332 = vmatpush1.bf16.msra.mxu0 %v1315
        %1333 = vmatprep.subr.bf16.mxu0 0
        %1334 = vmatpush1.bf16.msra.mxu0 %v1316
        %1335 = vmatprep.subr.bf16.mxu0 0
        %1336 = vmatpush1.bf16.msra.mxu0 %v1317
        %1337 = vmatprep.subr.bf16.mxu0 0
        %1338 = vmatpush1.bf16.msra.mxu0 %v1318
        %1339 = vmatprep.subr.bf16.mxu0 0
        %1340 = vmatpush1.bf16.msra.mxu0 %v1319
        %1341 = vmatprep.subr.bf16.mxu0 0
        %1342 = vmatpush1.bf16.msra.mxu0 %v1320
        %1343 = vmatprep.subr.bf16.mxu0 0
        %1344 = vmatpush1.bf16.msra.mxu0 %v1321
        %1345 = vmatprep.subr.bf16.mxu0 0
        %1346 = vmatpush1.bf16.msra.mxu0 %v1322
        %1347 = vmatprep.subr.bf16.mxu0 0
        %1348 = vmatpush1.bf16.msra.mxu0 0
        %1349 = vmatprep.subr.bf16.mxu0 0
        %1350 = vmatpush1.bf16.msra.mxu0 0
        %1351 = vmatprep.subr.bf16.mxu0 0
        %1352 = vmatpush1.bf16.msra.mxu0 0
        %1353 = vmatprep.subr.bf16.mxu0 0
        %1354 = vmatpush1.bf16.msra.mxu0 0
        %1355 = vmatprep.subr.bf16.mxu0 0
        %1356 = vmatpush1.bf16.msra.mxu0 0
        %1357 = vmatprep.subr.bf16.mxu0 0
        %1358 = vmatpush1.bf16.msra.mxu0 0
        %1359 = vmatprep.subr.bf16.mxu0 0
        %1360 = vmatpush1.bf16.msra.mxu0 0
        %1361 = vmatprep.subr.bf16.mxu0 0
        %1362 = vmatpush1.bf16.msra.mxu0 0
        %1363 = vmatprep.mubr.bf16.mxu0 0
        %1364 = vmatmul.mubr.bf16.gmra.mrb[0].mxu0 %v1278
        %v1365 = vpop.f32.mrb[0].mxu0
        %v1366 = vadd.f32 %v1282, %v1365
        %v1367 = vpop.f32.mrb[0].mxu0
        %v1368 = vpop.f32.mrb[0].mxu0
        %v1369 = vpop.f32.mrb[0].mxu0
        %1370 = vdwg.mxu0
        %v1371 = vadd.f32 %v1216, %v1366
        %v1372 = vsel %vm448, %v1371, 0.0
        %1373 = vadd.xlane.f32.xlu0 %v1372
        %v1374 = vpop.xlane.xlu0 %1373
        %v1375 = vmul.f32 %v1374, %v784
        %v1376 = vsub.f32 %v1371, %v1375
        %v1377 = vmul.f32 %v1376, %v1376
        %v1378 = vsel %vm448, %v1377, 0.0
        %1379 = vadd.xlane.f32.xlu0 %v1378
        %v1380 = vpop.xlane.xlu0 %1379
        %v1381 = vmul.f32 %v1380, %v784
        %v1382 = vadd.f32 %v1381, 1e-05
        %v1383 = vrsqrt.pop %v1382
        %v1384 = vmul.f32 %v1376, %v1383
        %v1385 = vlaneseq
        %v1386 = vshrl.u32 %v1385, 7
        %v1387 = vsub.s32 2, %v1386
        %v1388 = vrot.slane %v393, %v1387
        %v1389 = vmul.f32 %v1384, %v1388
        %v1390 = vlaneseq
        %v1391 = vshrl.u32 %v1390, 7
        %v1392 = vsub.s32 3, %v1391
        %v1393 = vrot.slane %v393, %v1392
        %v1394 = vadd.f32 %v1389, %v1393
        %s1395 = scalar_lea.vmem %s7, 16
        %v1396 = vld [vmem:[%s1395] sm:$0xff]
        %v1397 = vld [vmem:[%s1395 + $0x8] sm:$0xf]
        %s1398 = scalar_lea.vmem %s3, 32
        %v1399 = vld [vmem:[%s1398] sm:$0xf]
        %v1400 = vld [vmem:[%s1398 + $0x4] sm:$0xf]
        %v1401 = vld [vmem:[%s1398 + $0x8] sm:$0xf]
        %v1402 = vld [vmem:[%s1398 + $0xc] sm:$0xf]
        %s1403 = scalar_lea.vmem %s3, 48
        %v1404 = vld [vmem:[%s1403] sm:$0xf]
        %v1405 = vld [vmem:[%s1403 + $0x4] sm:$0xf]
        %v1406 = vld [vmem:[%s1403 + $0x8] sm:$0xf]
        %v1407 = vld [vmem:[%s1403 + $0xc] sm:$0xf]
        %s1408 = scalar_lea.vmem %s4, 32
        %v1409 = vld [vmem:[%s1408] sm:$0xf]
        %v1410 = vld [vmem:[%s1408 + $0x4] sm:$0xf]
        %v1411 = vld [vmem:[%s1408 + $0x8] sm:$0xf]
        %v1412 = vld [vmem:[%s1408 + $0xc] sm:$0xf]
        %s1413 = scalar_lea.vmem %s4, 48
        %v1414 = vld [vmem:[%s1413] sm:$0xf]
        %v1415 = vld [vmem:[%s1413 + $0x4] sm:$0xf]
        %v1416 = vld [vmem:[%s1413 + $0x8] sm:$0xf]
        %v1417 = vld [vmem:[%s1413 + $0xc] sm:$0xf]
        %s1418 = scalar_lea.vmem %s5, 16
        %v1419 = vld [vmem:[%s1418] sm:$0xf]
        %v1420 = vld [vmem:[%s1418 + $0x4] sm:$0xf]
        %v1421 = vld [vmem:[%s1418 + $0x8] sm:$0xf]
        %v1422 = vld [vmem:[%s1418 + $0xc] sm:$0xf]
        %s1423 = scalar_lea.vmem %s6, 64
        %v1424 = vld [vmem:[%s1423] sm:$0xf]
        %v1425 = vld [vmem:[%s1423 + $0x4] sm:$0xf]
        %v1426 = vld [vmem:[%s1423 + $0x8] sm:$0xf]
        %v1427 = vld [vmem:[%s1423 + $0xc] sm:$0xf]
        %v1428 = vld [vmem:[%s1423 + $0x10] sm:$0xf]
        %v1429 = vld [vmem:[%s1423 + $0x14] sm:$0xf]
        %v1430 = vld [vmem:[%s1423 + $0x18] sm:$0xf]
        %v1431 = vld [vmem:[%s1423 + $0x1c] sm:$0xf]
        %v1432 = vld [vmem:[%s1423 + $0x20] sm:$0xf]
        %v1433 = vld [vmem:[%s1423 + $0x24] sm:$0xf]
        %v1434 = vld [vmem:[%s1423 + $0x28] sm:$0xf]
        %v1435 = vld [vmem:[%s1423 + $0x2c] sm:$0xf]
        %v1436 = vld [vmem:[%s1423 + $0x30] sm:$0xf]
        %v1437 = vld [vmem:[%s1423 + $0x34] sm:$0xf]
        %v1438 = vld [vmem:[%s1423 + $0x38] sm:$0xf]
        %v1439 = vld [vmem:[%s1423 + $0x3c] sm:$0xf]
        %v1440 = vpack.c.bf16 %v1394, %v1394
        %v1441 = vlaneseq
        %v1442 = vshrl.u32 %v1441, 7
        %v1443 = vsub.s32 0, %v1442
        %v1444 = vrot.slane %v1396, %v1443
        %v1449 = vunpack.c.l.b16 %v1399
        %v1450 = vunpack.c.l.b16 %v1400
        %v1451 = vunpack.c.l.b16 %v1401
        %v1452 = vunpack.c.l.b16 %v1402
        %v1453 = vpack.c.b16 %v1450, %v1449
        %v1454 = vpack.c.b16 %v1452, %v1451
        %v1458 = vsel %vm448, %v1440, 0
        %1460 = vmatprep.subr.bf16.mxu0 0
        %1461 = vmatpush1.bf16.msra.mxu0 %v1453
        %1462 = vmatprep.subr.bf16.mxu0 0
        %1463 = vmatpush1.bf16.msra.mxu0 %v1454
        %1464 = vmatprep.subr.bf16.mxu0 0
        %1465 = vmatpush1.bf16.msra.mxu0 0
        %1466 = vmatprep.subr.bf16.mxu0 0
        %1467 = vmatpush1.bf16.msra.mxu0 0
        %1468 = vmatprep.subr.bf16.mxu0 0
        %1469 = vmatpush1.bf16.msra.mxu0 0
        %1470 = vmatprep.subr.bf16.mxu0 0
        %1471 = vmatpush1.bf16.msra.mxu0 0
        %1472 = vmatprep.subr.bf16.mxu0 0
        %1473 = vmatpush1.bf16.msra.mxu0 0
        %1474 = vmatprep.subr.bf16.mxu0 0
        %1475 = vmatpush1.bf16.msra.mxu0 0
        %1476 = vmatprep.subr.bf16.mxu0 0
        %1477 = vmatpush1.bf16.msra.mxu0 0
        %1478 = vmatprep.subr.bf16.mxu0 0
        %1479 = vmatpush1.bf16.msra.mxu0 0
        %1480 = vmatprep.subr.bf16.mxu0 0
        %1481 = vmatpush1.bf16.msra.mxu0 0
        %1482 = vmatprep.subr.bf16.mxu0 0
        %1483 = vmatpush1.bf16.msra.mxu0 0
        %1484 = vmatprep.subr.bf16.mxu0 0
        %1485 = vmatpush1.bf16.msra.mxu0 0
        %1486 = vmatprep.subr.bf16.mxu0 0
        %1487 = vmatpush1.bf16.msra.mxu0 0
        %1488 = vmatprep.subr.bf16.mxu0 0
        %1489 = vmatpush1.bf16.msra.mxu0 0
        %1490 = vmatprep.subr.bf16.mxu0 0
        %1491 = vmatpush1.bf16.msra.mxu0 0
        %1492 = vmatprep.mubr.bf16.mxu0 0
        %1493 = vmatmul.mubr.bf16.gmra.mrb[0].mxu0 %v1458
        %v1494 = vpop.f32.mrb[0].mxu0
        %v1495 = vadd.f32 %v1444, %v1494
        %v1496 = vpop.f32.mrb[0].mxu0
        %v1497 = vpop.f32.mrb[0].mxu0
        %v1498 = vpop.f32.mrb[0].mxu0
        %1499 = vdwg.mxu0
        %v1500 = vmul.f32 %v1495, 0.35355338
        %v1501 = vpack.c.bf16 %v1500, %v1500
        %v1503 = vrot.slane %v1501, 4
        %1504 = vrot.lane.b32.xlu0 %v1503, 120
        %v1505 = vpop.permute.xlu0 %1504
        %1506 = vrot.lane.b32.xlu0 %v1501, 112
        %v1507 = vpop.permute.xlu0 %1506
        %1508 = vrot.lane.b32.xlu0 %v1503, 104
        %v1509 = vpop.permute.xlu0 %1508
        %v1512 = vsel %vm502, %v1501, %v1505
        %v1515 = vsel %vm502, %v1507, %v1509
        %v1516 = vpack.c.bf16 %v1495, %v1495
        %v1518 = vrot.slane %v1516, 4
        %1519 = vrot.lane.b32.xlu0 %v1518, 120
        %v1520 = vpop.permute.xlu0 %1519
        %1521 = vrot.lane.b32.xlu0 %v1516, 112
        %v1522 = vpop.permute.xlu0 %1521
        %1523 = vrot.lane.b32.xlu0 %v1518, 104
        %v1524 = vpop.permute.xlu0 %1523
        %v1527 = vsel %vm502, %v1516, %v1520
        %v1530 = vsel %vm502, %v1522, %v1524
        %1533 = vrot.lane.b32.xlu0 %v1527, 96
        %v1534 = vpop.permute.xlu0 %1533
        %1535 = vrot.lane.b32.xlu0 %v1530, 96
        %v1536 = vpop.permute.xlu0 %1535
        %v1537 = vsel %vm534, %v1512, 0
        %v1539 = vsel %vm534, %v1515, 0
        %v1542 = vsel %vm534, %v1534, 0
        %v1545 = vsel %vm534, %v1536, 0
        %1547 = vmatprep.subr.bf16.mxu0 0
        %1548 = vmatpush1.bf16.xpose.msra.mxu0 %v1542
        %1549 = vmatprep.subr.bf16.mxu0 0
        %1550 = vmatpush1.bf16.xpose.msra.mxu0 %v1545
        %1551 = vmatprep.subr.bf16.mxu0 0
        %1552 = vmatpush1.bf16.xpose.msra.mxu0 0
        %1553 = vmatprep.subr.bf16.mxu0 0
        %1554 = vmatpush1.bf16.xpose.msra.mxu0 0
        %1555 = vmatprep.subr.bf16.mxu0 0
        %1556 = vmatpush1.bf16.xpose.msra.mxu0 0
        %1557 = vmatprep.subr.bf16.mxu0 0
        %1558 = vmatpush1.bf16.xpose.msra.mxu0 0
        %1559 = vmatprep.subr.bf16.mxu0 0
        %1560 = vmatpush1.bf16.xpose.msra.mxu0 0
        %1561 = vmatprep.subr.bf16.mxu0 0
        %1562 = vmatpush1.bf16.xpose.msra.mxu0 0
        %1563 = vmatprep.subr.bf16.mxu0 0
        %1564 = vmatpush1.bf16.xpose.msra.mxu0 0
        %1565 = vmatprep.subr.bf16.mxu0 0
        %1566 = vmatpush1.bf16.xpose.msra.mxu0 0
        %1567 = vmatprep.subr.bf16.mxu0 0
        %1568 = vmatpush1.bf16.xpose.msra.mxu0 0
        %1569 = vmatprep.subr.bf16.mxu0 0
        %1570 = vmatpush1.bf16.xpose.msra.mxu0 0
        %1571 = vmatprep.subr.bf16.mxu0 0
        %1572 = vmatpush1.bf16.xpose.msra.mxu0 0
        %1573 = vmatprep.subr.bf16.mxu0 0
        %1574 = vmatpush1.bf16.xpose.msra.mxu0 0
        %1575 = vmatprep.subr.bf16.mxu0 0
        %1576 = vmatpush1.bf16.xpose.msra.mxu0 0
        %1577 = vmatprep.subr.bf16.mxu0 0
        %1578 = vmatpush1.bf16.xpose.msra.mxu0 0
        %1579 = vmatprep.mubr.bf16.mxu0 0
        %1580 = vmatmul.mubr.bf16.gmra.mrb[0].mxu0 %v1537
        %v1581 = vpop.f32.mrb[0].mxu0
        %v1582 = vadd.f32 %v524, %v1581
        %v1583 = vpop.f32.mrb[0].mxu0
        %v1584 = vpop.f32.mrb[0].mxu0
        %v1585 = vadd.f32 %v525, %v1584
        %v1586 = vpop.f32.mrb[0].mxu0
        %1587 = vmatprep.mubr.bf16.mxu0 0
        %1588 = vmatmul.mubr.bf16.gmra.mrb[0].mxu0 %v1539
        %v1589 = vpop.f32.mrb[0].mxu0
        %v1590 = vadd.f32 %v526, %v1589
        %v1591 = vpop.f32.mrb[0].mxu0
        %v1592 = vpop.f32.mrb[0].mxu0
        %v1593 = vadd.f32 %v527, %v1592
        %v1594 = vpop.f32.mrb[0].mxu0
        %1595 = vdwg.mxu0
        %v1596 = vsel %vm448, %v1582, -inf
        %1597 = vmax.xlane.f32.xlu0 %v1596
        %v1598 = vpop.xlane.xlu0 %1597
        %v1599 = vsel %vm448, %v1585, -inf
        %1600 = vmax.xlane.f32.xlu0 %v1599
        %v1601 = vpop.xlane.xlu0 %1600
        %v1602 = vsel %vm448, %v1590, -inf
        %1603 = vmax.xlane.f32.xlu0 %v1602
        %v1604 = vpop.xlane.xlu0 %1603
        %v1605 = vsel %vm448, %v1593, -inf
        %1606 = vmax.xlane.f32.xlu0 %v1605
        %v1607 = vpop.xlane.xlu0 %1606
        %v1608 = vsub.f32 %v1582, %v1598
        %v1609 = vsub.f32 %v1585, %v1601
        %v1610 = vsub.f32 %v1590, %v1604
        %v1611 = vsub.f32 %v1593, %v1607
        %v1612 = vmul.f32 %v1608, 1.442695
        %v1613 = vpow.pop %v1612
        %v1614 = vmul.f32 %v1609, 1.442695
        %v1615 = vpow.pop %v1614
        %v1616 = vmul.f32 %v1610, 1.442695
        %v1617 = vpow.pop %v1616
        %v1618 = vmul.f32 %v1611, 1.442695
        %v1619 = vpow.pop %v1618
        %v1620 = vsel %vm448, %v1613, 0.0
        %1621 = vadd.xlane.f32.xlu0 %v1620
        %v1622 = vpop.xlane.xlu0 %1621
        %v1623 = vsel %vm448, %v1615, 0.0
        %1624 = vadd.xlane.f32.xlu0 %v1623
        %v1625 = vpop.xlane.xlu0 %1624
        %v1626 = vsel %vm448, %v1617, 0.0
        %1627 = vadd.xlane.f32.xlu0 %v1626
        %v1628 = vpop.xlane.xlu0 %1627
        %v1629 = vsel %vm448, %v1619, 0.0
        %1630 = vadd.xlane.f32.xlu0 %v1629
        %v1631 = vpop.xlane.xlu0 %1630
        %v1632 = vrcp.pop %v1622
        %v1633 = vrcp.pop %v1625
        %v1634 = vrcp.pop %v1628
        %v1635 = vrcp.pop %v1631
        %v1636 = vmul.f32 %v1613, %v1632
        %v1637 = vmul.f32 %v1615, %v1633
        %v1638 = vmul.f32 %v1617, %v1634
        %v1639 = vmul.f32 %v1619, %v1635
        %v1640 = vpack.c.bf16 %v1637, %v1636
        %v1641 = vpack.c.bf16 %v1639, %v1638
        %1642 = vrot.lane.b32.xlu0 %v1527, 64
        %v1643 = vpop.permute.xlu0 %1642
        %1644 = vrot.lane.b32.xlu0 %v1530, 64
        %v1645 = vpop.permute.xlu0 %1644
        %v1649 = vsel %vm448, %v1640, 0
        %v1652 = vsel %vm448, %v1641, 0
        %1654 = vmatprep.subr.bf16.mxu0 0
        %1655 = vmatpush1.bf16.msra.mxu0 %v1643
        %1656 = vmatprep.subr.bf16.mxu0 0
        %1657 = vmatpush1.bf16.msra.mxu0 %v1645
        %1658 = vmatprep.subr.bf16.mxu0 0
        %1659 = vmatpush1.bf16.msra.mxu0 0
        %1660 = vmatprep.subr.bf16.mxu0 0
        %1661 = vmatpush1.bf16.msra.mxu0 0
        %1662 = vmatprep.subr.bf16.mxu0 0
        %1663 = vmatpush1.bf16.msra.mxu0 0
        %1664 = vmatprep.subr.bf16.mxu0 0
        %1665 = vmatpush1.bf16.msra.mxu0 0
        %1666 = vmatprep.subr.bf16.mxu0 0
        %1667 = vmatpush1.bf16.msra.mxu0 0
        %1668 = vmatprep.subr.bf16.mxu0 0
        %1669 = vmatpush1.bf16.msra.mxu0 0
        %1670 = vmatprep.subr.bf16.mxu0 0
        %1671 = vmatpush1.bf16.msra.mxu0 0
        %1672 = vmatprep.subr.bf16.mxu0 0
        %1673 = vmatpush1.bf16.msra.mxu0 0
        %1674 = vmatprep.subr.bf16.mxu0 0
        %1675 = vmatpush1.bf16.msra.mxu0 0
        %1676 = vmatprep.subr.bf16.mxu0 0
        %1677 = vmatpush1.bf16.msra.mxu0 0
        %1678 = vmatprep.subr.bf16.mxu0 0
        %1679 = vmatpush1.bf16.msra.mxu0 0
        %1680 = vmatprep.subr.bf16.mxu0 0
        %1681 = vmatpush1.bf16.msra.mxu0 0
        %1682 = vmatprep.subr.bf16.mxu0 0
        %1683 = vmatpush1.bf16.msra.mxu0 0
        %1684 = vmatprep.subr.bf16.mxu0 0
        %1685 = vmatpush1.bf16.msra.mxu0 0
        %1686 = vmatprep.mubr.bf16.mxu0 0
        %1687 = vmatmul.mubr.bf16.gmra.mrb[0].mxu0 %v1649
        %v1688 = vpop.f32.mrb[0].mxu0
        %v1689 = vadd.f32 0.0, %v1688
        %v1690 = vpop.f32.mrb[0].mxu0
        %v1691 = vpop.f32.mrb[0].mxu0
        %v1692 = vadd.f32 0.0, %v1691
        %v1693 = vpop.f32.mrb[0].mxu0
        %1694 = vmatprep.mubr.bf16.mxu0 0
        %1695 = vmatmul.mubr.bf16.gmra.mrb[0].mxu0 %v1652
        %v1696 = vpop.f32.mrb[0].mxu0
        %v1697 = vadd.f32 0.0, %v1696
        %v1698 = vpop.f32.mrb[0].mxu0
        %v1699 = vpop.f32.mrb[0].mxu0
        %v1700 = vadd.f32 0.0, %v1699
        %v1701 = vpop.f32.mrb[0].mxu0
        %1702 = vdwg.mxu0
        %v1703 = vpack.c.bf16 %v1692, %v1689
        %v1704 = vpack.c.bf16 %v1700, %v1697
        %v1706 = vrot.slane %v1703, 4
        %1707 = vrot.lane.b32.xlu0 %v1706, 8
        %v1708 = vpop.permute.xlu0 %1707
        %1710 = vrot.lane.b32.xlu0 %v1704, 16
        %v1711 = vpop.permute.xlu0 %1710
        %v1712 = vrot.slane %v1704, 4
        %1713 = vrot.lane.b32.xlu0 %v1712, 24
        %v1714 = vpop.permute.xlu0 %1713
        %v1717 = vsel %vm534, %v1703, %v1708
        %v1719 = vsel %vm716, %v1717, %v1711
        %v1721 = vsel %vm719, %v1719, %v1714
        %v1722 = vlaneseq
        %v1723 = vshrl.u32 %v1722, 7
        %v1724 = vsub.s32 1, %v1723
        %v1725 = vrot.slane %v1396, %v1724
        %v1730 = vunpack.c.l.b16 %v1409
        %v1731 = vunpack.c.l.b16 %v1410
        %v1732 = vunpack.c.l.b16 %v1411
        %v1733 = vunpack.c.l.b16 %v1412
        %v1734 = vpack.c.b16 %v1731, %v1730
        %v1735 = vpack.c.b16 %v1733, %v1732
        %v1738 = vsel %vm448, %v1721, 0
        %1740 = vmatprep.subr.bf16.mxu0 0
        %1741 = vmatpush1.bf16.msra.mxu0 %v1734
        %1742 = vmatprep.subr.bf16.mxu0 0
        %1743 = vmatpush1.bf16.msra.mxu0 %v1735
        %1744 = vmatprep.subr.bf16.mxu0 0
        %1745 = vmatpush1.bf16.msra.mxu0 0
        %1746 = vmatprep.subr.bf16.mxu0 0
        %1747 = vmatpush1.bf16.msra.mxu0 0
        %1748 = vmatprep.subr.bf16.mxu0 0
        %1749 = vmatpush1.bf16.msra.mxu0 0
        %1750 = vmatprep.subr.bf16.mxu0 0
        %1751 = vmatpush1.bf16.msra.mxu0 0
        %1752 = vmatprep.subr.bf16.mxu0 0
        %1753 = vmatpush1.bf16.msra.mxu0 0
        %1754 = vmatprep.subr.bf16.mxu0 0
        %1755 = vmatpush1.bf16.msra.mxu0 0
        %1756 = vmatprep.subr.bf16.mxu0 0
        %1757 = vmatpush1.bf16.msra.mxu0 0
        %1758 = vmatprep.subr.bf16.mxu0 0
        %1759 = vmatpush1.bf16.msra.mxu0 0
        %1760 = vmatprep.subr.bf16.mxu0 0
        %1761 = vmatpush1.bf16.msra.mxu0 0
        %1762 = vmatprep.subr.bf16.mxu0 0
        %1763 = vmatpush1.bf16.msra.mxu0 0
        %1764 = vmatprep.subr.bf16.mxu0 0
        %1765 = vmatpush1.bf16.msra.mxu0 0
        %1766 = vmatprep.subr.bf16.mxu0 0
        %1767 = vmatpush1.bf16.msra.mxu0 0
        %1768 = vmatprep.subr.bf16.mxu0 0
        %1769 = vmatpush1.bf16.msra.mxu0 0
        %1770 = vmatprep.subr.bf16.mxu0 0
        %1771 = vmatpush1.bf16.msra.mxu0 0
        %1772 = vmatprep.mubr.bf16.mxu0 0
        %1773 = vmatmul.mubr.bf16.gmra.mrb[0].mxu0 %v1738
        %v1774 = vpop.f32.mrb[0].mxu0
        %v1775 = vadd.f32 %v1725, %v1774
        %v1776 = vpop.f32.mrb[0].mxu0
        %v1777 = vpop.f32.mrb[0].mxu0
        %v1778 = vpop.f32.mrb[0].mxu0
        %1779 = vdwg.mxu0
        %v1780 = vadd.f32 %v1394, %v1775
        %v1781 = vsel %vm448, %v1780, 0.0
        %1782 = vadd.xlane.f32.xlu0 %v1781
        %v1783 = vpop.xlane.xlu0 %1782
        %v1784 = vmul.f32 %v1783, %v784
        %v1785 = vsub.f32 %v1780, %v1784
        %v1786 = vmul.f32 %v1785, %v1785
        %v1787 = vsel %vm448, %v1786, 0.0
        %1788 = vadd.xlane.f32.xlu0 %v1787
        %v1789 = vpop.xlane.xlu0 %1788
        %v1790 = vmul.f32 %v1789, %v784
        %v1791 = vadd.f32 %v1790, 1e-05
        %v1792 = vrsqrt.pop %v1791
        %v1793 = vmul.f32 %v1785, %v1792
        %v1794 = vlaneseq
        %v1795 = vshrl.u32 %v1794, 7
        %v1796 = vsub.s32 6, %v1795
        %v1797 = vrot.slane %v1396, %v1796
        %v1798 = vmul.f32 %v1793, %v1797
        %v1799 = vlaneseq
        %v1800 = vshrl.u32 %v1799, 7
        %v1801 = vsub.s32 7, %v1800
        %v1802 = vrot.slane %v1396, %v1801
        %v1803 = vadd.f32 %v1798, %v1802
        %v1804 = vpack.c.bf16 %v1803, %v1803
        %v1805 = vlaneseq
        %v1806 = vshrl.u32 %v1805, 7
        %v1807 = vsub.s32 2, %v1806
        %v1808 = vrot.slane %v1396, %v1807
        %v1813 = vunpack.c.l.b16 %v1404
        %v1814 = vunpack.c.l.b16 %v1405
        %v1815 = vunpack.c.l.b16 %v1406
        %v1816 = vunpack.c.l.b16 %v1407
        %v1817 = vpack.c.b16 %v1814, %v1813
        %v1818 = vpack.c.b16 %v1816, %v1815
        %v1822 = vsel %vm448, %v1804, 0
        %1824 = vmatprep.subr.bf16.mxu0 0
        %1825 = vmatpush1.bf16.msra.mxu0 %v1817
        %1826 = vmatprep.subr.bf16.mxu0 0
        %1827 = vmatpush1.bf16.msra.mxu0 %v1818
        %1828 = vmatprep.subr.bf16.mxu0 0
        %1829 = vmatpush1.bf16.msra.mxu0 0
        %1830 = vmatprep.subr.bf16.mxu0 0
        %1831 = vmatpush1.bf16.msra.mxu0 0
        %1832 = vmatprep.subr.bf16.mxu0 0
        %1833 = vmatpush1.bf16.msra.mxu0 0
        %1834 = vmatprep.subr.bf16.mxu0 0
        %1835 = vmatpush1.bf16.msra.mxu0 0
        %1836 = vmatprep.subr.bf16.mxu0 0
        %1837 = vmatpush1.bf16.msra.mxu0 0
        %1838 = vmatprep.subr.bf16.mxu0 0
        %1839 = vmatpush1.bf16.msra.mxu0 0
        %1840 = vmatprep.subr.bf16.mxu0 0
        %1841 = vmatpush1.bf16.msra.mxu0 0
        %1842 = vmatprep.subr.bf16.mxu0 0
        %1843 = vmatpush1.bf16.msra.mxu0 0
        %1844 = vmatprep.subr.bf16.mxu0 0
        %1845 = vmatpush1.bf16.msra.mxu0 0
        %1846 = vmatprep.subr.bf16.mxu0 0
        %1847 = vmatpush1.bf16.msra.mxu0 0
        %1848 = vmatprep.subr.bf16.mxu0 0
        %1849 = vmatpush1.bf16.msra.mxu0 0
        %1850 = vmatprep.subr.bf16.mxu0 0
        %1851 = vmatpush1.bf16.msra.mxu0 0
        %1852 = vmatprep.subr.bf16.mxu0 0
        %1853 = vmatpush1.bf16.msra.mxu0 0
        %1854 = vmatprep.subr.bf16.mxu0 0
        %1855 = vmatpush1.bf16.msra.mxu0 0
        %1856 = vmatprep.mubr.bf16.mxu0 0
        %1857 = vmatmul.mubr.bf16.gmra.mrb[0].mxu0 %v1822
        %v1858 = vpop.f32.mrb[0].mxu0
        %v1859 = vadd.f32 %v1808, %v1858
        %v1860 = vpop.f32.mrb[0].mxu0
        %v1861 = vpop.f32.mrb[0].mxu0
        %v1862 = vpop.f32.mrb[0].mxu0
        %1863 = vdwg.mxu0
        %1864 = vrot.lane.b32.xlu0 %v1817, 96
        %v1865 = vpop.permute.xlu0 %1864
        %1866 = vrot.lane.b32.xlu0 %v1818, 96
        %v1867 = vpop.permute.xlu0 %1866
        %1871 = vrot.lane.b32.xlu0 %v1808, 96
        %v1872 = vpop.permute.xlu0 %1871
        %1874 = vmatprep.subr.bf16.mxu0 0
        %1875 = vmatpush1.bf16.msra.mxu0 %v1865
        %1876 = vmatprep.subr.bf16.mxu0 0
        %1877 = vmatpush1.bf16.msra.mxu0 %v1867
        %1878 = vmatprep.subr.bf16.mxu0 0
        %1879 = vmatpush1.bf16.msra.mxu0 0
        %1880 = vmatprep.subr.bf16.mxu0 0
        %1881 = vmatpush1.bf16.msra.mxu0 0
        %1882 = vmatprep.subr.bf16.mxu0 0
        %1883 = vmatpush1.bf16.msra.mxu0 0
        %1884 = vmatprep.subr.bf16.mxu0 0
        %1885 = vmatpush1.bf16.msra.mxu0 0
        %1886 = vmatprep.subr.bf16.mxu0 0
        %1887 = vmatpush1.bf16.msra.mxu0 0
        %1888 = vmatprep.subr.bf16.mxu0 0
        %1889 = vmatpush1.bf16.msra.mxu0 0
        %1890 = vmatprep.subr.bf16.mxu0 0
        %1891 = vmatpush1.bf16.msra.mxu0 0
        %1892 = vmatprep.subr.bf16.mxu0 0
        %1893 = vmatpush1.bf16.msra.mxu0 0
        %1894 = vmatprep.subr.bf16.mxu0 0
        %1895 = vmatpush1.bf16.msra.mxu0 0
        %1896 = vmatprep.subr.bf16.mxu0 0
        %1897 = vmatpush1.bf16.msra.mxu0 0
        %1898 = vmatprep.subr.bf16.mxu0 0
        %1899 = vmatpush1.bf16.msra.mxu0 0
        %1900 = vmatprep.subr.bf16.mxu0 0
        %1901 = vmatpush1.bf16.msra.mxu0 0
        %1902 = vmatprep.subr.bf16.mxu0 0
        %1903 = vmatpush1.bf16.msra.mxu0 0
        %1904 = vmatprep.subr.bf16.mxu0 0
        %1905 = vmatpush1.bf16.msra.mxu0 0
        %1906 = vmatprep.mubr.bf16.mxu0 0
        %1907 = vmatmul.mubr.bf16.gmra.mrb[0].mxu0 %v450
        %v1908 = vpop.f32.mrb[0].mxu0
        %v1909 = vadd.f32 %v1872, %v1908
        %v1910 = vpop.f32.mrb[0].mxu0
        %v1911 = vpop.f32.mrb[0].mxu0
        %v1912 = vpop.f32.mrb[0].mxu0
        %1913 = vdwg.mxu0
        %v1914 = vmul.f32 %v1859, 0.35355338
        %v1915 = vpack.c.bf16 %v1914, %v1914
        %v1917 = vrot.slane %v1915, 4
        %1918 = vrot.lane.b32.xlu0 %v1917, 120
        %v1919 = vpop.permute.xlu0 %1918
        %1920 = vrot.lane.b32.xlu0 %v1915, 112
        %v1921 = vpop.permute.xlu0 %1920
        %1922 = vrot.lane.b32.xlu0 %v1917, 104
        %v1923 = vpop.permute.xlu0 %1922
        %v1926 = vsel %vm502, %v1915, %v1919
        %v1929 = vsel %vm502, %v1921, %v1923
        %v1930 = vpack.c.bf16 %v1909, %v1909
        %v1932 = vrot.slane %v1930, 4
        %1933 = vrot.lane.b32.xlu0 %v1932, 120
        %v1934 = vpop.permute.xlu0 %1933
        %1935 = vrot.lane.b32.xlu0 %v1930, 112
        %v1936 = vpop.permute.xlu0 %1935
        %1937 = vrot.lane.b32.xlu0 %v1932, 104
        %v1938 = vpop.permute.xlu0 %1937
        %v1941 = vsel %vm502, %v1930, %v1934
        %v1944 = vsel %vm502, %v1936, %v1938
        %v1945 = vsel %vm534, %v1926, 0
        %v1947 = vsel %vm534, %v1929, 0
        %v1949 = vsel %vm534, %v1941, 0
        %v1951 = vsel %vm534, %v1944, 0
        %1953 = vmatprep.subr.bf16.mxu0 0
        %1954 = vmatpush1.bf16.xpose.msra.mxu0 %v1949
        %1955 = vmatprep.subr.bf16.mxu0 0
        %1956 = vmatpush1.bf16.xpose.msra.mxu0 %v1951
        %1957 = vmatprep.subr.bf16.mxu0 0
        %1958 = vmatpush1.bf16.xpose.msra.mxu0 0
        %1959 = vmatprep.subr.bf16.mxu0 0
        %1960 = vmatpush1.bf16.xpose.msra.mxu0 0
        %1961 = vmatprep.subr.bf16.mxu0 0
        %1962 = vmatpush1.bf16.xpose.msra.mxu0 0
        %1963 = vmatprep.subr.bf16.mxu0 0
        %1964 = vmatpush1.bf16.xpose.msra.mxu0 0
        %1965 = vmatprep.subr.bf16.mxu0 0
        %1966 = vmatpush1.bf16.xpose.msra.mxu0 0
        %1967 = vmatprep.subr.bf16.mxu0 0
        %1968 = vmatpush1.bf16.xpose.msra.mxu0 0
        %1969 = vmatprep.subr.bf16.mxu0 0
        %1970 = vmatpush1.bf16.xpose.msra.mxu0 0
        %1971 = vmatprep.subr.bf16.mxu0 0
        %1972 = vmatpush1.bf16.xpose.msra.mxu0 0
        %1973 = vmatprep.subr.bf16.mxu0 0
        %1974 = vmatpush1.bf16.xpose.msra.mxu0 0
        %1975 = vmatprep.subr.bf16.mxu0 0
        %1976 = vmatpush1.bf16.xpose.msra.mxu0 0
        %1977 = vmatprep.subr.bf16.mxu0 0
        %1978 = vmatpush1.bf16.xpose.msra.mxu0 0
        %1979 = vmatprep.subr.bf16.mxu0 0
        %1980 = vmatpush1.bf16.xpose.msra.mxu0 0
        %1981 = vmatprep.subr.bf16.mxu0 0
        %1982 = vmatpush1.bf16.xpose.msra.mxu0 0
        %1983 = vmatprep.subr.bf16.mxu0 0
        %1984 = vmatpush1.bf16.xpose.msra.mxu0 0
        %1985 = vmatprep.mubr.bf16.mxu0 0
        %1986 = vmatmul.mubr.bf16.gmra.mrb[0].mxu0 %v1945
        %v1987 = vpop.f32.mrb[0].mxu0
        %v1988 = vadd.f32 %v946, %v1987
        %v1989 = vpop.f32.mrb[0].mxu0
        %v1990 = vpop.f32.mrb[0].mxu0
        %v1991 = vadd.f32 %v947, %v1990
        %v1992 = vpop.f32.mrb[0].mxu0
        %1993 = vmatprep.mubr.bf16.mxu0 0
        %1994 = vmatmul.mubr.bf16.gmra.mrb[0].mxu0 %v1947
        %v1995 = vpop.f32.mrb[0].mxu0
        %v1996 = vadd.f32 %v948, %v1995
        %v1997 = vpop.f32.mrb[0].mxu0
        %v1998 = vpop.f32.mrb[0].mxu0
        %v1999 = vadd.f32 %v949, %v1998
        %v2000 = vpop.f32.mrb[0].mxu0
        %2001 = vdwg.mxu0
        %v2002 = vsel %vm448, %v1988, -inf
        %2003 = vmax.xlane.f32.xlu0 %v2002
        %v2004 = vpop.xlane.xlu0 %2003
        %v2005 = vsel %vm448, %v1991, -inf
        %2006 = vmax.xlane.f32.xlu0 %v2005
        %v2007 = vpop.xlane.xlu0 %2006
        %v2008 = vsel %vm448, %v1996, -inf
        %2009 = vmax.xlane.f32.xlu0 %v2008
        %v2010 = vpop.xlane.xlu0 %2009
        %v2011 = vsel %vm448, %v1999, -inf
        %2012 = vmax.xlane.f32.xlu0 %v2011
        %v2013 = vpop.xlane.xlu0 %2012
        %v2014 = vsub.f32 %v1988, %v2004
        %v2015 = vsub.f32 %v1991, %v2007
        %v2016 = vsub.f32 %v1996, %v2010
        %v2017 = vsub.f32 %v1999, %v2013
        %v2018 = vmul.f32 %v2014, 1.442695
        %v2019 = vpow.pop %v2018
        %v2020 = vmul.f32 %v2015, 1.442695
        %v2021 = vpow.pop %v2020
        %v2022 = vmul.f32 %v2016, 1.442695
        %v2023 = vpow.pop %v2022
        %v2024 = vmul.f32 %v2017, 1.442695
        %v2025 = vpow.pop %v2024
        %v2026 = vsel %vm448, %v2019, 0.0
        %2027 = vadd.xlane.f32.xlu0 %v2026
        %v2028 = vpop.xlane.xlu0 %2027
        %v2029 = vsel %vm448, %v2021, 0.0
        %2030 = vadd.xlane.f32.xlu0 %v2029
        %v2031 = vpop.xlane.xlu0 %2030
        %v2032 = vsel %vm448, %v2023, 0.0
        %2033 = vadd.xlane.f32.xlu0 %v2032
        %v2034 = vpop.xlane.xlu0 %2033
        %v2035 = vsel %vm448, %v2025, 0.0
        %2036 = vadd.xlane.f32.xlu0 %v2035
        %v2037 = vpop.xlane.xlu0 %2036
        %v2038 = vrcp.pop %v2028
        %v2039 = vrcp.pop %v2031
        %v2040 = vrcp.pop %v2034
        %v2041 = vrcp.pop %v2037
        %v2042 = vmul.f32 %v2019, %v2038
        %v2043 = vmul.f32 %v2021, %v2039
        %v2044 = vmul.f32 %v2023, %v2040
        %v2045 = vmul.f32 %v2025, %v2041
        %v2046 = vpack.c.bf16 %v2043, %v2042
        %v2047 = vpack.c.bf16 %v2045, %v2044
        %2050 = vrot.lane.b32.xlu0 %v1941, 96
        %v2051 = vpop.permute.xlu0 %2050
        %2052 = vrot.lane.b32.xlu0 %v1944, 96
        %v2053 = vpop.permute.xlu0 %2052
        %v2057 = vsel %vm448, %v2046, 0
        %v2060 = vsel %vm448, %v2047, 0
        %2062 = vmatprep.subr.bf16.mxu0 0
        %2063 = vmatpush1.bf16.msra.mxu0 %v2051
        %2064 = vmatprep.subr.bf16.mxu0 0
        %2065 = vmatpush1.bf16.msra.mxu0 %v2053
        %2066 = vmatprep.subr.bf16.mxu0 0
        %2067 = vmatpush1.bf16.msra.mxu0 0
        %2068 = vmatprep.subr.bf16.mxu0 0
        %2069 = vmatpush1.bf16.msra.mxu0 0
        %2070 = vmatprep.subr.bf16.mxu0 0
        %2071 = vmatpush1.bf16.msra.mxu0 0
        %2072 = vmatprep.subr.bf16.mxu0 0
        %2073 = vmatpush1.bf16.msra.mxu0 0
        %2074 = vmatprep.subr.bf16.mxu0 0
        %2075 = vmatpush1.bf16.msra.mxu0 0
        %2076 = vmatprep.subr.bf16.mxu0 0
        %2077 = vmatpush1.bf16.msra.mxu0 0
        %2078 = vmatprep.subr.bf16.mxu0 0
        %2079 = vmatpush1.bf16.msra.mxu0 0
        %2080 = vmatprep.subr.bf16.mxu0 0
        %2081 = vmatpush1.bf16.msra.mxu0 0
        %2082 = vmatprep.subr.bf16.mxu0 0
        %2083 = vmatpush1.bf16.msra.mxu0 0
        %2084 = vmatprep.subr.bf16.mxu0 0
        %2085 = vmatpush1.bf16.msra.mxu0 0
        %2086 = vmatprep.subr.bf16.mxu0 0
        %2087 = vmatpush1.bf16.msra.mxu0 0
        %2088 = vmatprep.subr.bf16.mxu0 0
        %2089 = vmatpush1.bf16.msra.mxu0 0
        %2090 = vmatprep.subr.bf16.mxu0 0
        %2091 = vmatpush1.bf16.msra.mxu0 0
        %2092 = vmatprep.subr.bf16.mxu0 0
        %2093 = vmatpush1.bf16.msra.mxu0 0
        %2094 = vmatprep.mubr.bf16.mxu0 0
        %2095 = vmatmul.mubr.bf16.gmra.mrb[0].mxu0 %v2057
        %v2096 = vpop.f32.mrb[0].mxu0
        %v2097 = vadd.f32 0.0, %v2096
        %v2098 = vpop.f32.mrb[0].mxu0
        %v2099 = vpop.f32.mrb[0].mxu0
        %v2100 = vadd.f32 0.0, %v2099
        %v2101 = vpop.f32.mrb[0].mxu0
        %2102 = vmatprep.mubr.bf16.mxu0 0
        %2103 = vmatmul.mubr.bf16.gmra.mrb[0].mxu0 %v2060
        %v2104 = vpop.f32.mrb[0].mxu0
        %v2105 = vadd.f32 0.0, %v2104
        %v2106 = vpop.f32.mrb[0].mxu0
        %v2107 = vpop.f32.mrb[0].mxu0
        %v2108 = vadd.f32 0.0, %v2107
        %v2109 = vpop.f32.mrb[0].mxu0
        %2110 = vdwg.mxu0
        %v2111 = vpack.c.bf16 %v2100, %v2097
        %v2112 = vpack.c.bf16 %v2108, %v2105
        %v2114 = vrot.slane %v2111, 4
        %2115 = vrot.lane.b32.xlu0 %v2114, 8
        %v2116 = vpop.permute.xlu0 %2115
        %2118 = vrot.lane.b32.xlu0 %v2112, 16
        %v2119 = vpop.permute.xlu0 %2118
        %v2120 = vrot.slane %v2112, 4
        %2121 = vrot.lane.b32.xlu0 %v2120, 24
        %v2122 = vpop.permute.xlu0 %2121
        %v2125 = vsel %vm534, %v2111, %v2116
        %v2127 = vsel %vm716, %v2125, %v2119
        %v2129 = vsel %vm719, %v2127, %v2122
        %v2130 = vlaneseq
        %v2131 = vshrl.u32 %v2130, 7
        %v2132 = vsub.s32 3, %v2131
        %v2133 = vrot.slane %v1396, %v2132
        %v2138 = vunpack.c.l.b16 %v1414
        %v2139 = vunpack.c.l.b16 %v1415
        %v2140 = vunpack.c.l.b16 %v1416
        %v2141 = vunpack.c.l.b16 %v1417
        %v2142 = vpack.c.b16 %v2139, %v2138
        %v2143 = vpack.c.b16 %v2141, %v2140
        %v2146 = vsel %vm448, %v2129, 0
        %2148 = vmatprep.subr.bf16.mxu0 0
        %2149 = vmatpush1.bf16.msra.mxu0 %v2142
        %2150 = vmatprep.subr.bf16.mxu0 0
        %2151 = vmatpush1.bf16.msra.mxu0 %v2143
        %2152 = vmatprep.subr.bf16.mxu0 0
        %2153 = vmatpush1.bf16.msra.mxu0 0
        %2154 = vmatprep.subr.bf16.mxu0 0
        %2155 = vmatpush1.bf16.msra.mxu0 0
        %2156 = vmatprep.subr.bf16.mxu0 0
        %2157 = vmatpush1.bf16.msra.mxu0 0
        %2158 = vmatprep.subr.bf16.mxu0 0
        %2159 = vmatpush1.bf16.msra.mxu0 0
        %2160 = vmatprep.subr.bf16.mxu0 0
        %2161 = vmatpush1.bf16.msra.mxu0 0
        %2162 = vmatprep.subr.bf16.mxu0 0
        %2163 = vmatpush1.bf16.msra.mxu0 0
        %2164 = vmatprep.subr.bf16.mxu0 0
        %2165 = vmatpush1.bf16.msra.mxu0 0
        %2166 = vmatprep.subr.bf16.mxu0 0
        %2167 = vmatpush1.bf16.msra.mxu0 0
        %2168 = vmatprep.subr.bf16.mxu0 0
        %2169 = vmatpush1.bf16.msra.mxu0 0
        %2170 = vmatprep.subr.bf16.mxu0 0
        %2171 = vmatpush1.bf16.msra.mxu0 0
        %2172 = vmatprep.subr.bf16.mxu0 0
        %2173 = vmatpush1.bf16.msra.mxu0 0
        %2174 = vmatprep.subr.bf16.mxu0 0
        %2175 = vmatpush1.bf16.msra.mxu0 0
        %2176 = vmatprep.subr.bf16.mxu0 0
        %2177 = vmatpush1.bf16.msra.mxu0 0
        %2178 = vmatprep.subr.bf16.mxu0 0
        %2179 = vmatpush1.bf16.msra.mxu0 0
        %2180 = vmatprep.mubr.bf16.mxu0 0
        %2181 = vmatmul.mubr.bf16.gmra.mrb[0].mxu0 %v2146
        %v2182 = vpop.f32.mrb[0].mxu0
        %v2183 = vadd.f32 %v2133, %v2182
        %v2184 = vpop.f32.mrb[0].mxu0
        %v2185 = vpop.f32.mrb[0].mxu0
        %v2186 = vpop.f32.mrb[0].mxu0
        %2187 = vdwg.mxu0
        %v2188 = vadd.f32 %v1803, %v2183
        %v2189 = vsel %vm448, %v2188, 0.0
        %2190 = vadd.xlane.f32.xlu0 %v2189
        %v2191 = vpop.xlane.xlu0 %2190
        %v2192 = vmul.f32 %v2191, %v784
        %v2193 = vsub.f32 %v2188, %v2192
        %v2194 = vmul.f32 %v2193, %v2193
        %v2195 = vsel %vm448, %v2194, 0.0
        %2196 = vadd.xlane.f32.xlu0 %v2195
        %v2197 = vpop.xlane.xlu0 %2196
        %v2198 = vmul.f32 %v2197, %v784
        %v2199 = vadd.f32 %v2198, 1e-05
        %v2200 = vrsqrt.pop %v2199
        %v2201 = vmul.f32 %v2193, %v2200
        %v2202 = vlaneseq
        %v2203 = vshrl.u32 %v2202, 7
        %v2204 = vsub.s32 0, %v2203
        %v2205 = vrot.slane %v1397, %v2204
        %v2206 = vmul.f32 %v2201, %v2205
        %v2207 = vlaneseq
        %v2208 = vshrl.u32 %v2207, 7
        %v2209 = vsub.s32 1, %v2208
        %v2210 = vrot.slane %v1397, %v2209
        %v2211 = vadd.f32 %v2206, %v2210
        %v2212 = vpack.c.bf16 %v2211, %v2211
        %v2213 = vlaneseq
        %v2214 = vshrl.u32 %v2213, 7
        %v2215 = vsub.s32 4, %v2214
        %v2216 = vrot.slane %v1396, %v2215
        %v2221 = vunpack.c.l.b16 %v1419
        %v2222 = vunpack.c.l.b16 %v1420
        %v2223 = vunpack.c.l.b16 %v1421
        %v2224 = vunpack.c.l.b16 %v1422
        %v2225 = vpack.c.b16 %v2222, %v2221
        %v2226 = vpack.c.b16 %v2224, %v2223
        %v2230 = vsel %vm448, %v2212, 0
        %2232 = vmatprep.subr.bf16.mxu0 0
        %2233 = vmatpush1.bf16.msra.mxu0 %v2225
        %2234 = vmatprep.subr.bf16.mxu0 0
        %2235 = vmatpush1.bf16.msra.mxu0 %v2226
        %2236 = vmatprep.subr.bf16.mxu0 0
        %2237 = vmatpush1.bf16.msra.mxu0 0
        %2238 = vmatprep.subr.bf16.mxu0 0
        %2239 = vmatpush1.bf16.msra.mxu0 0
        %2240 = vmatprep.subr.bf16.mxu0 0
        %2241 = vmatpush1.bf16.msra.mxu0 0
        %2242 = vmatprep.subr.bf16.mxu0 0
        %2243 = vmatpush1.bf16.msra.mxu0 0
        %2244 = vmatprep.subr.bf16.mxu0 0
        %2245 = vmatpush1.bf16.msra.mxu0 0
        %2246 = vmatprep.subr.bf16.mxu0 0
        %2247 = vmatpush1.bf16.msra.mxu0 0
        %2248 = vmatprep.subr.bf16.mxu0 0
        %2249 = vmatpush1.bf16.msra.mxu0 0
        %2250 = vmatprep.subr.bf16.mxu0 0
        %2251 = vmatpush1.bf16.msra.mxu0 0
        %2252 = vmatprep.subr.bf16.mxu0 0
        %2253 = vmatpush1.bf16.msra.mxu0 0
        %2254 = vmatprep.subr.bf16.mxu0 0
        %2255 = vmatpush1.bf16.msra.mxu0 0
        %2256 = vmatprep.subr.bf16.mxu0 0
        %2257 = vmatpush1.bf16.msra.mxu0 0
        %2258 = vmatprep.subr.bf16.mxu0 0
        %2259 = vmatpush1.bf16.msra.mxu0 0
        %2260 = vmatprep.subr.bf16.mxu0 0
        %2261 = vmatpush1.bf16.msra.mxu0 0
        %2262 = vmatprep.subr.bf16.mxu0 0
        %2263 = vmatpush1.bf16.msra.mxu0 0
        %2264 = vmatprep.mubr.bf16.mxu0 0
        %2265 = vmatmul.mubr.bf16.gmra.mrb[0].mxu0 %v2230
        %v2266 = vpop.f32.mrb[0].mxu0
        %v2267 = vadd.f32 %v2216, %v2266
        %v2268 = vpop.f32.mrb[0].mxu0
        %v2269 = vpop.f32.mrb[0].mxu0
        %v2270 = vpop.f32.mrb[0].mxu0
        %2271 = vdwg.mxu0
        %v2272 = vmax.f32 %v2267, 0.0
        %v2273 = vpack.c.bf16 %v2272, %v2272
        %v2274 = vlaneseq
        %v2275 = vshrl.u32 %v2274, 7
        %v2276 = vsub.s32 5, %v2275
        %v2277 = vrot.slane %v1396, %v2276
        %v2294 = vunpack.c.l.b16 %v1424
        %v2295 = vunpack.c.l.b16 %v1425
        %v2296 = vunpack.c.l.b16 %v1426
        %v2297 = vunpack.c.l.b16 %v1427
        %v2298 = vunpack.c.l.b16 %v1428
        %v2299 = vunpack.c.l.b16 %v1429
        %v2300 = vunpack.c.l.b16 %v1430
        %v2301 = vunpack.c.l.b16 %v1431
        %v2302 = vunpack.c.l.b16 %v1432
        %v2303 = vunpack.c.l.b16 %v1433
        %v2304 = vunpack.c.l.b16 %v1434
        %v2305 = vunpack.c.l.b16 %v1435
        %v2306 = vunpack.c.l.b16 %v1436
        %v2307 = vunpack.c.l.b16 %v1437
        %v2308 = vunpack.c.l.b16 %v1438
        %v2309 = vunpack.c.l.b16 %v1439
        %v2310 = vpack.c.b16 %v2295, %v2294
        %v2311 = vpack.c.b16 %v2297, %v2296
        %v2312 = vpack.c.b16 %v2299, %v2298
        %v2313 = vpack.c.b16 %v2301, %v2300
        %v2314 = vpack.c.b16 %v2303, %v2302
        %v2315 = vpack.c.b16 %v2305, %v2304
        %v2316 = vpack.c.b16 %v2307, %v2306
        %v2317 = vpack.c.b16 %v2309, %v2308
        %2326 = vmatprep.subr.bf16.mxu0 0
        %2327 = vmatpush1.bf16.msra.mxu0 %v2310
        %2328 = vmatprep.subr.bf16.mxu0 0
        %2329 = vmatpush1.bf16.msra.mxu0 %v2311
        %2330 = vmatprep.subr.bf16.mxu0 0
        %2331 = vmatpush1.bf16.msra.mxu0 %v2312
        %2332 = vmatprep.subr.bf16.mxu0 0
        %2333 = vmatpush1.bf16.msra.mxu0 %v2313
        %2334 = vmatprep.subr.bf16.mxu0 0
        %2335 = vmatpush1.bf16.msra.mxu0 %v2314
        %2336 = vmatprep.subr.bf16.mxu0 0
        %2337 = vmatpush1.bf16.msra.mxu0 %v2315
        %2338 = vmatprep.subr.bf16.mxu0 0
        %2339 = vmatpush1.bf16.msra.mxu0 %v2316
        %2340 = vmatprep.subr.bf16.mxu0 0
        %2341 = vmatpush1.bf16.msra.mxu0 %v2317
        %2342 = vmatprep.subr.bf16.mxu0 0
        %2343 = vmatpush1.bf16.msra.mxu0 0
        %2344 = vmatprep.subr.bf16.mxu0 0
        %2345 = vmatpush1.bf16.msra.mxu0 0
        %2346 = vmatprep.subr.bf16.mxu0 0
        %2347 = vmatpush1.bf16.msra.mxu0 0
        %2348 = vmatprep.subr.bf16.mxu0 0
        %2349 = vmatpush1.bf16.msra.mxu0 0
        %2350 = vmatprep.subr.bf16.mxu0 0
        %2351 = vmatpush1.bf16.msra.mxu0 0
        %2352 = vmatprep.subr.bf16.mxu0 0
        %2353 = vmatpush1.bf16.msra.mxu0 0
        %2354 = vmatprep.subr.bf16.mxu0 0
        %2355 = vmatpush1.bf16.msra.mxu0 0
        %2356 = vmatprep.subr.bf16.mxu0 0
        %2357 = vmatpush1.bf16.msra.mxu0 0
        %2358 = vmatprep.mubr.bf16.mxu0 0
        %2359 = vmatmul.mubr.bf16.gmra.mrb[0].mxu0 %v2273
        %v2360 = vpop.f32.mrb[0].mxu0
        %v2361 = vadd.f32 %v2277, %v2360
        %v2362 = vpop.f32.mrb[0].mxu0
        %v2363 = vpop.f32.mrb[0].mxu0
        %v2364 = vpop.f32.mrb[0].mxu0
        %2365 = vdwg.mxu0
        %v2366 = vadd.f32 %v2211, %v2361
        %v2367 = vsel %vm448, %v2366, 0.0
        %2368 = vadd.xlane.f32.xlu0 %v2367
        %v2369 = vpop.xlane.xlu0 %2368
        %v2370 = vmul.f32 %v2369, %v784
        %v2371 = vsub.f32 %v2366, %v2370
        %v2372 = vmul.f32 %v2371, %v2371
        %v2373 = vsel %vm448, %v2372, 0.0
        %2374 = vadd.xlane.f32.xlu0 %v2373
        %v2375 = vpop.xlane.xlu0 %2374
        %v2376 = vmul.f32 %v2375, %v784
        %v2377 = vadd.f32 %v2376, 1e-05
        %v2378 = vrsqrt.pop %v2377
        %v2379 = vmul.f32 %v2371, %v2378
        %v2380 = vlaneseq
        %v2381 = vshrl.u32 %v2380, 7
        %v2382 = vsub.s32 2, %v2381
        %v2383 = vrot.slane %v1397, %v2382
        %v2384 = vmul.f32 %v2379, %v2383
        %v2385 = vlaneseq
        %v2386 = vshrl.u32 %v2385, 7
        %v2387 = vsub.s32 3, %v2386
        %v2388 = vrot.slane %v1397, %v2387
        %v2389 = vadd.f32 %v2384, %v2388
        %v2390 = vld [vmem:[%s10] sm:$0x7]
        %v2391 = vpack.c.bf16 %v2389, %v2389
        %v2392 = vld [vmem:[%s8] sm:$0xf]
        %v2393 = vld [vmem:[%s8 + $0x4] sm:$0xf]
        %v2394 = vld [vmem:[%s8 + $0x8] sm:$0xf]
        %v2395 = vld [vmem:[%s8 + $0xc] sm:$0xf]
        %v2400 = vunpack.c.l.b16 %v2392
        %v2401 = vunpack.c.l.b16 %v2393
        %v2402 = vunpack.c.l.b16 %v2394
        %v2403 = vunpack.c.l.b16 %v2395
        %v2404 = vpack.c.b16 %v2401, %v2400
        %v2405 = vpack.c.b16 %v2403, %v2402
        %v2409 = vsel %vm448, %v2391, 0
        %2411 = vmatprep.subr.bf16.mxu0 0
        %2412 = vmatpush1.bf16.msra.mxu0 %v2404
        %2413 = vmatprep.subr.bf16.mxu0 0
        %2414 = vmatpush1.bf16.msra.mxu0 %v2405
        %2415 = vmatprep.subr.bf16.mxu0 0
        %2416 = vmatpush1.bf16.msra.mxu0 0
        %2417 = vmatprep.subr.bf16.mxu0 0
        %2418 = vmatpush1.bf16.msra.mxu0 0
        %2419 = vmatprep.subr.bf16.mxu0 0
        %2420 = vmatpush1.bf16.msra.mxu0 0
        %2421 = vmatprep.subr.bf16.mxu0 0
        %2422 = vmatpush1.bf16.msra.mxu0 0
        %2423 = vmatprep.subr.bf16.mxu0 0
        %2424 = vmatpush1.bf16.msra.mxu0 0
        %2425 = vmatprep.subr.bf16.mxu0 0
        %2426 = vmatpush1.bf16.msra.mxu0 0
        %2427 = vmatprep.subr.bf16.mxu0 0
        %2428 = vmatpush1.bf16.msra.mxu0 0
        %2429 = vmatprep.subr.bf16.mxu0 0
        %2430 = vmatpush1.bf16.msra.mxu0 0
        %2431 = vmatprep.subr.bf16.mxu0 0
        %2432 = vmatpush1.bf16.msra.mxu0 0
        %2433 = vmatprep.subr.bf16.mxu0 0
        %2434 = vmatpush1.bf16.msra.mxu0 0
        %2435 = vmatprep.subr.bf16.mxu0 0
        %2436 = vmatpush1.bf16.msra.mxu0 0
        %2437 = vmatprep.subr.bf16.mxu0 0
        %2438 = vmatpush1.bf16.msra.mxu0 0
        %2439 = vmatprep.subr.bf16.mxu0 0
        %2440 = vmatpush1.bf16.msra.mxu0 0
        %2441 = vmatprep.subr.bf16.mxu0 0
        %2442 = vmatpush1.bf16.msra.mxu0 0
        %2443 = vmatprep.mubr.bf16.mxu0 0
        %2444 = vmatmul.mubr.bf16.gmra.mrb[0].mxu0 %v2409
        %v2445 = vpop.f32.mrb[0].mxu0
        %v2446 = vadd.f32 0.0, %v2445
        %v2447 = vpop.f32.mrb[0].mxu0
        %v2448 = vpop.f32.mrb[0].mxu0
        %v2449 = vpop.f32.mrb[0].mxu0
        %2450 = vdwg.mxu0
        %v2451 = vlaneseq
        %v2452 = vshrl.u32 %v2451, 7
        %v2453 = vsub.s32 0, %v2452
        %v2454 = vrot.slane %v2390, %v2453
        %v2455 = vmul.f32 %v2446, %v2454
        %v2456 = vlaneseq
        %v2457 = vshrl.u32 %v2456, 7
        %v2458 = vsub.s32 1, %v2457
        %v2459 = vrot.slane %v2390, %v2458
        %v2460 = vadd.f32 %v2455, %v2459
        %v2461 = vmax.f32 %v2460, 0.0
        %v2462 = vmin.f32 %v2461, 6.0
        %v2464 = vrot.slane %v2462, 1
        %2465 = vrot.lane.b32.xlu0 %v2464, 32
        %v2466 = vpop.permute.xlu0 %2465
        %v2468 = vrot.slane %v2462, 2
        %2469 = vrot.lane.b32.xlu0 %v2468, 64
        %v2470 = vpop.permute.xlu0 %2469
        %v2472 = vrot.slane %v2462, 3
        %2473 = vrot.lane.b32.xlu0 %v2472, 96
        %v2474 = vpop.permute.xlu0 %2473
        %v2476 = vrot.slane %v2462, 4
        %v2478 = vrot.slane %v2462, 5
        %2479 = vrot.lane.b32.xlu0 %v2478, 32
        %v2480 = vpop.permute.xlu0 %2479
        %v2482 = vrot.slane %v2462, 6
        %2483 = vrot.lane.b32.xlu0 %v2482, 64
        %v2484 = vpop.permute.xlu0 %2483
        %v2486 = vrot.slane %v2462, 7
        %2487 = vrot.lane.b32.xlu0 %v2486, 96
        %v2488 = vpop.permute.xlu0 %2487
        %v2490 = vsel %vm448, %v2462, %v2466
        %vm2491 = vcmask 523264
        %v2492 = vsel %vm2491, %v2490, %v2470
        %vm2493 = vcmask 785408
        %v2494 = vsel %vm2493, %v2492, %v2474
        %v2495 = vsel %vm448, %v2476, %v2480
        %v2496 = vsel %vm2491, %v2495, %v2484
        %v2497 = vsel %vm2493, %v2496, %v2488
        %v2498 = vpack.c.bf16 %v2494, %v2494
        %v2499 = vpack.c.bf16 %v2497, %v2497
        %v2500 = vld [vmem:[%s9] sm:$0xf]
        %v2501 = vld [vmem:[%s9 + $0x4] sm:$0xf]
        %v2502 = vld [vmem:[%s9 + $0x8] sm:$0xf]
        %v2503 = vld [vmem:[%s9 + $0xc] sm:$0xf]
        %v2504 = vld [vmem:[%s9 + $0x10] sm:$0xf]
        %v2505 = vld [vmem:[%s9 + $0x14] sm:$0xf]
        %v2506 = vld [vmem:[%s9 + $0x18] sm:$0xf]
        %v2507 = vld [vmem:[%s9 + $0x1c] sm:$0xf]
        %v2508 = vld [vmem:[%s9 + $0x20] sm:$0xf]
        %v2509 = vld [vmem:[%s9 + $0x24] sm:$0xf]
        %v2510 = vld [vmem:[%s9 + $0x28] sm:$0xf]
        %v2511 = vld [vmem:[%s9 + $0x2c] sm:$0xf]
        %v2512 = vld [vmem:[%s9 + $0x30] sm:$0xf]
        %v2513 = vld [vmem:[%s9 + $0x34] sm:$0xf]
        %v2514 = vld [vmem:[%s9 + $0x38] sm:$0xf]
        %v2515 = vld [vmem:[%s9 + $0x3c] sm:$0xf]
        %v2516 = vld [vmem:[%s9 + $0x40] sm:$0xf]
        %v2517 = vld [vmem:[%s9 + $0x44] sm:$0xf]
        %v2518 = vld [vmem:[%s9 + $0x48] sm:$0xf]
        %v2519 = vld [vmem:[%s9 + $0x4c] sm:$0xf]
        %v2520 = vld [vmem:[%s9 + $0x50] sm:$0xf]
        %v2521 = vld [vmem:[%s9 + $0x54] sm:$0xf]
        %v2522 = vld [vmem:[%s9 + $0x58] sm:$0xf]
        %v2523 = vld [vmem:[%s9 + $0x5c] sm:$0xf]
        %v2524 = vld [vmem:[%s9 + $0x60] sm:$0xf]
        %v2525 = vld [vmem:[%s9 + $0x64] sm:$0xf]
        %v2526 = vld [vmem:[%s9 + $0x68] sm:$0xf]
        %v2527 = vld [vmem:[%s9 + $0x6c] sm:$0xf]
        %v2528 = vld [vmem:[%s9 + $0x70] sm:$0xf]
        %v2529 = vld [vmem:[%s9 + $0x74] sm:$0xf]
        %v2530 = vld [vmem:[%s9 + $0x78] sm:$0xf]
        %v2531 = vld [vmem:[%s9 + $0x7c] sm:$0xf]
        %v2564 = vunpack.c.l.b16 %v2500
        %v2565 = vunpack.c.l.b16 %v2501
        %v2566 = vunpack.c.l.b16 %v2502
        %v2567 = vunpack.c.l.b16 %v2503
        %v2568 = vunpack.c.l.b16 %v2504
        %v2569 = vunpack.c.l.b16 %v2505
        %v2570 = vunpack.c.l.b16 %v2506
        %v2571 = vunpack.c.l.b16 %v2507
        %v2572 = vunpack.c.l.b16 %v2508
        %v2573 = vunpack.c.l.b16 %v2509
        %v2574 = vunpack.c.l.b16 %v2510
        %v2575 = vunpack.c.l.b16 %v2511
        %v2576 = vunpack.c.l.b16 %v2512
        %v2577 = vunpack.c.l.b16 %v2513
        %v2578 = vunpack.c.l.b16 %v2514
        %v2579 = vunpack.c.l.b16 %v2515
        %v2580 = vunpack.c.l.b16 %v2516
        %v2581 = vunpack.c.l.b16 %v2517
        %v2582 = vunpack.c.l.b16 %v2518
        %v2583 = vunpack.c.l.b16 %v2519
        %v2584 = vunpack.c.l.b16 %v2520
        %v2585 = vunpack.c.l.b16 %v2521
        %v2586 = vunpack.c.l.b16 %v2522
        %v2587 = vunpack.c.l.b16 %v2523
        %v2588 = vunpack.c.l.b16 %v2524
        %v2589 = vunpack.c.l.b16 %v2525
        %v2590 = vunpack.c.l.b16 %v2526
        %v2591 = vunpack.c.l.b16 %v2527
        %v2592 = vunpack.c.l.b16 %v2528
        %v2593 = vunpack.c.l.b16 %v2529
        %v2594 = vunpack.c.l.b16 %v2530
        %v2595 = vunpack.c.l.b16 %v2531
        %v2596 = vpack.c.b16 %v2565, %v2564
        %v2597 = vpack.c.b16 %v2567, %v2566
        %v2598 = vpack.c.b16 %v2569, %v2568
        %v2599 = vpack.c.b16 %v2571, %v2570
        %v2600 = vpack.c.b16 %v2573, %v2572
        %v2601 = vpack.c.b16 %v2575, %v2574
        %v2602 = vpack.c.b16 %v2577, %v2576
        %v2603 = vpack.c.b16 %v2579, %v2578
        %v2604 = vpack.c.b16 %v2581, %v2580
        %v2605 = vpack.c.b16 %v2583, %v2582
        %v2606 = vpack.c.b16 %v2585, %v2584
        %v2607 = vpack.c.b16 %v2587, %v2586
        %v2608 = vpack.c.b16 %v2589, %v2588
        %v2609 = vpack.c.b16 %v2591, %v2590
        %v2610 = vpack.c.b16 %v2593, %v2592
        %v2611 = vpack.c.b16 %v2595, %v2594
        %v2629 = vrot.slane %v2390, 2
        %2631 = vmatprep.subr.bf16.mxu0 0
        %2632 = vmatpush1.bf16.msra.mxu0 %v2596
        %2633 = vmatprep.subr.bf16.mxu0 0
        %2634 = vmatpush1.bf16.msra.mxu0 %v2597
        %2635 = vmatprep.subr.bf16.mxu0 0
        %2636 = vmatpush1.bf16.msra.mxu0 %v2598
        %2637 = vmatprep.subr.bf16.mxu0 0
        %2638 = vmatpush1.bf16.msra.mxu0 %v2599
        %2639 = vmatprep.subr.bf16.mxu0 0
        %2640 = vmatpush1.bf16.msra.mxu0 %v2600
        %2641 = vmatprep.subr.bf16.mxu0 0
        %2642 = vmatpush1.bf16.msra.mxu0 %v2601
        %2643 = vmatprep.subr.bf16.mxu0 0
        %2644 = vmatpush1.bf16.msra.mxu0 %v2602
        %2645 = vmatprep.subr.bf16.mxu0 0
        %2646 = vmatpush1.bf16.msra.mxu0 %v2603
        %2647 = vmatprep.subr.bf16.mxu0 0
        %2648 = vmatpush1.bf16.msra.mxu0 %v2604
        %2649 = vmatprep.subr.bf16.mxu0 0
        %2650 = vmatpush1.bf16.msra.mxu0 %v2605
        %2651 = vmatprep.subr.bf16.mxu0 0
        %2652 = vmatpush1.bf16.msra.mxu0 %v2606
        %2653 = vmatprep.subr.bf16.mxu0 0
        %2654 = vmatpush1.bf16.msra.mxu0 %v2607
        %2655 = vmatprep.subr.bf16.mxu0 0
        %2656 = vmatpush1.bf16.msra.mxu0 %v2608
        %2657 = vmatprep.subr.bf16.mxu0 0
        %2658 = vmatpush1.bf16.msra.mxu0 %v2609
        %2659 = vmatprep.subr.bf16.mxu0 0
        %2660 = vmatpush1.bf16.msra.mxu0 %v2610
        %2661 = vmatprep.subr.bf16.mxu0 0
        %2662 = vmatpush1.bf16.msra.mxu0 %v2611
        %2663 = vmatprep.mubr.bf16.mxu0 %v2499
        %2664 = vmatmul.mubr.bf16.gmra.mrb[0].mxu0 %v2498
        %v2665 = vpop.f32.mrb[0].mxu0
        %v2666 = vadd.f32 %v2629, %v2665
        %v2667 = vpop.f32.mrb[0].mxu0
        %v2668 = vpop.f32.mrb[0].mxu0
        %v2669 = vpop.f32.mrb[0].mxu0
        %2670 = vdwg.mxu0
        %vm2671 = vcmask 253952
        %2672 = vst.msk [vmem:[%s376] sm:$0x1] %vm2671, %v2666
        %s2673 = sand.u32 %s269, 1
        %s2674 = scalar_lea.sflag [#allocation3], %s2673
        %s2675 = sand.u32 %s269, 1
        %s2676 = scalar_lea.vmem [#allocation2], %s2675
        // Predicated region
        $region65: #{model_forward.1} parent=63 // pred_check
          %p2677 = pneg %p279
        $region66: #{model_forward.1} parent=63 // pred_check_branch
          %2679 = sbr.rel (%p2677) target = $region68
        $region67: #{model_forward.1} parent=63 // pred_region
          %s2681 = ssub.s32 16, 16
          %2682 = vsyncadd %s2674, %s2681
          %s2683 = smul.addr %s25, 16
          %s2684 = scalar_lea.hbm %s11, %s2683
          %s2686 = sshll.u32 %s2676, 4
          %s2687 = int_to_ptr.vmem [resolvable:$true] %s2686
          %2689 = dma.vmem_to_hbm [thread:$0]  %s2687, 16, %s2684, %s2674
        $region68: #{model_forward.1} parent=63 // pred_fallthru
          _
      $region64: #{model_forward.1} parent=5 // pred_fallthru
        _
      %p2690 = scmp.le.s32.totalorder 2, %s20
      // Predicated region
      $region69: #{model_forward.1} parent=5 // pred_check
        %p2691 = pneg %p2690
      $region70: #{model_forward.1} parent=5 // pred_check_branch
        %2693 = sbr.rel (%p2691) target = $region72
      $region71: #{model_forward.1} parent=5 // pred_region
        %s2694 = ssub.s32 %s20, 2
        // Predicated region
        $region73: #{model_forward.1} parent=71 // pred_check
          %p2695 = pneg %p285
        $region74: #{model_forward.1} parent=71 // pred_check_branch
          %2697 = sbr.rel (%p2695) target = $region76
        $region75: #{model_forward.1} parent=71 // pred_region
          %s2698 = sand.u32 %s270, 1
          %s2699 = scalar_lea.sflag [#allocation3], %s2698
          %s2700 = sand.u32 %s270, 1
          %s2701 = scalar_lea.vmem [#allocation2], %s2700
          %2702 = dma.done %s2699, 16
        $region76: #{model_forward.1} parent=71 // pred_fallthru
          _
      $region72: #{model_forward.1} parent=5 // pred_fallthru
        _
    $region6: #{model_forward.1} parent=1 // loop_footer
      %s24 = sadd.s32 1, %s20
    $region7: #{model_forward.1} parent=1 // loop_footer_branch
      %19 = sbr.rel target = $region3
    $region8: #{model_forward.1} parent=1 // loop_exit
      _
    %2703 = vsyncpa [#allocation3], 1
    %s2704 = scalar_lea.sflag [#allocation3], 1
    %2705 = vsyncpa %s2704, 1

</llo_original>
